<compile_context>
chip_gen: v7x
topology: tpu7x:2x2x1
jax: 0.10.0
libtpu: 0.0.40
codegen_flags: <defaults>
</compile_context>

<pallas_src>
import jax
import jax.numpy as jnp
from jax.experimental import pallas as pl
from jax.experimental.pallas import tpu as pltpu


# ----------------------------------------------------------------------------
# Fused forward kernel (one batch block per grid step).
# ----------------------------------------------------------------------------
def _quantum_fwd_kernel(tok_ref, t2g_ref, whh_ref, b_ref,
                        aw1_ref, ab1_ref, aw2_ref, ab2_ref,
                        c1w_ref, c1b_ref, c2w_ref, c2b_ref,
                        fcw_t_ref, fcw_c_ref, fcb_ref, ow_ref, ob_ref,
                        out_ref, xg_sc, hs_sc, pad1_sc, pad2_sc):
    L, Bb, _ = tok_ref.shape
    Vp, G = t2g_ref.shape              # G = 8H = [i | f | g | o] gate blocks
    H2 = whh_ref.shape[0]              # 2H = [fwd H | bwd H]
    H = H2 // 2
    C1 = c1b_ref.shape[1]
    C2 = c2b_ref.shape[1]
    Lh, T = L // 2, L // 4

    def rev_time(x):
        # Time reversal along the leading axis via static slices (safe Mosaic
        # lowering; runs off the recurrence critical path).
        n = x.shape[0]
        return jnp.concatenate([x[n - 1 - s][None] for s in range(n)], axis=0)

    # ---- Embedding + hoisted input projection: one-hot(tokens) @ (emb @ W_ih),
    #      one lane-aligned bf16 matmul covering every timestep/gate/direction.
    eq = (jax.lax.broadcasted_iota(jnp.int32, (L, Bb, Vp), 2) == tok_ref[...])
    onehot = jnp.where(eq, 1.0, 0.0).astype(jnp.bfloat16).reshape(L * Bb, Vp)
    xp = jnp.dot(onehot, t2g_ref[...], preferred_element_type=jnp.float32)
    xpb = (xp + b_ref[...]).reshape(L, Bb, G)          # bias folded in once

    # Vectorized pre-pass: per-step gate inputs for both directions.
    # fwd lanes (first H of each 2H gate block) read time s, bwd lanes L-1-s.
    fwd_cols = (jax.lax.broadcasted_iota(jnp.int32, (L, Bb, G), 2) % H2) < H
    xg_sc[...] = jnp.where(fwd_cols, xpb, rev_time(xpb))

    whh = whh_ref[...]                 # (2H, 8H) block-diagonal per direction, bf16

    # ---- Unrolled joint fwd/bwd recurrence: h/c carried as (Bb, 2H) values.
    def step(s, carry):
        h, c = carry
        gates = xg_sc[s] + jnp.dot(h.astype(jnp.bfloat16), whh,
                                   preferred_element_type=jnp.float32)
        sg = jax.nn.sigmoid(gates)     # one EUP pass: i, f, o lanes used
        tg = jnp.tanh(gates)           # one EUP pass: g lanes used
        i = sg[:, 0:H2]                # PyTorch gate order i, f, g, o
        f = sg[:, H2:2 * H2]
        g = tg[:, 2 * H2:3 * H2]
        o = sg[:, 3 * H2:4 * H2]
        c_new = f * c + i * g          # (Bb, 2H) = [fwd | bwd]
        h_new = o * jnp.tanh(c_new)
        hs_sc[s] = h_new               # single store, off the carry chain
        return h_new, c_new

    h0 = jnp.zeros((Bb, H2), jnp.float32)
    c0 = jnp.zeros((Bb, H2), jnp.float32)
    jax.lax.fori_loop(0, L, step, (h0, c0), unroll=True)

    # Bulk fwd/bwd combine: output time t takes fwd hidden from step t and bwd
    # hidden from step L-1-t.  lstm_out stays a VMEM value (no HBM round-trip).
    hs = hs_sc[...]
    lane = jax.lax.broadcasted_iota(jnp.int32, (L, Bb, H2), 2)
    lstm_out = jnp.where(lane < H, hs, rev_time(hs))   # (L, Bb, 2H) f32

    # ---- attention_net: Linear -> tanh -> Linear -> softmax over time -> context
    x16 = lstm_out.astype(jnp.bfloat16)
    xf16 = x16.reshape(L * Bb, H2)
    th_a = jnp.tanh(jnp.dot(xf16, aw1_ref[...],
                            preferred_element_type=jnp.float32) + ab1_ref[...])
    score = (jnp.sum(th_a * aw2_ref[...], axis=1, keepdims=True)
             + ab2_ref[...]).reshape(L, Bb, 1)
    score = score - jnp.max(score, axis=0, keepdims=True)
    e = jnp.exp(score)
    attn_w = e / jnp.sum(e, axis=0, keepdims=True)
    context = jnp.sum(lstm_out * attn_w, axis=0)        # (Bb, 2H)

    # ---- Conv1d(k=3, pad=1) as 3 leading-axis-shifted matmuls off a 3-D padded
    #      scratch (shifted views never cross sublane tiles), then ReLU.
    def conv_relu(pad_ref, x3_bf16, w_ref, b_row, Lx, Cin, Cout):
        pad_ref[0] = jnp.zeros((Bb, Cin), jnp.bfloat16)
        pad_ref[Lx + 1] = jnp.zeros((Bb, Cin), jnp.bfloat16)
        pad_ref[1:Lx + 1] = x3_bf16
        acc = b_row                                     # (1, Cout) f32, broadcasts
        for k in range(3):
            acc = acc + jnp.dot(pad_ref[k:k + Lx].reshape(Lx * Bb, Cin), w_ref[k],
                                preferred_element_type=jnp.float32)
        return jnp.maximum(acc, 0.0).reshape(Lx, Bb, Cout)

    # MaxPool1d(kernel_size=2) over time: pair adjacent time rows.
    def maxpool2_time(y3):
        Lx, _, C = y3.shape
        y4 = y3.reshape(Lx // 2, 2, Bb, C)
        return jnp.maximum(y4[:, 0], y4[:, 1])          # (Lx//2, Bb, C)

    y = conv_relu(pad1_sc, x16, c1w_ref, c1b_ref[...], L, H2, C1)    # (L, Bb, 64)
    y = maxpool2_time(y)                                             # (L/2, Bb, 64)
    y = conv_relu(pad2_sc, y.astype(jnp.bfloat16), c2w_ref, c2b_ref[...],
                  Lh, C1, C2)                                        # (L/2, Bb, 128)
    y = maxpool2_time(y)                                             # (T, Bb, 128)

    # ---- fc over [conv features (time-major), attention context] as T+1
    #      accumulated partial matmuls (no lane-concat repack).
    y16 = y.astype(jnp.bfloat16)
    h_fc = fcb_ref[...]                                              # (1, 128)
    for t in range(T):
        h_fc = h_fc + jnp.dot(y16[t], fcw_t_ref[t],
                              preferred_element_type=jnp.float32)
    h_fc = h_fc + jnp.dot(context.astype(jnp.bfloat16), fcw_c_ref[...],
                          preferred_element_type=jnp.float32)
    h_fc = jnp.maximum(h_fc, 0.0)     # ReLU; dropout is identity at inference

    logits = jnp.dot(h_fc.astype(jnp.bfloat16), ow_ref[...],
                     preferred_element_type=jnp.float32) + ob_ref[...]
    logits = logits - jnp.max(logits, axis=1, keepdims=True)
    el = jnp.exp(logits)
    out_ref[...] = el / jnp.sum(el, axis=1, keepdims=True)


# ----------------------------------------------------------------------------
# Wrapper: one fused pallas_call, batch-parallel grid.
# ----------------------------------------------------------------------------
@jax.jit
def quantum_classifier_forward(tokens, params):
    B, L = tokens.shape
    NL = params['out_b'].shape[1]
    H2, G = params['whh_cat'].shape
    C1 = params['conv1_b'].shape[1]

    # Time-major token layout (tiny int op; the float gather/transpose that used
    # to live here is now folded into tok2gate + the in-kernel one-hot matmul).
    tok_lb = jnp.transpose(tokens.astype(jnp.int32), (1, 0))[:, :, None]  # (L,B,1)

    # Batch rows per grid step: split big batches so both v7x cores get work.
    bb = 128 if (B % 128 == 0) else B
    nb = B // bb

    vmem = pl.BlockSpec(memory_space=pltpu.MemorySpace.VMEM)

    grid_spec = pltpu.PrefetchScalarGridSpec(
        num_scalar_prefetch=0,
        grid=(nb,),
        in_specs=[pl.BlockSpec((L, bb, 1), lambda i: (0, i, 0))] + [vmem] * 16,
        out_specs=pl.BlockSpec((bb, NL), lambda i: (i, 0)),
        scratch_shapes=[
            pltpu.VMEM((L, bb, G), jnp.float32),             # xg_all (pre-gate inputs)
            pltpu.VMEM((L, bb, H2), jnp.float32),            # per-step hidden states
            pltpu.VMEM((L + 2, bb, H2), jnp.bfloat16),       # conv1 zero-padded input
            pltpu.VMEM((L // 2 + 2, bb, C1), jnp.bfloat16),  # conv2 zero-padded input
        ],
    )
    # TODO(synk): at large L/B/H, store xg_all in bf16 and/or block it over time
    # so the scratches stay well under v7x's 64 MiB VMEM.
    return pl.pallas_call(
        _quantum_fwd_kernel,
        out_shape=jax.ShapeDtypeStruct((B, NL), jnp.float32),
        grid_spec=grid_spec,
        compiler_params=pltpu.CompilerParams(
            dimension_semantics=("parallel",),
            vmem_limit_bytes=32 * 1024 * 1024),
    )(tok_lb, params['tok2gate'], params['whh_cat'], params['b_cat'],
      params['attn_w1'], params['attn_b1'], params['attn_w2'], params['attn_b2'],
      params['conv1_w'], params['conv1_b'], params['conv2_w'], params['conv2_b'],
      params['fc_w_time'], params['fc_w_ctx'], params['fc_b'],
      params['out_w'], params['out_b'])


# ----------------------------------------------------------------------------
# Parameters (random init mirroring the PyTorch module's shapes / layouts).
# ----------------------------------------------------------------------------
def init_params(key, vocab_size, E, H, num_labels, max_len):
    assert max_len % 4 == 0
    C1, C2, FC = 64, 128, 128            # fixed by the module definition
    T = max_len // 4
    H2 = 2 * H
    G = 4 * H2
    Vp = ((vocab_size + 127) // 128) * 128   # lane-dense K for the one-hot matmul
    ks = jax.random.split(key, 24)

    def rnd(k, shape, scale=0.1):
        return scale * jax.random.normal(k, shape, dtype=jnp.float32)

    # Embedding (padding_idx=0 row zeroed).
    emb = rnd(ks[0], (vocab_size, E)).at[0].set(0.0)

    # Per-gate (i,f,g,o), per-direction LSTM weights; gate bias = b_ih + b_hh
    # (PyTorch has two bias vectors per direction -- they must be summed here).
    wih_f = rnd(ks[1], (4, E, H)); whh_f = rnd(ks[2], (4, H, H))
    b_f = rnd(ks[3], (4, 1, H)) + rnd(ks[4], (4, 1, H))
    wih_b = rnd(ks[5], (4, E, H)); whh_b = rnd(ks[6], (4, H, H))
    b_b = rnd(ks[7], (4, 1, H)) + rnd(ks[8], (4, 1, H))

    # Fused gate layout: columns = [i | f | g | o] blocks of 2H, each [fwd H | bwd H].
    wih_cat = jnp.zeros((E, G), jnp.float32)
    whh_cat = jnp.zeros((H2, G), jnp.float32)   # block-diagonal: fwd h -> fwd cols only
    b_cat = jnp.zeros((1, G), jnp.float32)
    for gi in range(4):
        c0 = gi * H2
        wih_cat = wih_cat.at[:, c0:c0 + H].set(wih_f[gi]).at[:, c0 + H:c0 + H2].set(wih_b[gi])
        whh_cat = whh_cat.at[0:H, c0:c0 + H].set(whh_f[gi]).at[H:H2, c0 + H:c0 + H2].set(whh_b[gi])
        b_cat = b_cat.at[:, c0:c0 + H].set(b_f[gi]).at[:, c0 + H:c0 + H2].set(b_b[gi])

    # Embedding folded into the input projection: tok2gate[v] = emb[v] @ wih_cat,
    # zero-padded to Vp rows so the in-kernel one-hot matmul is MXU/lane aligned.
    tok2gate = jnp.zeros((Vp, G), jnp.float32).at[:vocab_size].set(emb @ wih_cat)

    # fc weight in PyTorch flatten order (conv rows = channel*T + t), re-ordered
    # into (time, channel) chunks for the kernel's partial matmuls; the final 2H
    # rows multiply the attention context.
    fc_w = rnd(ks[15], (C2 * T + H2, FC))
    fc_w_time = fc_w[:C2 * T].reshape(C2, T, FC).transpose(1, 0, 2)   # (T, C2, FC)
    fc_w_ctx = fc_w[C2 * T:]                                          # (2H, FC)

    bf16 = jnp.bfloat16
    return dict(
        tok2gate=tok2gate.astype(bf16),
        whh_cat=whh_cat.astype(bf16), b_cat=b_cat,
        attn_w1=rnd(ks[9], (H2, H)).astype(bf16), attn_b1=rnd(ks[10], (1, H)),
        attn_w2=rnd(ks[11], (1, H)), attn_b2=rnd(ks[12], (1, 1)),
        conv1_w=rnd(ks[13], (3, H2, C1)).astype(bf16), conv1_b=rnd(ks[14], (1, C1)),
        conv2_w=rnd(ks[16], (3, C1, C2)).astype(bf16), conv2_b=rnd(ks[17], (1, C2)),
        fc_w_time=fc_w_time.astype(bf16), fc_w_ctx=fc_w_ctx.astype(bf16),
        fc_b=rnd(ks[18], (1, FC)),
        out_w=rnd(ks[19], (FC, num_labels)).astype(bf16),
        out_b=rnd(ks[20], (1, num_labels)),
    )


if __name__ == "__main__":
    key = jax.random.PRNGKey(0)
    vocab_size, E, H, num_labels, max_len, B = 50, 32, 16, 5, 8, 2

    params = init_params(key, vocab_size, E, H, num_labels, max_len)
    tokens = jax.random.randint(jax.random.fold_in(key, 123),
                                (B, max_len), 0, vocab_size, dtype=jnp.int32)

    probs = quantum_classifier_forward(tokens, params)
    probs = jax.block_until_ready(probs)

    assert probs.shape == (B, num_labels)
    assert bool(jnp.all(jnp.isfinite(probs)))
    assert bool(jnp.allclose(jnp.sum(probs, axis=1), 1.0, atol=1e-4))
    print("KERNEL_OK")
</pallas_src>

<mosaic_0001>
module attributes {stable_mosaic.version = 11 : i64} {
  func.func @_quantum_fwd_kernel(%arg0: i32, %arg1: memref<8x2x1xi32, #tpu.memory_space<vmem>>, %arg2: memref<128x128xbf16, #tpu.memory_space<vmem>>, %arg3: memref<32x128xbf16, #tpu.memory_space<vmem>>, %arg4: memref<1x128xf32, #tpu.memory_space<vmem>>, %arg5: memref<32x16xbf16, #tpu.memory_space<vmem>>, %arg6: memref<1x16xf32, #tpu.memory_space<vmem>>, %arg7: memref<1x16xf32, #tpu.memory_space<vmem>>, %arg8: memref<1x1xf32, #tpu.memory_space<vmem>>, %arg9: memref<3x32x64xbf16, #tpu.memory_space<vmem>>, %arg10: memref<1x64xf32, #tpu.memory_space<vmem>>, %arg11: memref<3x64x128xbf16, #tpu.memory_space<vmem>>, %arg12: memref<1x128xf32, #tpu.memory_space<vmem>>, %arg13: memref<2x128x128xbf16, #tpu.memory_space<vmem>>, %arg14: memref<32x128xbf16, #tpu.memory_space<vmem>>, %arg15: memref<1x128xf32, #tpu.memory_space<vmem>>, %arg16: memref<128x5xbf16, #tpu.memory_space<vmem>>, %arg17: memref<1x5xf32, #tpu.memory_space<vmem>>, %arg18: memref<2x5xf32, #tpu.memory_space<vmem>>, %arg19: memref<8x2x128xf32, #tpu.memory_space<vmem>>, %arg20: memref<8x2x32xf32, #tpu.memory_space<vmem>>, %arg21: memref<10x2x32xbf16, #tpu.memory_space<vmem>>, %arg22: memref<6x2x64xbf16, #tpu.memory_space<vmem>>) attributes {dimension_semantics = [#tpu.dimension_semantics<parallel>], iteration_bounds = array<i64: 1>, scalar_prefetch = 0 : i64, scratch_operands = 4 : i64, tpu.core_type = #tpu.core_type<tc>, window_params = [{transform_indices = @transform_0, window_bounds = array<i64: 8, 2, 1>}, {pipeline_mode = #tpu.pipeline_mode<synchronous>, transform_indices = @transform_1, window_bounds = array<i64: 128, 128>}, {pipeline_mode = #tpu.pipeline_mode<synchronous>, transform_indices = @transform_2, window_bounds = array<i64: 32, 128>}, {pipeline_mode = #tpu.pipeline_mode<synchronous>, transform_indices = @transform_3, window_bounds = array<i64: 1, 128>}, {pipeline_mode = #tpu.pipeline_mode<synchronous>, transform_indices = @transform_4, window_bounds = array<i64: 32, 16>}, {pipeline_mode = #tpu.pipeline_mode<synchronous>, transform_indices = @transform_5, window_bounds = array<i64: 1, 16>}, {pipeline_mode = #tpu.pipeline_mode<synchronous>, transform_indices = @transform_6, window_bounds = array<i64: 1, 16>}, {pipeline_mode = #tpu.pipeline_mode<synchronous>, transform_indices = @transform_7, window_bounds = array<i64: 1, 1>}, {pipeline_mode = #tpu.pipeline_mode<synchronous>, transform_indices = @transform_8, window_bounds = array<i64: 3, 32, 64>}, {pipeline_mode = #tpu.pipeline_mode<synchronous>, transform_indices = @transform_9, window_bounds = array<i64: 1, 64>}, {pipeline_mode = #tpu.pipeline_mode<synchronous>, transform_indices = @transform_10, window_bounds = array<i64: 3, 64, 128>}, {pipeline_mode = #tpu.pipeline_mode<synchronous>, transform_indices = @transform_11, window_bounds = array<i64: 1, 128>}, {pipeline_mode = #tpu.pipeline_mode<synchronous>, transform_indices = @transform_12, window_bounds = array<i64: 2, 128, 128>}, {pipeline_mode = #tpu.pipeline_mode<synchronous>, transform_indices = @transform_13, window_bounds = array<i64: 32, 128>}, {pipeline_mode = #tpu.pipeline_mode<synchronous>, transform_indices = @transform_14, window_bounds = array<i64: 1, 128>}, {pipeline_mode = #tpu.pipeline_mode<synchronous>, transform_indices = @transform_15, window_bounds = array<i64: 128, 5>}, {pipeline_mode = #tpu.pipeline_mode<synchronous>, transform_indices = @transform_16, window_bounds = array<i64: 1, 5>}, {transform_indices = @transform_17, window_bounds = array<i64: 2, 5>}]} {
    %0 = tpu.iota {dimensions = array<i32: 2>} : vector<8x2x128xi32>
    %c0 = arith.constant 0 : index
    %c0_0 = arith.constant 0 : index
    %c0_1 = arith.constant 0 : index
    %1 = vector.load %arg1[%c0, %c0_0, %c0_1] : memref<8x2x1xi32, #tpu.memory_space<vmem>>, vector<8x2x1xi32>
    %2 = vector.broadcast %1 : vector<8x2x1xi32> to vector<8x2x128xi32>
    %3 = arith.cmpi eq, %0, %2 : vector<8x2x128xi32>
    %cst = arith.constant 1.000000e+00 : f32
    %cst_2 = arith.constant 0.000000e+00 : f32
    %4 = vector.broadcast %cst : f32 to vector<8x2x128xf32>
    %5 = vector.broadcast %cst_2 : f32 to vector<8x2x128xf32>
    %6 = arith.select %3, %4, %5 : vector<8x2x128xi1>, vector<8x2x128xf32>
    %7 = arith.truncf %6 : vector<8x2x128xf32> to vector<8x2x128xbf16>
    %8 = vector.shape_cast %7 : vector<8x2x128xbf16> to vector<16x128xbf16>
    %c0_3 = arith.constant 0 : index
    %c0_4 = arith.constant 0 : index
    %9 = vector.load %arg2[%c0_3, %c0_4] : memref<128x128xbf16, #tpu.memory_space<vmem>>, vector<128x128xbf16>
    %cst_5 = arith.constant dense<0.000000e+00> : vector<16x128xf32>
    %10 = tpu.matmul %8, %9, %cst_5 {dimension_numbers = #tpu.dot_dimension_numbers<[1], [0], [0], [1], [0, 0, 1, 1], [], []>} : vector<16x128xbf16>, vector<128x128xbf16>, vector<16x128xf32> -> vector<16x128xf32>
    %c0_6 = arith.constant 0 : index
    %c0_7 = arith.constant 0 : index
    %11 = vector.load %arg4[%c0_6, %c0_7] : memref<1x128xf32, #tpu.memory_space<vmem>>, vector<1x128xf32>
    %12 = vector.broadcast %11 : vector<1x128xf32> to vector<16x128xf32>
    %13 = arith.addf %10, %12 : vector<16x128xf32>
    %14 = vector.shape_cast %13 : vector<16x128xf32> to vector<8x2x128xf32>
    %15 = tpu.iota {dimensions = array<i32: 2>} : vector<8x2x128xi32>
    %c32_i32 = arith.constant 32 : i32
    %c0_i32 = arith.constant 0 : i32
    %16 = arith.cmpi eq, %c32_i32, %c0_i32 : i32
    %c1_i32 = arith.constant 1 : i32
    %17 = arith.select %16, %c1_i32, %c32_i32 : i32
    %18 = vector.broadcast %17 : i32 to vector<8x2x128xi32>
    %19 = arith.remsi %15, %18 : vector<8x2x128xi32>
    %c0_i32_8 = arith.constant 0 : i32
    %20 = vector.broadcast %c0_i32_8 : i32 to vector<8x2x128xi32>
    %21 = arith.cmpi ne, %19, %20 : vector<8x2x128xi32>
    %c0_i32_9 = arith.constant 0 : i32
    %22 = vector.broadcast %c0_i32_9 : i32 to vector<8x2x128xi32>
    %23 = arith.cmpi slt, %19, %22 : vector<8x2x128xi32>
    %c0_i32_10 = arith.constant 0 : i32
    %24 = arith.cmpi slt, %17, %c0_i32_10 : i32
    %25 = vector.broadcast %24 : i1 to vector<8x2x128xi1>
    %26 = vector.broadcast %25 : vector<8x2x128xi1> to vector<8x2x128xi1>
    %27 = arith.xori %23, %26 : vector<8x2x128xi1>
    %28 = arith.andi %27, %21 : vector<8x2x128xi1>
    %29 = vector.broadcast %17 : i32 to vector<8x2x128xi32>
    %30 = arith.addi %19, %29 : vector<8x2x128xi32>
    %31 = arith.select %28, %30, %19 : vector<8x2x128xi1>, vector<8x2x128xi32>
    %c16_i32 = arith.constant 16 : i32
    %32 = vector.broadcast %c16_i32 : i32 to vector<8x2x128xi32>
    %33 = arith.cmpi slt, %31, %32 : vector<8x2x128xi32>
    %34 = vector.extract_strided_slice %14 {offsets = [7, 0, 0], sizes = [1, 2, 128], strides = [1, 1, 1]} : vector<8x2x128xf32> to vector<1x2x128xf32>
    %35 = vector.shape_cast %34 : vector<1x2x128xf32> to vector<2x128xf32>
    %36 = vector.shape_cast %35 : vector<2x128xf32> to vector<1x2x128xf32>
    %37 = vector.extract_strided_slice %14 {offsets = [6, 0, 0], sizes = [1, 2, 128], strides = [1, 1, 1]} : vector<8x2x128xf32> to vector<1x2x128xf32>
    %38 = vector.shape_cast %37 : vector<1x2x128xf32> to vector<2x128xf32>
    %39 = vector.shape_cast %38 : vector<2x128xf32> to vector<1x2x128xf32>
    %40 = vector.extract_strided_slice %14 {offsets = [5, 0, 0], sizes = [1, 2, 128], strides = [1, 1, 1]} : vector<8x2x128xf32> to vector<1x2x128xf32>
    %41 = vector.shape_cast %40 : vector<1x2x128xf32> to vector<2x128xf32>
    %42 = vector.shape_cast %41 : vector<2x128xf32> to vector<1x2x128xf32>
    %43 = vector.extract_strided_slice %14 {offsets = [4, 0, 0], sizes = [1, 2, 128], strides = [1, 1, 1]} : vector<8x2x128xf32> to vector<1x2x128xf32>
    %44 = vector.shape_cast %43 : vector<1x2x128xf32> to vector<2x128xf32>
    %45 = vector.shape_cast %44 : vector<2x128xf32> to vector<1x2x128xf32>
    %46 = vector.extract_strided_slice %14 {offsets = [3, 0, 0], sizes = [1, 2, 128], strides = [1, 1, 1]} : vector<8x2x128xf32> to vector<1x2x128xf32>
    %47 = vector.shape_cast %46 : vector<1x2x128xf32> to vector<2x128xf32>
    %48 = vector.shape_cast %47 : vector<2x128xf32> to vector<1x2x128xf32>
    %49 = vector.extract_strided_slice %14 {offsets = [2, 0, 0], sizes = [1, 2, 128], strides = [1, 1, 1]} : vector<8x2x128xf32> to vector<1x2x128xf32>
    %50 = vector.shape_cast %49 : vector<1x2x128xf32> to vector<2x128xf32>
    %51 = vector.shape_cast %50 : vector<2x128xf32> to vector<1x2x128xf32>
    %52 = vector.extract_strided_slice %14 {offsets = [1, 0, 0], sizes = [1, 2, 128], strides = [1, 1, 1]} : vector<8x2x128xf32> to vector<1x2x128xf32>
    %53 = vector.shape_cast %52 : vector<1x2x128xf32> to vector<2x128xf32>
    %54 = vector.shape_cast %53 : vector<2x128xf32> to vector<1x2x128xf32>
    %55 = vector.extract_strided_slice %14 {offsets = [0, 0, 0], sizes = [1, 2, 128], strides = [1, 1, 1]} : vector<8x2x128xf32> to vector<1x2x128xf32>
    %56 = vector.shape_cast %55 : vector<1x2x128xf32> to vector<2x128xf32>
    %57 = vector.shape_cast %56 : vector<2x128xf32> to vector<1x2x128xf32>
    %58 = tpu.concatenate %36, %39, %42, %45, %48, %51, %54, %57 in 0 : vector<1x2x128xf32>, vector<1x2x128xf32>, vector<1x2x128xf32>, vector<1x2x128xf32>, vector<1x2x128xf32>, vector<1x2x128xf32>, vector<1x2x128xf32>, vector<1x2x128xf32> -> vector<8x2x128xf32>
    %59 = arith.select %33, %14, %58 : vector<8x2x128xi1>, vector<8x2x128xf32>
    %c0_11 = arith.constant 0 : index
    %c0_12 = arith.constant 0 : index
    %c0_13 = arith.constant 0 : index
    %60 = vector.load %arg19[%c0_11, %c0_12, %c0_13] : memref<8x2x128xf32, #tpu.memory_space<vmem>>, vector<8x2x128xf32>
    tpu.vector_store %arg19[%c0_11, %c0_12, %c0_13], %59 {strides = array<i32>} : memref<8x2x128xf32, #tpu.memory_space<vmem>>, vector<8x2x128xf32>,
    %c0_14 = arith.constant 0 : index
    %c0_15 = arith.constant 0 : index
    %61 = vector.load %arg3[%c0_14, %c0_15] : memref<32x128xbf16, #tpu.memory_space<vmem>>, vector<32x128xbf16>
    %cst_16 = arith.constant 0.000000e+00 : f32
    %62 = vector.broadcast %cst_16 : f32 to vector<2x32xf32>
    %cst_17 = arith.constant 0.000000e+00 : f32
    %63 = vector.broadcast %cst_17 : f32 to vector<2x32xf32>
    %c0_i32_18 = arith.constant 0 : i32
    %64 = arith.index_cast %c0_i32_18 : i32 to index
    %c0_19 = arith.constant 0 : index
    %c0_20 = arith.constant 0 : index
    %65 = vector.load %arg19[%64, %c0_19, %c0_20] : memref<8x2x128xf32, #tpu.memory_space<vmem>>, vector<1x2x128xf32>
    %66 = vector.shape_cast %65 : vector<1x2x128xf32> to vector<2x128xf32>
    %67 = arith.truncf %62 : vector<2x32xf32> to vector<2x32xbf16>
    %cst_21 = arith.constant dense<0.000000e+00> : vector<2x128xf32>
    %68 = tpu.matmul %67, %61, %cst_21 {dimension_numbers = #tpu.dot_dimension_numbers<[1], [0], [0], [1], [0, 0, 1, 1], [], []>} : vector<2x32xbf16>, vector<32x128xbf16>, vector<2x128xf32> -> vector<2x128xf32>
    %69 = arith.addf %66, %68 : vector<2x128xf32>
    %70 = arith.negf %69 : vector<2x128xf32>
    %71 = math.exp %70 : vector<2x128xf32>
    %cst_22 = arith.constant 1.000000e+00 : f32
    %72 = vector.broadcast %cst_22 : f32 to vector<2x128xf32>
    %73 = arith.addf %72, %71 : vector<2x128xf32>
    %74 = arith.divf %72, %73 : vector<2x128xf32>
    %75 = math.tanh %69 : vector<2x128xf32>
    %76 = vector.extract_strided_slice %74 {offsets = [0, 0], sizes = [2, 32], strides = [1, 1]} : vector<2x128xf32> to vector<2x32xf32>
    %77 = vector.extract_strided_slice %74 {offsets = [0, 32], sizes = [2, 32], strides = [1, 1]} : vector<2x128xf32> to vector<2x32xf32>
    %78 = vector.extract_strided_slice %75 {offsets = [0, 64], sizes = [2, 32], strides = [1, 1]} : vector<2x128xf32> to vector<2x32xf32>
    %79 = vector.extract_strided_slice %74 {offsets = [0, 96], sizes = [2, 32], strides = [1, 1]} : vector<2x128xf32> to vector<2x32xf32>
    %80 = arith.mulf %77, %63 : vector<2x32xf32>
    %81 = arith.mulf %76, %78 : vector<2x32xf32>
    %82 = arith.addf %80, %81 : vector<2x32xf32>
    %83 = math.tanh %82 : vector<2x32xf32>
    %84 = arith.mulf %79, %83 : vector<2x32xf32>
    %85 = arith.index_cast %c0_i32_18 : i32 to index
    %c0_23 = arith.constant 0 : index
    %c0_24 = arith.constant 0 : index
    %86 = vector.load %arg20[%85, %c0_23, %c0_24] : memref<8x2x32xf32, #tpu.memory_space<vmem>>, vector<1x2x32xf32>
    %87 = vector.shape_cast %86 : vector<1x2x32xf32> to vector<2x32xf32>
    %88 = vector.shape_cast %84 : vector<2x32xf32> to vector<1x2x32xf32>
    tpu.vector_store %arg20[%85, %c0_23, %c0_24], %88 {strides = array<i32>} : memref<8x2x32xf32, #tpu.memory_space<vmem>>, vector<1x2x32xf32>,
    %c1_i32_25 = arith.constant 1 : i32
    %89 = arith.index_cast %c1_i32_25 : i32 to index
    %c0_26 = arith.constant 0 : index
    %c0_27 = arith.constant 0 : index
    %90 = vector.load %arg19[%89, %c0_26, %c0_27] : memref<8x2x128xf32, #tpu.memory_space<vmem>>, vector<1x2x128xf32>
    %91 = vector.shape_cast %90 : vector<1x2x128xf32> to vector<2x128xf32>
    %92 = arith.truncf %84 : vector<2x32xf32> to vector<2x32xbf16>
    %cst_28 = arith.constant dense<0.000000e+00> : vector<2x128xf32>
    %93 = tpu.matmul %92, %61, %cst_28 {dimension_numbers = #tpu.dot_dimension_numbers<[1], [0], [0], [1], [0, 0, 1, 1], [], []>} : vector<2x32xbf16>, vector<32x128xbf16>, vector<2x128xf32> -> vector<2x128xf32>
    %94 = arith.addf %91, %93 : vector<2x128xf32>
    %95 = arith.negf %94 : vector<2x128xf32>
    %96 = math.exp %95 : vector<2x128xf32>
    %cst_29 = arith.constant 1.000000e+00 : f32
    %97 = vector.broadcast %cst_29 : f32 to vector<2x128xf32>
    %98 = arith.addf %97, %96 : vector<2x128xf32>
    %99 = arith.divf %97, %98 : vector<2x128xf32>
    %100 = math.tanh %94 : vector<2x128xf32>
    %101 = vector.extract_strided_slice %99 {offsets = [0, 0], sizes = [2, 32], strides = [1, 1]} : vector<2x128xf32> to vector<2x32xf32>
    %102 = vector.extract_strided_slice %99 {offsets = [0, 32], sizes = [2, 32], strides = [1, 1]} : vector<2x128xf32> to vector<2x32xf32>
    %103 = vector.extract_strided_slice %100 {offsets = [0, 64], sizes = [2, 32], strides = [1, 1]} : vector<2x128xf32> to vector<2x32xf32>
    %104 = vector.extract_strided_slice %99 {offsets = [0, 96], sizes = [2, 32], strides = [1, 1]} : vector<2x128xf32> to vector<2x32xf32>
    %105 = arith.mulf %102, %82 : vector<2x32xf32>
    %106 = arith.mulf %101, %103 : vector<2x32xf32>
    %107 = arith.addf %105, %106 : vector<2x32xf32>
    %108 = math.tanh %107 : vector<2x32xf32>
    %109 = arith.mulf %104, %108 : vector<2x32xf32>
    %110 = arith.index_cast %c1_i32_25 : i32 to index
    %c0_30 = arith.constant 0 : index
    %c0_31 = arith.constant 0 : index
    %111 = vector.load %arg20[%110, %c0_30, %c0_31] : memref<8x2x32xf32, #tpu.memory_space<vmem>>, vector<1x2x32xf32>
    %112 = vector.shape_cast %111 : vector<1x2x32xf32> to vector<2x32xf32>
    %113 = vector.shape_cast %109 : vector<2x32xf32> to vector<1x2x32xf32>
    tpu.vector_store %arg20[%110, %c0_30, %c0_31], %113 {strides = array<i32>} : memref<8x2x32xf32, #tpu.memory_space<vmem>>, vector<1x2x32xf32>,
    %c2_i32 = arith.constant 2 : i32
    %114 = arith.index_cast %c2_i32 : i32 to index
    %c0_32 = arith.constant 0 : index
    %c0_33 = arith.constant 0 : index
    %115 = vector.load %arg19[%114, %c0_32, %c0_33] : memref<8x2x128xf32, #tpu.memory_space<vmem>>, vector<1x2x128xf32>
    %116 = vector.shape_cast %115 : vector<1x2x128xf32> to vector<2x128xf32>
    %117 = arith.truncf %109 : vector<2x32xf32> to vector<2x32xbf16>
    %cst_34 = arith.constant dense<0.000000e+00> : vector<2x128xf32>
    %118 = tpu.matmul %117, %61, %cst_34 {dimension_numbers = #tpu.dot_dimension_numbers<[1], [0], [0], [1], [0, 0, 1, 1], [], []>} : vector<2x32xbf16>, vector<32x128xbf16>, vector<2x128xf32> -> vector<2x128xf32>
    %119 = arith.addf %116, %118 : vector<2x128xf32>
    %120 = arith.negf %119 : vector<2x128xf32>
    %121 = math.exp %120 : vector<2x128xf32>
    %cst_35 = arith.constant 1.000000e+00 : f32
    %122 = vector.broadcast %cst_35 : f32 to vector<2x128xf32>
    %123 = arith.addf %122, %121 : vector<2x128xf32>
    %124 = arith.divf %122, %123 : vector<2x128xf32>
    %125 = math.tanh %119 : vector<2x128xf32>
    %126 = vector.extract_strided_slice %124 {offsets = [0, 0], sizes = [2, 32], strides = [1, 1]} : vector<2x128xf32> to vector<2x32xf32>
    %127 = vector.extract_strided_slice %124 {offsets = [0, 32], sizes = [2, 32], strides = [1, 1]} : vector<2x128xf32> to vector<2x32xf32>
    %128 = vector.extract_strided_slice %125 {offsets = [0, 64], sizes = [2, 32], strides = [1, 1]} : vector<2x128xf32> to vector<2x32xf32>
    %129 = vector.extract_strided_slice %124 {offsets = [0, 96], sizes = [2, 32], strides = [1, 1]} : vector<2x128xf32> to vector<2x32xf32>
    %130 = arith.mulf %127, %107 : vector<2x32xf32>
    %131 = arith.mulf %126, %128 : vector<2x32xf32>
    %132 = arith.addf %130, %131 : vector<2x32xf32>
    %133 = math.tanh %132 : vector<2x32xf32>
    %134 = arith.mulf %129, %133 : vector<2x32xf32>
    %135 = arith.index_cast %c2_i32 : i32 to index
    %c0_36 = arith.constant 0 : index
    %c0_37 = arith.constant 0 : index
    %136 = vector.load %arg20[%135, %c0_36, %c0_37] : memref<8x2x32xf32, #tpu.memory_space<vmem>>, vector<1x2x32xf32>
    %137 = vector.shape_cast %136 : vector<1x2x32xf32> to vector<2x32xf32>
    %138 = vector.shape_cast %134 : vector<2x32xf32> to vector<1x2x32xf32>
    tpu.vector_store %arg20[%135, %c0_36, %c0_37], %138 {strides = array<i32>} : memref<8x2x32xf32, #tpu.memory_space<vmem>>, vector<1x2x32xf32>,
    %c3_i32 = arith.constant 3 : i32
    %139 = arith.index_cast %c3_i32 : i32 to index
    %c0_38 = arith.constant 0 : index
    %c0_39 = arith.constant 0 : index
    %140 = vector.load %arg19[%139, %c0_38, %c0_39] : memref<8x2x128xf32, #tpu.memory_space<vmem>>, vector<1x2x128xf32>
    %141 = vector.shape_cast %140 : vector<1x2x128xf32> to vector<2x128xf32>
    %142 = arith.truncf %134 : vector<2x32xf32> to vector<2x32xbf16>
    %cst_40 = arith.constant dense<0.000000e+00> : vector<2x128xf32>
    %143 = tpu.matmul %142, %61, %cst_40 {dimension_numbers = #tpu.dot_dimension_numbers<[1], [0], [0], [1], [0, 0, 1, 1], [], []>} : vector<2x32xbf16>, vector<32x128xbf16>, vector<2x128xf32> -> vector<2x128xf32>
    %144 = arith.addf %141, %143 : vector<2x128xf32>
    %145 = arith.negf %144 : vector<2x128xf32>
    %146 = math.exp %145 : vector<2x128xf32>
    %cst_41 = arith.constant 1.000000e+00 : f32
    %147 = vector.broadcast %cst_41 : f32 to vector<2x128xf32>
    %148 = arith.addf %147, %146 : vector<2x128xf32>
    %149 = arith.divf %147, %148 : vector<2x128xf32>
    %150 = math.tanh %144 : vector<2x128xf32>
    %151 = vector.extract_strided_slice %149 {offsets = [0, 0], sizes = [2, 32], strides = [1, 1]} : vector<2x128xf32> to vector<2x32xf32>
    %152 = vector.extract_strided_slice %149 {offsets = [0, 32], sizes = [2, 32], strides = [1, 1]} : vector<2x128xf32> to vector<2x32xf32>
    %153 = vector.extract_strided_slice %150 {offsets = [0, 64], sizes = [2, 32], strides = [1, 1]} : vector<2x128xf32> to vector<2x32xf32>
    %154 = vector.extract_strided_slice %149 {offsets = [0, 96], sizes = [2, 32], strides = [1, 1]} : vector<2x128xf32> to vector<2x32xf32>
    %155 = arith.mulf %152, %132 : vector<2x32xf32>
    %156 = arith.mulf %151, %153 : vector<2x32xf32>
    %157 = arith.addf %155, %156 : vector<2x32xf32>
    %158 = math.tanh %157 : vector<2x32xf32>
    %159 = arith.mulf %154, %158 : vector<2x32xf32>
    %160 = arith.index_cast %c3_i32 : i32 to index
    %c0_42 = arith.constant 0 : index
    %c0_43 = arith.constant 0 : index
    %161 = vector.load %arg20[%160, %c0_42, %c0_43] : memref<8x2x32xf32, #tpu.memory_space<vmem>>, vector<1x2x32xf32>
    %162 = vector.shape_cast %161 : vector<1x2x32xf32> to vector<2x32xf32>
    %163 = vector.shape_cast %159 : vector<2x32xf32> to vector<1x2x32xf32>
    tpu.vector_store %arg20[%160, %c0_42, %c0_43], %163 {strides = array<i32>} : memref<8x2x32xf32, #tpu.memory_space<vmem>>, vector<1x2x32xf32>,
    %c4_i32 = arith.constant 4 : i32
    %164 = arith.index_cast %c4_i32 : i32 to index
    %c0_44 = arith.constant 0 : index
    %c0_45 = arith.constant 0 : index
    %165 = vector.load %arg19[%164, %c0_44, %c0_45] : memref<8x2x128xf32, #tpu.memory_space<vmem>>, vector<1x2x128xf32>
    %166 = vector.shape_cast %165 : vector<1x2x128xf32> to vector<2x128xf32>
    %167 = arith.truncf %159 : vector<2x32xf32> to vector<2x32xbf16>
    %cst_46 = arith.constant dense<0.000000e+00> : vector<2x128xf32>
    %168 = tpu.matmul %167, %61, %cst_46 {dimension_numbers = #tpu.dot_dimension_numbers<[1], [0], [0], [1], [0, 0, 1, 1], [], []>} : vector<2x32xbf16>, vector<32x128xbf16>, vector<2x128xf32> -> vector<2x128xf32>
    %169 = arith.addf %166, %168 : vector<2x128xf32>
    %170 = arith.negf %169 : vector<2x128xf32>
    %171 = math.exp %170 : vector<2x128xf32>
    %cst_47 = arith.constant 1.000000e+00 : f32
    %172 = vector.broadcast %cst_47 : f32 to vector<2x128xf32>
    %173 = arith.addf %172, %171 : vector<2x128xf32>
    %174 = arith.divf %172, %173 : vector<2x128xf32>
    %175 = math.tanh %169 : vector<2x128xf32>
    %176 = vector.extract_strided_slice %174 {offsets = [0, 0], sizes = [2, 32], strides = [1, 1]} : vector<2x128xf32> to vector<2x32xf32>
    %177 = vector.extract_strided_slice %174 {offsets = [0, 32], sizes = [2, 32], strides = [1, 1]} : vector<2x128xf32> to vector<2x32xf32>
    %178 = vector.extract_strided_slice %175 {offsets = [0, 64], sizes = [2, 32], strides = [1, 1]} : vector<2x128xf32> to vector<2x32xf32>
    %179 = vector.extract_strided_slice %174 {offsets = [0, 96], sizes = [2, 32], strides = [1, 1]} : vector<2x128xf32> to vector<2x32xf32>
    %180 = arith.mulf %177, %157 : vector<2x32xf32>
    %181 = arith.mulf %176, %178 : vector<2x32xf32>
    %182 = arith.addf %180, %181 : vector<2x32xf32>
    %183 = math.tanh %182 : vector<2x32xf32>
    %184 = arith.mulf %179, %183 : vector<2x32xf32>
    %185 = arith.index_cast %c4_i32 : i32 to index
    %c0_48 = arith.constant 0 : index
    %c0_49 = arith.constant 0 : index
    %186 = vector.load %arg20[%185, %c0_48, %c0_49] : memref<8x2x32xf32, #tpu.memory_space<vmem>>, vector<1x2x32xf32>
    %187 = vector.shape_cast %186 : vector<1x2x32xf32> to vector<2x32xf32>
    %188 = vector.shape_cast %184 : vector<2x32xf32> to vector<1x2x32xf32>
    tpu.vector_store %arg20[%185, %c0_48, %c0_49], %188 {strides = array<i32>} : memref<8x2x32xf32, #tpu.memory_space<vmem>>, vector<1x2x32xf32>,
    %c5_i32 = arith.constant 5 : i32
    %189 = arith.index_cast %c5_i32 : i32 to index
    %c0_50 = arith.constant 0 : index
    %c0_51 = arith.constant 0 : index
    %190 = vector.load %arg19[%189, %c0_50, %c0_51] : memref<8x2x128xf32, #tpu.memory_space<vmem>>, vector<1x2x128xf32>
    %191 = vector.shape_cast %190 : vector<1x2x128xf32> to vector<2x128xf32>
    %192 = arith.truncf %184 : vector<2x32xf32> to vector<2x32xbf16>
    %cst_52 = arith.constant dense<0.000000e+00> : vector<2x128xf32>
    %193 = tpu.matmul %192, %61, %cst_52 {dimension_numbers = #tpu.dot_dimension_numbers<[1], [0], [0], [1], [0, 0, 1, 1], [], []>} : vector<2x32xbf16>, vector<32x128xbf16>, vector<2x128xf32> -> vector<2x128xf32>
    %194 = arith.addf %191, %193 : vector<2x128xf32>
    %195 = arith.negf %194 : vector<2x128xf32>
    %196 = math.exp %195 : vector<2x128xf32>
    %cst_53 = arith.constant 1.000000e+00 : f32
    %197 = vector.broadcast %cst_53 : f32 to vector<2x128xf32>
    %198 = arith.addf %197, %196 : vector<2x128xf32>
    %199 = arith.divf %197, %198 : vector<2x128xf32>
    %200 = math.tanh %194 : vector<2x128xf32>
    %201 = vector.extract_strided_slice %199 {offsets = [0, 0], sizes = [2, 32], strides = [1, 1]} : vector<2x128xf32> to vector<2x32xf32>
    %202 = vector.extract_strided_slice %199 {offsets = [0, 32], sizes = [2, 32], strides = [1, 1]} : vector<2x128xf32> to vector<2x32xf32>
    %203 = vector.extract_strided_slice %200 {offsets = [0, 64], sizes = [2, 32], strides = [1, 1]} : vector<2x128xf32> to vector<2x32xf32>
    %204 = vector.extract_strided_slice %199 {offsets = [0, 96], sizes = [2, 32], strides = [1, 1]} : vector<2x128xf32> to vector<2x32xf32>
    %205 = arith.mulf %202, %182 : vector<2x32xf32>
    %206 = arith.mulf %201, %203 : vector<2x32xf32>
    %207 = arith.addf %205, %206 : vector<2x32xf32>
    %208 = math.tanh %207 : vector<2x32xf32>
    %209 = arith.mulf %204, %208 : vector<2x32xf32>
    %210 = arith.index_cast %c5_i32 : i32 to index
    %c0_54 = arith.constant 0 : index
    %c0_55 = arith.constant 0 : index
    %211 = vector.load %arg20[%210, %c0_54, %c0_55] : memref<8x2x32xf32, #tpu.memory_space<vmem>>, vector<1x2x32xf32>
    %212 = vector.shape_cast %211 : vector<1x2x32xf32> to vector<2x32xf32>
    %213 = vector.shape_cast %209 : vector<2x32xf32> to vector<1x2x32xf32>
    tpu.vector_store %arg20[%210, %c0_54, %c0_55], %213 {strides = array<i32>} : memref<8x2x32xf32, #tpu.memory_space<vmem>>, vector<1x2x32xf32>,
    %c6_i32 = arith.constant 6 : i32
    %214 = arith.index_cast %c6_i32 : i32 to index
    %c0_56 = arith.constant 0 : index
    %c0_57 = arith.constant 0 : index
    %215 = vector.load %arg19[%214, %c0_56, %c0_57] : memref<8x2x128xf32, #tpu.memory_space<vmem>>, vector<1x2x128xf32>
    %216 = vector.shape_cast %215 : vector<1x2x128xf32> to vector<2x128xf32>
    %217 = arith.truncf %209 : vector<2x32xf32> to vector<2x32xbf16>
    %cst_58 = arith.constant dense<0.000000e+00> : vector<2x128xf32>
    %218 = tpu.matmul %217, %61, %cst_58 {dimension_numbers = #tpu.dot_dimension_numbers<[1], [0], [0], [1], [0, 0, 1, 1], [], []>} : vector<2x32xbf16>, vector<32x128xbf16>, vector<2x128xf32> -> vector<2x128xf32>
    %219 = arith.addf %216, %218 : vector<2x128xf32>
    %220 = arith.negf %219 : vector<2x128xf32>
    %221 = math.exp %220 : vector<2x128xf32>
    %cst_59 = arith.constant 1.000000e+00 : f32
    %222 = vector.broadcast %cst_59 : f32 to vector<2x128xf32>
    %223 = arith.addf %222, %221 : vector<2x128xf32>
    %224 = arith.divf %222, %223 : vector<2x128xf32>
    %225 = math.tanh %219 : vector<2x128xf32>
    %226 = vector.extract_strided_slice %224 {offsets = [0, 0], sizes = [2, 32], strides = [1, 1]} : vector<2x128xf32> to vector<2x32xf32>
    %227 = vector.extract_strided_slice %224 {offsets = [0, 32], sizes = [2, 32], strides = [1, 1]} : vector<2x128xf32> to vector<2x32xf32>
    %228 = vector.extract_strided_slice %225 {offsets = [0, 64], sizes = [2, 32], strides = [1, 1]} : vector<2x128xf32> to vector<2x32xf32>
    %229 = vector.extract_strided_slice %224 {offsets = [0, 96], sizes = [2, 32], strides = [1, 1]} : vector<2x128xf32> to vector<2x32xf32>
    %230 = arith.mulf %227, %207 : vector<2x32xf32>
    %231 = arith.mulf %226, %228 : vector<2x32xf32>
    %232 = arith.addf %230, %231 : vector<2x32xf32>
    %233 = math.tanh %232 : vector<2x32xf32>
    %234 = arith.mulf %229, %233 : vector<2x32xf32>
    %235 = arith.index_cast %c6_i32 : i32 to index
    %c0_60 = arith.constant 0 : index
    %c0_61 = arith.constant 0 : index
    %236 = vector.load %arg20[%235, %c0_60, %c0_61] : memref<8x2x32xf32, #tpu.memory_space<vmem>>, vector<1x2x32xf32>
    %237 = vector.shape_cast %236 : vector<1x2x32xf32> to vector<2x32xf32>
    %238 = vector.shape_cast %234 : vector<2x32xf32> to vector<1x2x32xf32>
    tpu.vector_store %arg20[%235, %c0_60, %c0_61], %238 {strides = array<i32>} : memref<8x2x32xf32, #tpu.memory_space<vmem>>, vector<1x2x32xf32>,
    %c7_i32 = arith.constant 7 : i32
    %239 = arith.index_cast %c7_i32 : i32 to index
    %c0_62 = arith.constant 0 : index
    %c0_63 = arith.constant 0 : index
    %240 = vector.load %arg19[%239, %c0_62, %c0_63] : memref<8x2x128xf32, #tpu.memory_space<vmem>>, vector<1x2x128xf32>
    %241 = vector.shape_cast %240 : vector<1x2x128xf32> to vector<2x128xf32>
    %242 = arith.truncf %234 : vector<2x32xf32> to vector<2x32xbf16>
    %cst_64 = arith.constant dense<0.000000e+00> : vector<2x128xf32>
    %243 = tpu.matmul %242, %61, %cst_64 {dimension_numbers = #tpu.dot_dimension_numbers<[1], [0], [0], [1], [0, 0, 1, 1], [], []>} : vector<2x32xbf16>, vector<32x128xbf16>, vector<2x128xf32> -> vector<2x128xf32>
    %244 = arith.addf %241, %243 : vector<2x128xf32>
    %245 = arith.negf %244 : vector<2x128xf32>
    %246 = math.exp %245 : vector<2x128xf32>
    %cst_65 = arith.constant 1.000000e+00 : f32
    %247 = vector.broadcast %cst_65 : f32 to vector<2x128xf32>
    %248 = arith.addf %247, %246 : vector<2x128xf32>
    %249 = arith.divf %247, %248 : vector<2x128xf32>
    %250 = math.tanh %244 : vector<2x128xf32>
    %251 = vector.extract_strided_slice %249 {offsets = [0, 0], sizes = [2, 32], strides = [1, 1]} : vector<2x128xf32> to vector<2x32xf32>
    %252 = vector.extract_strided_slice %249 {offsets = [0, 32], sizes = [2, 32], strides = [1, 1]} : vector<2x128xf32> to vector<2x32xf32>
    %253 = vector.extract_strided_slice %250 {offsets = [0, 64], sizes = [2, 32], strides = [1, 1]} : vector<2x128xf32> to vector<2x32xf32>
    %254 = vector.extract_strided_slice %249 {offsets = [0, 96], sizes = [2, 32], strides = [1, 1]} : vector<2x128xf32> to vector<2x32xf32>
    %255 = arith.mulf %252, %232 : vector<2x32xf32>
    %256 = arith.mulf %251, %253 : vector<2x32xf32>
    %257 = arith.addf %255, %256 : vector<2x32xf32>
    %258 = math.tanh %257 : vector<2x32xf32>
    %259 = arith.mulf %254, %258 : vector<2x32xf32>
    %260 = arith.index_cast %c7_i32 : i32 to index
    %c0_66 = arith.constant 0 : index
    %c0_67 = arith.constant 0 : index
    %261 = vector.load %arg20[%260, %c0_66, %c0_67] : memref<8x2x32xf32, #tpu.memory_space<vmem>>, vector<1x2x32xf32>
    %262 = vector.shape_cast %261 : vector<1x2x32xf32> to vector<2x32xf32>
    %263 = vector.shape_cast %259 : vector<2x32xf32> to vector<1x2x32xf32>
    tpu.vector_store %arg20[%260, %c0_66, %c0_67], %263 {strides = array<i32>} : memref<8x2x32xf32, #tpu.memory_space<vmem>>, vector<1x2x32xf32>,
    %c8_i32 = arith.constant 8 : i32
    %c0_68 = arith.constant 0 : index
    %c0_69 = arith.constant 0 : index
    %c0_70 = arith.constant 0 : index
    %264 = vector.load %arg20[%c0_68, %c0_69, %c0_70] : memref<8x2x32xf32, #tpu.memory_space<vmem>>, vector<8x2x32xf32>
    %265 = tpu.iota {dimensions = array<i32: 2>} : vector<8x2x32xi32>
    %c16_i32_71 = arith.constant 16 : i32
    %266 = vector.broadcast %c16_i32_71 : i32 to vector<8x2x32xi32>
    %267 = arith.cmpi slt, %265, %266 : vector<8x2x32xi32>
    %268 = vector.extract_strided_slice %264 {offsets = [7, 0, 0], sizes = [1, 2, 32], strides = [1, 1, 1]} : vector<8x2x32xf32> to vector<1x2x32xf32>
    %269 = vector.shape_cast %268 : vector<1x2x32xf32> to vector<2x32xf32>
    %270 = vector.shape_cast %269 : vector<2x32xf32> to vector<1x2x32xf32>
    %271 = vector.extract_strided_slice %264 {offsets = [6, 0, 0], sizes = [1, 2, 32], strides = [1, 1, 1]} : vector<8x2x32xf32> to vector<1x2x32xf32>
    %272 = vector.shape_cast %271 : vector<1x2x32xf32> to vector<2x32xf32>
    %273 = vector.shape_cast %272 : vector<2x32xf32> to vector<1x2x32xf32>
    %274 = vector.extract_strided_slice %264 {offsets = [5, 0, 0], sizes = [1, 2, 32], strides = [1, 1, 1]} : vector<8x2x32xf32> to vector<1x2x32xf32>
    %275 = vector.shape_cast %274 : vector<1x2x32xf32> to vector<2x32xf32>
    %276 = vector.shape_cast %275 : vector<2x32xf32> to vector<1x2x32xf32>
    %277 = vector.extract_strided_slice %264 {offsets = [4, 0, 0], sizes = [1, 2, 32], strides = [1, 1, 1]} : vector<8x2x32xf32> to vector<1x2x32xf32>
    %278 = vector.shape_cast %277 : vector<1x2x32xf32> to vector<2x32xf32>
    %279 = vector.shape_cast %278 : vector<2x32xf32> to vector<1x2x32xf32>
    %280 = vector.extract_strided_slice %264 {offsets = [3, 0, 0], sizes = [1, 2, 32], strides = [1, 1, 1]} : vector<8x2x32xf32> to vector<1x2x32xf32>
    %281 = vector.shape_cast %280 : vector<1x2x32xf32> to vector<2x32xf32>
    %282 = vector.shape_cast %281 : vector<2x32xf32> to vector<1x2x32xf32>
    %283 = vector.extract_strided_slice %264 {offsets = [2, 0, 0], sizes = [1, 2, 32], strides = [1, 1, 1]} : vector<8x2x32xf32> to vector<1x2x32xf32>
    %284 = vector.shape_cast %283 : vector<1x2x32xf32> to vector<2x32xf32>
    %285 = vector.shape_cast %284 : vector<2x32xf32> to vector<1x2x32xf32>
    %286 = vector.extract_strided_slice %264 {offsets = [1, 0, 0], sizes = [1, 2, 32], strides = [1, 1, 1]} : vector<8x2x32xf32> to vector<1x2x32xf32>
    %287 = vector.shape_cast %286 : vector<1x2x32xf32> to vector<2x32xf32>
    %288 = vector.shape_cast %287 : vector<2x32xf32> to vector<1x2x32xf32>
    %289 = vector.extract_strided_slice %264 {offsets = [0, 0, 0], sizes = [1, 2, 32], strides = [1, 1, 1]} : vector<8x2x32xf32> to vector<1x2x32xf32>
    %290 = vector.shape_cast %289 : vector<1x2x32xf32> to vector<2x32xf32>
    %291 = vector.shape_cast %290 : vector<2x32xf32> to vector<1x2x32xf32>
    %292 = tpu.concatenate %270, %273, %276, %279, %282, %285, %288, %291 in 0 : vector<1x2x32xf32>, vector<1x2x32xf32>, vector<1x2x32xf32>, vector<1x2x32xf32>, vector<1x2x32xf32>, vector<1x2x32xf32>, vector<1x2x32xf32>, vector<1x2x32xf32> -> vector<8x2x32xf32>
    %293 = arith.select %267, %264, %292 : vector<8x2x32xi1>, vector<8x2x32xf32>
    %294 = arith.truncf %293 : vector<8x2x32xf32> to vector<8x2x32xbf16>
    %295 = vector.shape_cast %294 : vector<8x2x32xbf16> to vector<16x32xbf16>
    %c0_72 = arith.constant 0 : index
    %c0_73 = arith.constant 0 : index
    %296 = vector.load %arg5[%c0_72, %c0_73] : memref<32x16xbf16, #tpu.memory_space<vmem>>, vector<32x16xbf16>
    %cst_74 = arith.constant dense<0.000000e+00> : vector<16x16xf32>
    %297 = tpu.matmul %295, %296, %cst_74 {dimension_numbers = #tpu.dot_dimension_numbers<[1], [0], [0], [1], [0, 0, 1, 1], [], []>} : vector<16x32xbf16>, vector<32x16xbf16>, vector<16x16xf32> -> vector<16x16xf32>
    %c0_75 = arith.constant 0 : index
    %c0_76 = arith.constant 0 : index
    %298 = vector.load %arg6[%c0_75, %c0_76] : memref<1x16xf32, #tpu.memory_space<vmem>>, vector<1x16xf32>
    %299 = vector.broadcast %298 : vector<1x16xf32> to vector<16x16xf32>
    %300 = arith.addf %297, %299 : vector<16x16xf32>
    %301 = math.tanh %300 : vector<16x16xf32>
    %c0_77 = arith.constant 0 : index
    %c0_78 = arith.constant 0 : index
    %302 = vector.load %arg7[%c0_77, %c0_78] : memref<1x16xf32, #tpu.memory_space<vmem>>, vector<1x16xf32>
    %303 = vector.broadcast %302 : vector<1x16xf32> to vector<16x16xf32>
    %304 = arith.mulf %301, %303 : vector<16x16xf32>
    %cst_79 = arith.constant dense<0.000000e+00> : vector<16xf32>
    %305 = vector.multi_reduction <add>, %304, %cst_79 [1] : vector<16x16xf32> to vector<16xf32>
    %306 = vector.shape_cast %305 : vector<16xf32> to vector<16x1xf32>
    %c0_80 = arith.constant 0 : index
    %c0_81 = arith.constant 0 : index
    %307 = vector.load %arg8[%c0_80, %c0_81] : memref<1x1xf32, #tpu.memory_space<vmem>>, vector<1x1xf32>
    %308 = vector.broadcast %307 : vector<1x1xf32> to vector<16x1xf32>
    %309 = arith.addf %306, %308 : vector<16x1xf32>
    %310 = vector.shape_cast %309 : vector<16x1xf32> to vector<8x2x1xf32>
    %cst_82 = arith.constant dense<0xFF800000> : vector<2x1xf32>
    %311 = vector.multi_reduction <maximumf>, %310, %cst_82 [0] : vector<8x2x1xf32> to vector<2x1xf32>
    %312 = vector.shape_cast %311 : vector<2x1xf32> to vector<1x2x1xf32>
    %313 = vector.broadcast %312 : vector<1x2x1xf32> to vector<8x2x1xf32>
    %314 = arith.subf %310, %313 : vector<8x2x1xf32>
    %315 = math.exp %314 : vector<8x2x1xf32>
    %cst_83 = arith.constant dense<0.000000e+00> : vector<2x1xf32>
    %316 = vector.multi_reduction <add>, %315, %cst_83 [0] : vector<8x2x1xf32> to vector<2x1xf32>
    %317 = vector.shape_cast %316 : vector<2x1xf32> to vector<1x2x1xf32>
    %318 = vector.broadcast %317 : vector<1x2x1xf32> to vector<8x2x1xf32>
    %319 = arith.divf %315, %318 : vector<8x2x1xf32>
    %320 = vector.broadcast %319 : vector<8x2x1xf32> to vector<8x2x32xf32>
    %321 = arith.mulf %293, %320 : vector<8x2x32xf32>
    %cst_84 = arith.constant dense<0.000000e+00> : vector<2x32xf32>
    %322 = vector.multi_reduction <add>, %321, %cst_84 [0] : vector<8x2x32xf32> to vector<2x32xf32>
    %c0_85 = arith.constant 0 : index
    %c0_86 = arith.constant 0 : index
    %323 = vector.load %arg10[%c0_85, %c0_86] : memref<1x64xf32, #tpu.memory_space<vmem>>, vector<1x64xf32>
    %cst_87 = arith.constant 0.000000e+00 : bf16
    %324 = vector.broadcast %cst_87 : bf16 to vector<2x32xbf16>
    %c0_88 = arith.constant 0 : index
    %c0_89 = arith.constant 0 : index
    %c0_90 = arith.constant 0 : index
    %325 = vector.load %arg21[%c0_88, %c0_89, %c0_90] : memref<10x2x32xbf16, #tpu.memory_space<vmem>>, vector<1x2x32xbf16>
    %326 = vector.shape_cast %325 : vector<1x2x32xbf16> to vector<2x32xbf16>
    %327 = vector.shape_cast %324 : vector<2x32xbf16> to vector<1x2x32xbf16>
    tpu.vector_store %arg21[%c0_88, %c0_89, %c0_90], %327 {strides = array<i32>} : memref<10x2x32xbf16, #tpu.memory_space<vmem>>, vector<1x2x32xbf16>,
    %cst_91 = arith.constant 0.000000e+00 : bf16
    %328 = vector.broadcast %cst_91 : bf16 to vector<2x32xbf16>
    %c9 = arith.constant 9 : index
    %c0_92 = arith.constant 0 : index
    %c0_93 = arith.constant 0 : index
    %329 = vector.load %arg21[%c9, %c0_92, %c0_93] : memref<10x2x32xbf16, #tpu.memory_space<vmem>>, vector<1x2x32xbf16>
    %330 = vector.shape_cast %329 : vector<1x2x32xbf16> to vector<2x32xbf16>
    %331 = vector.shape_cast %328 : vector<2x32xbf16> to vector<1x2x32xbf16>
    tpu.vector_store %arg21[%c9, %c0_92, %c0_93], %331 {strides = array<i32>} : memref<10x2x32xbf16, #tpu.memory_space<vmem>>, vector<1x2x32xbf16>,
    %c1 = arith.constant 1 : index
    %c0_94 = arith.constant 0 : index
    %c0_95 = arith.constant 0 : index
    %332 = vector.load %arg21[%c1, %c0_94, %c0_95] : memref<10x2x32xbf16, #tpu.memory_space<vmem>>, vector<8x2x32xbf16>
    tpu.vector_store %arg21[%c1, %c0_94, %c0_95], %294 {strides = array<i32>} : memref<10x2x32xbf16, #tpu.memory_space<vmem>>, vector<8x2x32xbf16>,
    %c0_96 = arith.constant 0 : index
    %c0_97 = arith.constant 0 : index
    %c0_98 = arith.constant 0 : index
    %333 = vector.load %arg21[%c0_96, %c0_97, %c0_98] : memref<10x2x32xbf16, #tpu.memory_space<vmem>>, vector<8x2x32xbf16>
    %334 = vector.shape_cast %333 : vector<8x2x32xbf16> to vector<16x32xbf16>
    %c0_99 = arith.constant 0 : index
    %c0_100 = arith.constant 0 : index
    %c0_101 = arith.constant 0 : index
    %335 = vector.load %arg9[%c0_99, %c0_100, %c0_101] : memref<3x32x64xbf16, #tpu.memory_space<vmem>>, vector<1x32x64xbf16>
    %336 = vector.shape_cast %335 : vector<1x32x64xbf16> to vector<32x64xbf16>
    %cst_102 = arith.constant dense<0.000000e+00> : vector<16x64xf32>
    %337 = tpu.matmul %334, %336, %cst_102 {dimension_numbers = #tpu.dot_dimension_numbers<[1], [0], [0], [1], [0, 0, 1, 1], [], []>} : vector<16x32xbf16>, vector<32x64xbf16>, vector<16x64xf32> -> vector<16x64xf32>
    %338 = vector.broadcast %323 : vector<1x64xf32> to vector<16x64xf32>
    %339 = arith.addf %338, %337 : vector<16x64xf32>
    %c1_103 = arith.constant 1 : index
    %c0_104 = arith.constant 0 : index
    %c0_105 = arith.constant 0 : index
    %340 = vector.load %arg21[%c1_103, %c0_104, %c0_105] : memref<10x2x32xbf16, #tpu.memory_space<vmem>>, vector<8x2x32xbf16>
    %341 = vector.shape_cast %340 : vector<8x2x32xbf16> to vector<16x32xbf16>
    %c1_106 = arith.constant 1 : index
    %c0_107 = arith.constant 0 : index
    %c0_108 = arith.constant 0 : index
    %342 = vector.load %arg9[%c1_106, %c0_107, %c0_108] : memref<3x32x64xbf16, #tpu.memory_space<vmem>>, vector<1x32x64xbf16>
    %343 = vector.shape_cast %342 : vector<1x32x64xbf16> to vector<32x64xbf16>
    %cst_109 = arith.constant dense<0.000000e+00> : vector<16x64xf32>
    %344 = tpu.matmul %341, %343, %cst_109 {dimension_numbers = #tpu.dot_dimension_numbers<[1], [0], [0], [1], [0, 0, 1, 1], [], []>} : vector<16x32xbf16>, vector<32x64xbf16>, vector<16x64xf32> -> vector<16x64xf32>
    %345 = arith.addf %339, %344 : vector<16x64xf32>
    %c2 = arith.constant 2 : index
    %c0_110 = arith.constant 0 : index
    %c0_111 = arith.constant 0 : index
    %346 = vector.load %arg21[%c2, %c0_110, %c0_111] : memref<10x2x32xbf16, #tpu.memory_space<vmem>>, vector<8x2x32xbf16>
    %347 = vector.shape_cast %346 : vector<8x2x32xbf16> to vector<16x32xbf16>
    %c2_112 = arith.constant 2 : index
    %c0_113 = arith.constant 0 : index
    %c0_114 = arith.constant 0 : index
    %348 = vector.load %arg9[%c2_112, %c0_113, %c0_114] : memref<3x32x64xbf16, #tpu.memory_space<vmem>>, vector<1x32x64xbf16>
    %349 = vector.shape_cast %348 : vector<1x32x64xbf16> to vector<32x64xbf16>
    %cst_115 = arith.constant dense<0.000000e+00> : vector<16x64xf32>
    %350 = tpu.matmul %347, %349, %cst_115 {dimension_numbers = #tpu.dot_dimension_numbers<[1], [0], [0], [1], [0, 0, 1, 1], [], []>} : vector<16x32xbf16>, vector<32x64xbf16>, vector<16x64xf32> -> vector<16x64xf32>
    %351 = arith.addf %345, %350 : vector<16x64xf32>
    %cst_116 = arith.constant 0.000000e+00 : f32
    %352 = vector.broadcast %cst_116 : f32 to vector<16x64xf32>
    %353 = arith.maximumf %351, %352 : vector<16x64xf32>
    %354 = vector.shape_cast %353 : vector<16x64xf32> to vector<8x2x64xf32>
    %355 = vector.shape_cast %354 : vector<8x2x64xf32> to vector<4x2x2x64xf32>
    %356 = vector.extract_strided_slice %355 {offsets = [0, 0, 0, 0], sizes = [4, 1, 2, 64], strides = [1, 1, 1, 1]} : vector<4x2x2x64xf32> to vector<4x1x2x64xf32>
    %357 = vector.shape_cast %356 : vector<4x1x2x64xf32> to vector<4x2x64xf32>
    %358 = vector.extract_strided_slice %355 {offsets = [0, 1, 0, 0], sizes = [4, 1, 2, 64], strides = [1, 1, 1, 1]} : vector<4x2x2x64xf32> to vector<4x1x2x64xf32>
    %359 = vector.shape_cast %358 : vector<4x1x2x64xf32> to vector<4x2x64xf32>
    %360 = arith.maximumf %357, %359 : vector<4x2x64xf32>
    %361 = arith.truncf %360 : vector<4x2x64xf32> to vector<4x2x64xbf16>
    %c0_117 = arith.constant 0 : index
    %c0_118 = arith.constant 0 : index
    %362 = vector.load %arg12[%c0_117, %c0_118] : memref<1x128xf32, #tpu.memory_space<vmem>>, vector<1x128xf32>
    %cst_119 = arith.constant 0.000000e+00 : bf16
    %363 = vector.broadcast %cst_119 : bf16 to vector<2x64xbf16>
    %c0_120 = arith.constant 0 : index
    %c0_121 = arith.constant 0 : index
    %c0_122 = arith.constant 0 : index
    %364 = vector.load %arg22[%c0_120, %c0_121, %c0_122] : memref<6x2x64xbf16, #tpu.memory_space<vmem>>, vector<1x2x64xbf16>
    %365 = vector.shape_cast %364 : vector<1x2x64xbf16> to vector<2x64xbf16>
    %366 = vector.shape_cast %363 : vector<2x64xbf16> to vector<1x2x64xbf16>
    tpu.vector_store %arg22[%c0_120, %c0_121, %c0_122], %366 {strides = array<i32>} : memref<6x2x64xbf16, #tpu.memory_space<vmem>>, vector<1x2x64xbf16>,
    %cst_123 = arith.constant 0.000000e+00 : bf16
    %367 = vector.broadcast %cst_123 : bf16 to vector<2x64xbf16>
    %c5 = arith.constant 5 : index
    %c0_124 = arith.constant 0 : index
    %c0_125 = arith.constant 0 : index
    %368 = vector.load %arg22[%c5, %c0_124, %c0_125] : memref<6x2x64xbf16, #tpu.memory_space<vmem>>, vector<1x2x64xbf16>
    %369 = vector.shape_cast %368 : vector<1x2x64xbf16> to vector<2x64xbf16>
    %370 = vector.shape_cast %367 : vector<2x64xbf16> to vector<1x2x64xbf16>
    tpu.vector_store %arg22[%c5, %c0_124, %c0_125], %370 {strides = array<i32>} : memref<6x2x64xbf16, #tpu.memory_space<vmem>>, vector<1x2x64xbf16>,
    %c1_126 = arith.constant 1 : index
    %c0_127 = arith.constant 0 : index
    %c0_128 = arith.constant 0 : index
    %371 = vector.load %arg22[%c1_126, %c0_127, %c0_128] : memref<6x2x64xbf16, #tpu.memory_space<vmem>>, vector<4x2x64xbf16>
    tpu.vector_store %arg22[%c1_126, %c0_127, %c0_128], %361 {strides = array<i32>} : memref<6x2x64xbf16, #tpu.memory_space<vmem>>, vector<4x2x64xbf16>,
    %c0_129 = arith.constant 0 : index
    %c0_130 = arith.constant 0 : index
    %c0_131 = arith.constant 0 : index
    %372 = vector.load %arg22[%c0_129, %c0_130, %c0_131] : memref<6x2x64xbf16, #tpu.memory_space<vmem>>, vector<4x2x64xbf16>
    %373 = vector.shape_cast %372 : vector<4x2x64xbf16> to vector<8x64xbf16>
    %c0_132 = arith.constant 0 : index
    %c0_133 = arith.constant 0 : index
    %c0_134 = arith.constant 0 : index
    %374 = vector.load %arg11[%c0_132, %c0_133, %c0_134] : memref<3x64x128xbf16, #tpu.memory_space<vmem>>, vector<1x64x128xbf16>
    %375 = vector.shape_cast %374 : vector<1x64x128xbf16> to vector<64x128xbf16>
    %cst_135 = arith.constant dense<0.000000e+00> : vector<8x128xf32>
    %376 = tpu.matmul %373, %375, %cst_135 {dimension_numbers = #tpu.dot_dimension_numbers<[1], [0], [0], [1], [0, 0, 1, 1], [], []>} : vector<8x64xbf16>, vector<64x128xbf16>, vector<8x128xf32> -> vector<8x128xf32>
    %377 = vector.broadcast %362 : vector<1x128xf32> to vector<8x128xf32>
    %378 = arith.addf %377, %376 : vector<8x128xf32>
    %c1_136 = arith.constant 1 : index
    %c0_137 = arith.constant 0 : index
    %c0_138 = arith.constant 0 : index
    %379 = vector.load %arg22[%c1_136, %c0_137, %c0_138] : memref<6x2x64xbf16, #tpu.memory_space<vmem>>, vector<4x2x64xbf16>
    %380 = vector.shape_cast %379 : vector<4x2x64xbf16> to vector<8x64xbf16>
    %c1_139 = arith.constant 1 : index
    %c0_140 = arith.constant 0 : index
    %c0_141 = arith.constant 0 : index
    %381 = vector.load %arg11[%c1_139, %c0_140, %c0_141] : memref<3x64x128xbf16, #tpu.memory_space<vmem>>, vector<1x64x128xbf16>
    %382 = vector.shape_cast %381 : vector<1x64x128xbf16> to vector<64x128xbf16>
    %cst_142 = arith.constant dense<0.000000e+00> : vector<8x128xf32>
    %383 = tpu.matmul %380, %382, %cst_142 {dimension_numbers = #tpu.dot_dimension_numbers<[1], [0], [0], [1], [0, 0, 1, 1], [], []>} : vector<8x64xbf16>, vector<64x128xbf16>, vector<8x128xf32> -> vector<8x128xf32>
    %384 = arith.addf %378, %383 : vector<8x128xf32>
    %c2_143 = arith.constant 2 : index
    %c0_144 = arith.constant 0 : index
    %c0_145 = arith.constant 0 : index
    %385 = vector.load %arg22[%c2_143, %c0_144, %c0_145] : memref<6x2x64xbf16, #tpu.memory_space<vmem>>, vector<4x2x64xbf16>
    %386 = vector.shape_cast %385 : vector<4x2x64xbf16> to vector<8x64xbf16>
    %c2_146 = arith.constant 2 : index
    %c0_147 = arith.constant 0 : index
    %c0_148 = arith.constant 0 : index
    %387 = vector.load %arg11[%c2_146, %c0_147, %c0_148] : memref<3x64x128xbf16, #tpu.memory_space<vmem>>, vector<1x64x128xbf16>
    %388 = vector.shape_cast %387 : vector<1x64x128xbf16> to vector<64x128xbf16>
    %cst_149 = arith.constant dense<0.000000e+00> : vector<8x128xf32>
    %389 = tpu.matmul %386, %388, %cst_149 {dimension_numbers = #tpu.dot_dimension_numbers<[1], [0], [0], [1], [0, 0, 1, 1], [], []>} : vector<8x64xbf16>, vector<64x128xbf16>, vector<8x128xf32> -> vector<8x128xf32>
    %390 = arith.addf %384, %389 : vector<8x128xf32>
    %cst_150 = arith.constant 0.000000e+00 : f32
    %391 = vector.broadcast %cst_150 : f32 to vector<8x128xf32>
    %392 = arith.maximumf %390, %391 : vector<8x128xf32>
    %393 = vector.shape_cast %392 : vector<8x128xf32> to vector<4x2x128xf32>
    %394 = vector.shape_cast %393 : vector<4x2x128xf32> to vector<2x2x2x128xf32>
    %395 = vector.extract_strided_slice %394 {offsets = [0, 0, 0, 0], sizes = [2, 1, 2, 128], strides = [1, 1, 1, 1]} : vector<2x2x2x128xf32> to vector<2x1x2x128xf32>
    %396 = vector.shape_cast %395 : vector<2x1x2x128xf32> to vector<2x2x128xf32>
    %397 = vector.extract_strided_slice %394 {offsets = [0, 1, 0, 0], sizes = [2, 1, 2, 128], strides = [1, 1, 1, 1]} : vector<2x2x2x128xf32> to vector<2x1x2x128xf32>
    %398 = vector.shape_cast %397 : vector<2x1x2x128xf32> to vector<2x2x128xf32>
    %399 = arith.maximumf %396, %398 : vector<2x2x128xf32>
    %400 = arith.truncf %399 : vector<2x2x128xf32> to vector<2x2x128xbf16>
    %c0_151 = arith.constant 0 : index
    %c0_152 = arith.constant 0 : index
    %401 = vector.load %arg15[%c0_151, %c0_152] : memref<1x128xf32, #tpu.memory_space<vmem>>, vector<1x128xf32>
    %402 = vector.extract_strided_slice %400 {offsets = [0, 0, 0], sizes = [1, 2, 128], strides = [1, 1, 1]} : vector<2x2x128xbf16> to vector<1x2x128xbf16>
    %403 = vector.shape_cast %402 : vector<1x2x128xbf16> to vector<2x128xbf16>
    %c0_153 = arith.constant 0 : index
    %c0_154 = arith.constant 0 : index
    %c0_155 = arith.constant 0 : index
    %404 = vector.load %arg13[%c0_153, %c0_154, %c0_155] : memref<2x128x128xbf16, #tpu.memory_space<vmem>>, vector<1x128x128xbf16>
    %405 = vector.shape_cast %404 : vector<1x128x128xbf16> to vector<128x128xbf16>
    %cst_156 = arith.constant dense<0.000000e+00> : vector<2x128xf32>
    %406 = tpu.matmul %403, %405, %cst_156 {dimension_numbers = #tpu.dot_dimension_numbers<[1], [0], [0], [1], [0, 0, 1, 1], [], []>} : vector<2x128xbf16>, vector<128x128xbf16>, vector<2x128xf32> -> vector<2x128xf32>
    %407 = vector.broadcast %401 : vector<1x128xf32> to vector<2x128xf32>
    %408 = arith.addf %407, %406 : vector<2x128xf32>
    %409 = vector.extract_strided_slice %400 {offsets = [1, 0, 0], sizes = [1, 2, 128], strides = [1, 1, 1]} : vector<2x2x128xbf16> to vector<1x2x128xbf16>
    %410 = vector.shape_cast %409 : vector<1x2x128xbf16> to vector<2x128xbf16>
    %c1_157 = arith.constant 1 : index
    %c0_158 = arith.constant 0 : index
    %c0_159 = arith.constant 0 : index
    %411 = vector.load %arg13[%c1_157, %c0_158, %c0_159] : memref<2x128x128xbf16, #tpu.memory_space<vmem>>, vector<1x128x128xbf16>
    %412 = vector.shape_cast %411 : vector<1x128x128xbf16> to vector<128x128xbf16>
    %cst_160 = arith.constant dense<0.000000e+00> : vector<2x128xf32>
    %413 = tpu.matmul %410, %412, %cst_160 {dimension_numbers = #tpu.dot_dimension_numbers<[1], [0], [0], [1], [0, 0, 1, 1], [], []>} : vector<2x128xbf16>, vector<128x128xbf16>, vector<2x128xf32> -> vector<2x128xf32>
    %414 = arith.addf %408, %413 : vector<2x128xf32>
    %415 = arith.truncf %322 : vector<2x32xf32> to vector<2x32xbf16>
    %c0_161 = arith.constant 0 : index
    %c0_162 = arith.constant 0 : index
    %416 = vector.load %arg14[%c0_161, %c0_162] : memref<32x128xbf16, #tpu.memory_space<vmem>>, vector<32x128xbf16>
    %cst_163 = arith.constant dense<0.000000e+00> : vector<2x128xf32>
    %417 = tpu.matmul %415, %416, %cst_163 {dimension_numbers = #tpu.dot_dimension_numbers<[1], [0], [0], [1], [0, 0, 1, 1], [], []>} : vector<2x32xbf16>, vector<32x128xbf16>, vector<2x128xf32> -> vector<2x128xf32>
    %418 = arith.addf %414, %417 : vector<2x128xf32>
    %cst_164 = arith.constant 0.000000e+00 : f32
    %419 = vector.broadcast %cst_164 : f32 to vector<2x128xf32>
    %420 = arith.maximumf %418, %419 : vector<2x128xf32>
    %421 = arith.truncf %420 : vector<2x128xf32> to vector<2x128xbf16>
    %c0_165 = arith.constant 0 : index
    %c0_166 = arith.constant 0 : index
    %422 = vector.load %arg16[%c0_165, %c0_166] : memref<128x5xbf16, #tpu.memory_space<vmem>>, vector<128x5xbf16>
    %cst_167 = arith.constant dense<0.000000e+00> : vector<2x5xf32>
    %423 = tpu.matmul %421, %422, %cst_167 {dimension_numbers = #tpu.dot_dimension_numbers<[1], [0], [0], [1], [0, 0, 1, 1], [], []>} : vector<2x128xbf16>, vector<128x5xbf16>, vector<2x5xf32> -> vector<2x5xf32>
    %c0_168 = arith.constant 0 : index
    %c0_169 = arith.constant 0 : index
    %424 = vector.load %arg17[%c0_168, %c0_169] : memref<1x5xf32, #tpu.memory_space<vmem>>, vector<1x5xf32>
    %425 = vector.broadcast %424 : vector<1x5xf32> to vector<2x5xf32>
    %426 = arith.addf %423, %425 : vector<2x5xf32>
    %cst_170 = arith.constant dense<0xFF800000> : vector<2xf32>
    %427 = vector.multi_reduction <maximumf>, %426, %cst_170 [1] : vector<2x5xf32> to vector<2xf32>
    %428 = vector.shape_cast %427 : vector<2xf32> to vector<2x1xf32>
    %429 = vector.broadcast %428 : vector<2x1xf32> to vector<2x5xf32>
    %430 = arith.subf %426, %429 : vector<2x5xf32>
    %431 = math.exp %430 : vector<2x5xf32>
    %cst_171 = arith.constant dense<0.000000e+00> : vector<2xf32>
    %432 = vector.multi_reduction <add>, %431, %cst_171 [1] : vector<2x5xf32> to vector<2xf32>
    %433 = vector.shape_cast %432 : vector<2xf32> to vector<2x1xf32>
    %434 = vector.broadcast %433 : vector<2x1xf32> to vector<2x5xf32>
    %435 = arith.divf %431, %434 : vector<2x5xf32>
    %c0_172 = arith.constant 0 : index
    %c0_173 = arith.constant 0 : index
    %436 = vector.load %arg18[%c0_172, %c0_173] : memref<2x5xf32, #tpu.memory_space<vmem>>, vector<2x5xf32>
    tpu.vector_store %arg18[%c0_172, %c0_173], %435 {strides = array<i32>} : memref<2x5xf32, #tpu.memory_space<vmem>>, vector<2x5xf32>,
    return
  }
  func.func @transform_0(%arg0: i32) -> (i32, i32, i32) {
    %c0_i32 = arith.constant 0 : i32
    %c0_i32_0 = arith.constant 0 : i32
    %c0_i32_1 = arith.constant 0 : i32
    return %c0_i32, %arg0, %c0_i32_0 : i32, i32, i32
  }
  func.func @transform_1(%arg0: i32) -> (i32, i32) {
    %c0_i32 = arith.constant 0 : i32
    %c0_i32_0 = arith.constant 0 : i32
    %c0_i32_1 = arith.constant 0 : i32
    return %c0_i32, %c0_i32_0 : i32, i32
  }
  func.func @transform_2(%arg0: i32) -> (i32, i32) {
    %c0_i32 = arith.constant 0 : i32
    %c0_i32_0 = arith.constant 0 : i32
    %c0_i32_1 = arith.constant 0 : i32
    return %c0_i32, %c0_i32_0 : i32, i32
  }
  func.func @transform_3(%arg0: i32) -> (i32, i32) {
    %c0_i32 = arith.constant 0 : i32
    %c0_i32_0 = arith.constant 0 : i32
    %c0_i32_1 = arith.constant 0 : i32
    return %c0_i32, %c0_i32_0 : i32, i32
  }
  func.func @transform_4(%arg0: i32) -> (i32, i32) {
    %c0_i32 = arith.constant 0 : i32
    %c0_i32_0 = arith.constant 0 : i32
    %c0_i32_1 = arith.constant 0 : i32
    return %c0_i32, %c0_i32_0 : i32, i32
  }
  func.func @transform_5(%arg0: i32) -> (i32, i32) {
    %c0_i32 = arith.constant 0 : i32
    %c0_i32_0 = arith.constant 0 : i32
    %c0_i32_1 = arith.constant 0 : i32
    return %c0_i32, %c0_i32_0 : i32, i32
  }
  func.func @transform_6(%arg0: i32) -> (i32, i32) {
    %c0_i32 = arith.constant 0 : i32
    %c0_i32_0 = arith.constant 0 : i32
    %c0_i32_1 = arith.constant 0 : i32
    return %c0_i32, %c0_i32_0 : i32, i32
  }
  func.func @transform_7(%arg0: i32) -> (i32, i32) {
    %c0_i32 = arith.constant 0 : i32
    %c0_i32_0 = arith.constant 0 : i32
    %c0_i32_1 = arith.constant 0 : i32
    return %c0_i32, %c0_i32_0 : i32, i32
  }
  func.func @transform_8(%arg0: i32) -> (i32, i32, i32) {
    %c0_i32 = arith.constant 0 : i32
    %c0_i32_0 = arith.constant 0 : i32
    %c0_i32_1 = arith.constant 0 : i32
    %c0_i32_2 = arith.constant 0 : i32
    return %c0_i32, %c0_i32_0, %c0_i32_1 : i32, i32, i32
  }
  func.func @transform_9(%arg0: i32) -> (i32, i32) {
    %c0_i32 = arith.constant 0 : i32
    %c0_i32_0 = arith.constant 0 : i32
    %c0_i32_1 = arith.constant 0 : i32
    return %c0_i32, %c0_i32_0 : i32, i32
  }
  func.func @transform_10(%arg0: i32) -> (i32, i32, i32) {
    %c0_i32 = arith.constant 0 : i32
    %c0_i32_0 = arith.constant 0 : i32
    %c0_i32_1 = arith.constant 0 : i32
    %c0_i32_2 = arith.constant 0 : i32
    return %c0_i32, %c0_i32_0, %c0_i32_1 : i32, i32, i32
  }
  func.func @transform_11(%arg0: i32) -> (i32, i32) {
    %c0_i32 = arith.constant 0 : i32
    %c0_i32_0 = arith.constant 0 : i32
    %c0_i32_1 = arith.constant 0 : i32
    return %c0_i32, %c0_i32_0 : i32, i32
  }
  func.func @transform_12(%arg0: i32) -> (i32, i32, i32) {
    %c0_i32 = arith.constant 0 : i32
    %c0_i32_0 = arith.constant 0 : i32
    %c0_i32_1 = arith.constant 0 : i32
    %c0_i32_2 = arith.constant 0 : i32
    return %c0_i32, %c0_i32_0, %c0_i32_1 : i32, i32, i32
  }
  func.func @transform_13(%arg0: i32) -> (i32, i32) {
    %c0_i32 = arith.constant 0 : i32
    %c0_i32_0 = arith.constant 0 : i32
    %c0_i32_1 = arith.constant 0 : i32
    return %c0_i32, %c0_i32_0 : i32, i32
  }
  func.func @transform_14(%arg0: i32) -> (i32, i32) {
    %c0_i32 = arith.constant 0 : i32
    %c0_i32_0 = arith.constant 0 : i32
    %c0_i32_1 = arith.constant 0 : i32
    return %c0_i32, %c0_i32_0 : i32, i32
  }
  func.func @transform_15(%arg0: i32) -> (i32, i32) {
    %c0_i32 = arith.constant 0 : i32
    %c0_i32_0 = arith.constant 0 : i32
    %c0_i32_1 = arith.constant 0 : i32
    return %c0_i32, %c0_i32_0 : i32, i32
  }
  func.func @transform_16(%arg0: i32) -> (i32, i32) {
    %c0_i32 = arith.constant 0 : i32
    %c0_i32_0 = arith.constant 0 : i32
    %c0_i32_1 = arith.constant 0 : i32
    return %c0_i32, %c0_i32_0 : i32, i32
  }
  func.func @transform_17(%arg0: i32) -> (i32, i32) {
    %c0_i32 = arith.constant 0 : i32
    %c0_i32_0 = arith.constant 0 : i32
    return %arg0, %c0_i32 : i32, i32
  }
}

</mosaic_0001>

<llo_original>
// kernel: quantum_classifier_forward.1
$region0: #{quantum_classifier_forward.1}
  #allocation0 [shape = 'u32[]', space=smem, size = 0x4, offset = 0x4, fixed_abs, tag = 'smem constant byte address 0x4 - core index']
  #allocation1 [shape = 'u32[144,128]{1,0:T(1,128)}', space=vmem, size = 0x12000, scoped, tag = 'internal scratch']
  #allocation2 [shape = 'f32[8,2,128]{2,1,0:T(2,128)}', space=vmem, size = 0x2000, scoped, tag = 'scratch operand']
  #allocation3 [shape = 'f32[8,2,32]{2,1,0:T(2,128)}', space=vmem, size = 0x2000, scoped, tag = 'scratch operand']
  #allocation4 [shape = 'bf16[10,2,32]{2,1,0:T(2,128)(2,1)}', space=vmem, size = 0x1400, scoped, tag = 'scratch operand']
  #allocation5 [shape = 'bf16[6,2,64]{2,1,0:T(2,128)(2,1)}', space=vmem, size = 0xc00, scoped, tag = 'scratch operand']
  #allocation6 [shape = 'f32[1,1]{1,0:T(1,128)S(1)}', space=vmem, size = 0x200, scoped, tag = 'scoped memory for quantum_classifier_forward.1']
  %s0 = inlined_call_operand.vmem [shape: s32[8,2,1], index: 0, kind: input, shape index: {}]
  %s1 = inlined_call_operand.hbm [shape: bf16[128,128], index: 1, kind: input, shape index: {}]
  %s2 = inlined_call_operand.vmem [shape: bf16[32,128], index: 2, kind: input, shape index: {}]
  %s3 = inlined_call_operand.vmem [shape: f32[1,128], index: 3, kind: input, shape index: {}]
  %s4 = inlined_call_operand.vmem [shape: bf16[32,16], index: 4, kind: input, shape index: {}]
  %s5 = inlined_call_operand.vmem [shape: f32[1,16], index: 5, kind: input, shape index: {}]
  %s6 = inlined_call_operand.vmem [shape: f32[1,16], index: 6, kind: input, shape index: {}]
  %s7 = inlined_call_operand.<no memory space> [shape: f32[1,1], index: 7, kind: input, shape index: {}]
  %s8 = inlined_call_operand.hbm [shape: bf16[3,32,64], index: 8, kind: input, shape index: {}]
  %s9 = inlined_call_operand.vmem [shape: f32[1,64], index: 9, kind: input, shape index: {}]
  %s10 = inlined_call_operand.hbm [shape: bf16[3,64,128], index: 10, kind: input, shape index: {}]
  %s11 = inlined_call_operand.vmem [shape: f32[1,128], index: 11, kind: input, shape index: {}]
  %s12 = inlined_call_operand.vmem [shape: bf16[2,128,128], index: 12, kind: input, shape index: {}]
  %s13 = inlined_call_operand.hbm [shape: bf16[32,128], index: 13, kind: input, shape index: {}]
  %s14 = inlined_call_operand.vmem [shape: f32[1,128], index: 14, kind: input, shape index: {}]
  %s15 = inlined_call_operand.vmem [shape: bf16[128,5], index: 15, kind: input, shape index: {}]
  %s16 = inlined_call_operand.vmem [shape: f32[1,5], index: 16, kind: input, shape index: {}]
  %s17 = inlined_call_operand.hbm [shape: f32[2,5], index: 17, kind: output, shape index: {}]
  %s18 = sld [smem:[#allocation0]]
  $region94: #{quantum_classifier_forward.1} parent=0
    _
  %s20 = ssub.s32 1, %s18
  %s21 = scalar_select 0, %s20, %s18
  %v22 = vstv %s7
  %23 = vst [vmem:[#allocation6] sm:$0x1] %v22
  $region1: #{quantum_classifier_forward.1} parent=0
    #allocation7 [shape = 'u8[32768]{0}', space=vmem, size = 0x8000, scoped, tag = 'input window, operand 1, single buffered']
    #allocation8 [shape = 's32[1]{0}', space=sflag, size = 0x4, scoped, tag = 'scoped memory for quantum_classifier_forward.1']
    #allocation9 [shape = 's32[1]{0}', space=sflag, size = 0x4, scoped, tag = 'scoped memory for quantum_classifier_forward.1']
    #allocation10 [shape = 'u8[24576]{0}', space=vmem, size = 0x6000, scoped, tag = 'input window, operand 8, single buffered']
    #allocation11 [shape = 's32[1]{0}', space=sflag, size = 0x4, scoped, tag = 'scoped memory for quantum_classifier_forward.1']
    #allocation12 [shape = 'u8[49152]{0}', space=vmem, size = 0xc000, scoped, tag = 'input window, operand 10, single buffered']
    #allocation13 [shape = 'u8[8192]{0}', space=vmem, size = 0x2000, scoped, tag = 'input window, operand 13, single buffered']
    #allocation14 [shape = 's32[1]{0}', space=sflag, size = 0x4, scoped, tag = 'scoped memory for quantum_classifier_forward.1']
    #allocation15 [shape = 'u8[1024]{0}', space=vmem, size = 0x400, scoped, tag = 'output window, operand 0, single buffered']
    %24 = vsyncpa [#allocation8], 0
    %25 = vsyncpa [#allocation11], 0
    %26 = vsyncpa [#allocation14], 0
    %27 = vsyncpa [#allocation9], 0
    // Predicated region
    $region2: #{quantum_classifier_forward.1} parent=1 // pred_check
      _
    $region3: #{quantum_classifier_forward.1} parent=1 // pred_check_branch
      %29 = sbr.rel (0) target = $region5
    $region4: #{quantum_classifier_forward.1} parent=1 // pred_region
      _
    $region5: #{quantum_classifier_forward.1} parent=1 // pred_fallthru
      _
    // Predicated region
    $region6: #{quantum_classifier_forward.1} parent=1 // pred_check
      _
    $region7: #{quantum_classifier_forward.1} parent=1 // pred_check_branch
      %31 = sbr.rel (0) target = $region9
    $region8: #{quantum_classifier_forward.1} parent=1 // pred_region
      %s33 = ssub.s32 1024, 1024
      %34 = vsyncadd [#allocation8], %s33
      %s35 = sshll.u32 [#allocation7], 4
      %s36 = int_to_ptr.vmem [resolvable:$true] %s35
      %41 = dma.hbm_to_vmem [thread:$0]  %s1, 1024, %s36, [#allocation8], 64, 64, 4
    $region9: #{quantum_classifier_forward.1} parent=1 // pred_fallthru
      _
    // Predicated region
    $region10: #{quantum_classifier_forward.1} parent=1 // pred_check
      _
    $region11: #{quantum_classifier_forward.1} parent=1 // pred_check_branch
      %43 = sbr.rel (0) target = $region13
    $region12: #{quantum_classifier_forward.1} parent=1 // pred_region
      _
    $region13: #{quantum_classifier_forward.1} parent=1 // pred_fallthru
      _
    // Predicated region
    $region14: #{quantum_classifier_forward.1} parent=1 // pred_check
      _
    $region15: #{quantum_classifier_forward.1} parent=1 // pred_check_branch
      %45 = sbr.rel (0) target = $region17
    $region16: #{quantum_classifier_forward.1} parent=1 // pred_region
      _
    $region17: #{quantum_classifier_forward.1} parent=1 // pred_fallthru
      _
    // Predicated region
    $region18: #{quantum_classifier_forward.1} parent=1 // pred_check
      _
    $region19: #{quantum_classifier_forward.1} parent=1 // pred_check_branch
      %47 = sbr.rel (0) target = $region21
    $region20: #{quantum_classifier_forward.1} parent=1 // pred_region
      _
    $region21: #{quantum_classifier_forward.1} parent=1 // pred_fallthru
      _
    // Predicated region
    $region22: #{quantum_classifier_forward.1} parent=1 // pred_check
      _
    $region23: #{quantum_classifier_forward.1} parent=1 // pred_check_branch
      %49 = sbr.rel (0) target = $region25
    $region24: #{quantum_classifier_forward.1} parent=1 // pred_region
      _
    $region25: #{quantum_classifier_forward.1} parent=1 // pred_fallthru
      _
    // Predicated region
    $region26: #{quantum_classifier_forward.1} parent=1 // pred_check
      _
    $region27: #{quantum_classifier_forward.1} parent=1 // pred_check_branch
      %51 = sbr.rel (0) target = $region29
    $region28: #{quantum_classifier_forward.1} parent=1 // pred_region
      _
    $region29: #{quantum_classifier_forward.1} parent=1 // pred_fallthru
      _
    // Predicated region
    $region30: #{quantum_classifier_forward.1} parent=1 // pred_check
      _
    $region31: #{quantum_classifier_forward.1} parent=1 // pred_check_branch
      %53 = sbr.rel (0) target = $region33
    $region32: #{quantum_classifier_forward.1} parent=1 // pred_region
      _
    $region33: #{quantum_classifier_forward.1} parent=1 // pred_fallthru
      _
    // Predicated region
    $region34: #{quantum_classifier_forward.1} parent=1 // pred_check
      _
    $region35: #{quantum_classifier_forward.1} parent=1 // pred_check_branch
      %55 = sbr.rel (0) target = $region37
    $region36: #{quantum_classifier_forward.1} parent=1 // pred_region
      %s57 = ssub.s32 768, 768
      %58 = vsyncadd [#allocation11], %s57
      %s59 = sshll.u32 [#allocation10], 4
      %s60 = int_to_ptr.vmem [resolvable:$true] %s59
      %65 = dma.hbm_to_vmem [thread:$0]  %s8, 768, %s60, [#allocation11], 64, 64, 4
    $region37: #{quantum_classifier_forward.1} parent=1 // pred_fallthru
      _
    // Predicated region
    $region38: #{quantum_classifier_forward.1} parent=1 // pred_check
      _
    $region39: #{quantum_classifier_forward.1} parent=1 // pred_check_branch
      %67 = sbr.rel (0) target = $region41
    $region40: #{quantum_classifier_forward.1} parent=1 // pred_region
      _
    $region41: #{quantum_classifier_forward.1} parent=1 // pred_fallthru
      _
    // Predicated region
    $region42: #{quantum_classifier_forward.1} parent=1 // pred_check
      _
    $region43: #{quantum_classifier_forward.1} parent=1 // pred_check_branch
      %69 = sbr.rel (0) target = $region45
    $region44: #{quantum_classifier_forward.1} parent=1 // pred_region
      %s71 = ssub.s32 1536, 1536
      %72 = vsyncadd [#allocation11], %s71
      %s73 = sshll.u32 [#allocation12], 4
      %s74 = int_to_ptr.vmem [resolvable:$true] %s73
      %79 = dma.hbm_to_vmem [thread:$0]  %s10, 1536, %s74, [#allocation11], 64, 64, 4
    $region45: #{quantum_classifier_forward.1} parent=1 // pred_fallthru
      _
    // Predicated region
    $region46: #{quantum_classifier_forward.1} parent=1 // pred_check
      _
    $region47: #{quantum_classifier_forward.1} parent=1 // pred_check_branch
      %81 = sbr.rel (0) target = $region49
    $region48: #{quantum_classifier_forward.1} parent=1 // pred_region
      _
    $region49: #{quantum_classifier_forward.1} parent=1 // pred_fallthru
      _
    // Predicated region
    $region50: #{quantum_classifier_forward.1} parent=1 // pred_check
      _
    $region51: #{quantum_classifier_forward.1} parent=1 // pred_check_branch
      %83 = sbr.rel (0) target = $region53
    $region52: #{quantum_classifier_forward.1} parent=1 // pred_region
      _
    $region53: #{quantum_classifier_forward.1} parent=1 // pred_fallthru
      _
    // Predicated region
    $region54: #{quantum_classifier_forward.1} parent=1 // pred_check
      _
    $region55: #{quantum_classifier_forward.1} parent=1 // pred_check_branch
      %85 = sbr.rel (0) target = $region57
    $region56: #{quantum_classifier_forward.1} parent=1 // pred_region
      %s87 = ssub.s32 256, 256
      %88 = vsyncadd [#allocation14], %s87
      %s89 = sshll.u32 [#allocation13], 4
      %s90 = int_to_ptr.vmem [resolvable:$true] %s89
      %95 = dma.hbm_to_vmem [thread:$0]  %s13, 256, %s90, [#allocation14], 64, 64, 4
    $region57: #{quantum_classifier_forward.1} parent=1 // pred_fallthru
      _
    // Predicated region
    $region58: #{quantum_classifier_forward.1} parent=1 // pred_check
      _
    $region59: #{quantum_classifier_forward.1} parent=1 // pred_check_branch
      %97 = sbr.rel (0) target = $region61
    $region60: #{quantum_classifier_forward.1} parent=1 // pred_region
      _
    $region61: #{quantum_classifier_forward.1} parent=1 // pred_fallthru
      _
    // Predicated region
    $region62: #{quantum_classifier_forward.1} parent=1 // pred_check
      _
    $region63: #{quantum_classifier_forward.1} parent=1 // pred_check_branch
      %99 = sbr.rel (0) target = $region65
    $region64: #{quantum_classifier_forward.1} parent=1 // pred_region
      _
    $region65: #{quantum_classifier_forward.1} parent=1 // pred_fallthru
      _
    // Predicated region
    $region66: #{quantum_classifier_forward.1} parent=1 // pred_check
      _
    $region67: #{quantum_classifier_forward.1} parent=1 // pred_check_branch
      %101 = sbr.rel (0) target = $region69
    $region68: #{quantum_classifier_forward.1} parent=1 // pred_region
      _
    $region69: #{quantum_classifier_forward.1} parent=1 // pred_fallthru
      _
    // Predicated region
    $region70: #{quantum_classifier_forward.1} parent=1 // pred_check
      _
    $region71: #{quantum_classifier_forward.1} parent=1 // pred_check_branch
      %103 = sbr.rel (0) target = $region73
    $region72: #{quantum_classifier_forward.1} parent=1 // pred_region
      %104 = dma.done [#allocation8], 1024
    $region73: #{quantum_classifier_forward.1} parent=1 // pred_fallthru
      _
    // Predicated region
    $region74: #{quantum_classifier_forward.1} parent=1 // pred_check
      _
    $region75: #{quantum_classifier_forward.1} parent=1 // pred_check_branch
      %106 = sbr.rel (0) target = $region77
    $region76: #{quantum_classifier_forward.1} parent=1 // pred_region
      %107 = dma.done [#allocation11], 768
    $region77: #{quantum_classifier_forward.1} parent=1 // pred_fallthru
      _
    // Predicated region
    $region78: #{quantum_classifier_forward.1} parent=1 // pred_check
      _
    $region79: #{quantum_classifier_forward.1} parent=1 // pred_check_branch
      %109 = sbr.rel (0) target = $region81
    $region80: #{quantum_classifier_forward.1} parent=1 // pred_region
      %110 = dma.done [#allocation11], 1536
    $region81: #{quantum_classifier_forward.1} parent=1 // pred_fallthru
      _
    // Predicated region
    $region82: #{quantum_classifier_forward.1} parent=1 // pred_check
      _
    $region83: #{quantum_classifier_forward.1} parent=1 // pred_check_branch
      %112 = sbr.rel (0) target = $region85
    $region84: #{quantum_classifier_forward.1} parent=1 // pred_region
      %113 = dma.done [#allocation14], 256
    $region85: #{quantum_classifier_forward.1} parent=1 // pred_fallthru
      _
    %v115 = vlaneseq
    %v116 = vand.u32 %v115, 127
    %v117 = vld [vmem:[%s0] sm:$0x3]
    %v118 = vld [vmem:[%s0 + $0x2] sm:$0x3]
    %v119 = vld [vmem:[%s0 + $0x4] sm:$0x3]
    %v120 = vld [vmem:[%s0 + $0x6] sm:$0x3]
    %v121 = vld [vmem:[%s0 + $0x8] sm:$0x3]
    %v122 = vld [vmem:[%s0 + $0xa] sm:$0x3]
    %v123 = vld [vmem:[%s0 + $0xc] sm:$0x3]
    %v124 = vld [vmem:[%s0 + $0xe] sm:$0x3]
    %125 = vset.pattern.permute.xlu0 0
    %126 = vperm.xlu0 %125, %v117
    %v127 = vpop.permute.xlu0 %126
    %128 = vset.pattern.permute.xlu0 0
    %129 = vperm.xlu0 %128, %v118
    %v130 = vpop.permute.xlu0 %129
    %131 = vset.pattern.permute.xlu0 0
    %132 = vperm.xlu0 %131, %v119
    %v133 = vpop.permute.xlu0 %132
    %134 = vset.pattern.permute.xlu0 0
    %135 = vperm.xlu0 %134, %v120
    %v136 = vpop.permute.xlu0 %135
    %137 = vset.pattern.permute.xlu0 0
    %138 = vperm.xlu0 %137, %v121
    %v139 = vpop.permute.xlu0 %138
    %140 = vset.pattern.permute.xlu0 0
    %141 = vperm.xlu0 %140, %v122
    %v142 = vpop.permute.xlu0 %141
    %143 = vset.pattern.permute.xlu0 0
    %144 = vperm.xlu0 %143, %v123
    %v145 = vpop.permute.xlu0 %144
    %146 = vset.pattern.permute.xlu0 0
    %147 = vperm.xlu0 %146, %v124
    %v148 = vpop.permute.xlu0 %147
    %vm149 = vcmp.eq.s32.totalorder %v116, %v127
    %vm150 = vcmp.eq.s32.totalorder %v116, %v130
    %vm151 = vcmp.eq.s32.totalorder %v116, %v133
    %vm152 = vcmp.eq.s32.totalorder %v116, %v136
    %vm153 = vcmp.eq.s32.totalorder %v116, %v139
    %vm154 = vcmp.eq.s32.totalorder %v116, %v142
    %vm155 = vcmp.eq.s32.totalorder %v116, %v145
    %vm156 = vcmp.eq.s32.totalorder %v116, %v148
    %v157 = vsel %vm149, 1.0, 0.0
    %v158 = vsel %vm150, 1.0, 0.0
    %v159 = vsel %vm151, 1.0, 0.0
    %v160 = vsel %vm152, 1.0, 0.0
    %v161 = vsel %vm153, 1.0, 0.0
    %v162 = vsel %vm154, 1.0, 0.0
    %v163 = vsel %vm155, 1.0, 0.0
    %v164 = vsel %vm156, 1.0, 0.0
    %v165 = vpack.c.bf16 %v157, %v157
    %v166 = vpack.c.bf16 %v158, %v158
    %v167 = vpack.c.bf16 %v159, %v159
    %v168 = vpack.c.bf16 %v160, %v160
    %v169 = vpack.c.bf16 %v161, %v161
    %v170 = vpack.c.bf16 %v162, %v162
    %v171 = vpack.c.bf16 %v163, %v163
    %v172 = vpack.c.bf16 %v164, %v164
    %v173 = vld [vmem:[#allocation7] sm:$0xf]
    %v174 = vld [vmem:[#allocation7 + $0x4] sm:$0xf]
    %v175 = vld [vmem:[#allocation7 + $0x8] sm:$0xf]
    %v176 = vld [vmem:[#allocation7 + $0xc] sm:$0xf]
    %v177 = vld [vmem:[#allocation7 + $0x10] sm:$0xf]
    %v178 = vld [vmem:[#allocation7 + $0x14] sm:$0xf]
    %v179 = vld [vmem:[#allocation7 + $0x18] sm:$0xf]
    %v180 = vld [vmem:[#allocation7 + $0x1c] sm:$0xf]
    %v181 = vld [vmem:[#allocation7 + $0x20] sm:$0xf]
    %v182 = vld [vmem:[#allocation7 + $0x24] sm:$0xf]
    %v183 = vld [vmem:[#allocation7 + $0x28] sm:$0xf]
    %v184 = vld [vmem:[#allocation7 + $0x2c] sm:$0xf]
    %v185 = vld [vmem:[#allocation7 + $0x30] sm:$0xf]
    %v186 = vld [vmem:[#allocation7 + $0x34] sm:$0xf]
    %v187 = vld [vmem:[#allocation7 + $0x38] sm:$0xf]
    %v188 = vld [vmem:[#allocation7 + $0x3c] sm:$0xf]
    %v189 = vld [vmem:[%s3] sm:$0x1]
    %v191 = vlaneseq
    %v192 = vshrl.u32 %v191, 7
    %v193 = vsub.s32 0, %v192
    %v194 = vrot.slane %v189, %v193
    %v204 = vcombine.low %v165, %v166
    %v205 = vcombine.low %v167, %v168
    %v206 = vcombine.low %v169, %v170
    %v207 = vcombine.low %v171, %v172
    %v209 = vunpack.c.l.s4 1966171168
    %v210 = vunpack.c.0.s8 %v209
    %v211 = vlaneseq
    %v212 = vshrl.u32 %v211, 7
    %v213 = vsub.s32 %v210, %v212
    %v214 = vrot.slane %v204, %v213
    %v216 = vunpack.c.l.s4 1966171168
    %v217 = vunpack.c.0.s8 %v216
    %v218 = vlaneseq
    %v219 = vshrl.u32 %v218, 7
    %v220 = vsub.s32 %v217, %v219
    %v221 = vrot.slane %v205, %v220
    %v223 = vunpack.c.l.s4 1966171168
    %v224 = vunpack.c.0.s8 %v223
    %v225 = vlaneseq
    %v226 = vshrl.u32 %v225, 7
    %v227 = vsub.s32 %v224, %v226
    %v228 = vrot.slane %v206, %v227
    %v230 = vunpack.c.l.s4 1966171168
    %v231 = vunpack.c.0.s8 %v230
    %v232 = vlaneseq
    %v233 = vshrl.u32 %v232, 7
    %v234 = vsub.s32 %v231, %v233
    %v235 = vrot.slane %v207, %v234
    %v236 = vcombine.low %v214, %v221
    %v237 = vcombine.low %v228, %v235
    %v239 = vunpack.c.l.s4 1966171168
    %v240 = vunpack.c.0.s8 %v239
    %v241 = vlaneseq
    %v242 = vshrl.u32 %v241, 7
    %v243 = vsub.s32 %v240, %v242
    %v244 = vrot.slane %v236, %v243
    %v246 = vunpack.c.l.s4 1966171168
    %v247 = vunpack.c.0.s8 %v246
    %v248 = vlaneseq
    %v249 = vshrl.u32 %v248, 7
    %v250 = vsub.s32 %v247, %v249
    %v251 = vrot.slane %v237, %v250
    %v252 = vcombine.low %v244, %v251
    %v270 = vunpack.c.l.b16 %v173
    %v271 = vunpack.c.l.b16 %v174
    %v272 = vunpack.c.l.b16 %v175
    %v273 = vunpack.c.l.b16 %v176
    %v274 = vunpack.c.l.b16 %v177
    %v275 = vunpack.c.l.b16 %v178
    %v276 = vunpack.c.l.b16 %v179
    %v277 = vunpack.c.l.b16 %v180
    %v278 = vunpack.c.l.b16 %v181
    %v279 = vunpack.c.l.b16 %v182
    %v280 = vunpack.c.l.b16 %v183
    %v281 = vunpack.c.l.b16 %v184
    %v282 = vunpack.c.l.b16 %v185
    %v283 = vunpack.c.l.b16 %v186
    %v284 = vunpack.c.l.b16 %v187
    %v285 = vunpack.c.l.b16 %v188
    %v286 = vpack.c.b16 %v271, %v270
    %v287 = vpack.c.b16 %v273, %v272
    %v288 = vpack.c.b16 %v275, %v274
    %v289 = vpack.c.b16 %v277, %v276
    %v290 = vpack.c.b16 %v279, %v278
    %v291 = vpack.c.b16 %v281, %v280
    %v292 = vpack.c.b16 %v283, %v282
    %v293 = vpack.c.b16 %v285, %v284
    %302 = vmatprep.subr.bf16.mxu0 0
    %303 = vmatpush1.bf16.msra.mxu0 %v286
    %304 = vmatprep.subr.bf16.mxu0 0
    %305 = vmatpush1.bf16.msra.mxu0 %v287
    %306 = vmatprep.subr.bf16.mxu0 0
    %307 = vmatpush1.bf16.msra.mxu0 %v288
    %308 = vmatprep.subr.bf16.mxu0 0
    %309 = vmatpush1.bf16.msra.mxu0 %v289
    %310 = vmatprep.subr.bf16.mxu0 0
    %311 = vmatpush1.bf16.msra.mxu0 %v290
    %312 = vmatprep.subr.bf16.mxu0 0
    %313 = vmatpush1.bf16.msra.mxu0 %v291
    %314 = vmatprep.subr.bf16.mxu0 0
    %315 = vmatpush1.bf16.msra.mxu0 %v292
    %316 = vmatprep.subr.bf16.mxu0 0
    %317 = vmatpush1.bf16.msra.mxu0 %v293
    %318 = vmatprep.subr.bf16.mxu0 0
    %319 = vmatpush1.bf16.msra.mxu0 0
    %320 = vmatprep.subr.bf16.mxu0 0
    %321 = vmatpush1.bf16.msra.mxu0 0
    %322 = vmatprep.subr.bf16.mxu0 0
    %323 = vmatpush1.bf16.msra.mxu0 0
    %324 = vmatprep.subr.bf16.mxu0 0
    %325 = vmatpush1.bf16.msra.mxu0 0
    %326 = vmatprep.subr.bf16.mxu0 0
    %327 = vmatpush1.bf16.msra.mxu0 0
    %328 = vmatprep.subr.bf16.mxu0 0
    %329 = vmatpush1.bf16.msra.mxu0 0
    %330 = vmatprep.subr.bf16.mxu0 0
    %331 = vmatpush1.bf16.msra.mxu0 0
    %332 = vmatprep.subr.bf16.mxu0 0
    %333 = vmatpush1.bf16.msra.mxu0 0
    %334 = vmatprep.mubr.bf16.mxu0 0
    %335 = vmatmul.mubr.bf16.gmra.mrb[0].mxu0 %v252
    %v336 = vpop.f32.mrb[0].mxu0
    %v337 = vadd.f32 %v194, %v336
    %v338 = vpop.f32.mrb[0].mxu0
    %v339 = vpop.f32.mrb[0].mxu0
    %v340 = vadd.f32 %v194, %v339
    %v341 = vpop.f32.mrb[0].mxu0
    %342 = vdwg.mxu0
    %v345 = vcombine.high %v337, %v337
    %v347 = vunpack.c.l.s4 1983009808
    %v348 = vunpack.c.0.s8 %v347
    %v349 = vlaneseq
    %v350 = vshrl.u32 %v349, 7
    %v351 = vsub.s32 %v348, %v350
    %v352 = vrot.slane %v337, %v351
    %v354 = vunpack.c.l.s4 1983009808
    %v355 = vunpack.c.0.s8 %v354
    %v356 = vlaneseq
    %v357 = vshrl.u32 %v356, 7
    %v358 = vsub.s32 %v355, %v357
    %v359 = vrot.slane %v345, %v358
    %v360 = vcombine.high %v352, %v352
    %v361 = vcombine.high %v359, %v359
    %v362 = vcombine.high %v340, %v340
    %v364 = vunpack.c.l.s4 1983009808
    %v365 = vunpack.c.0.s8 %v364
    %v366 = vlaneseq
    %v367 = vshrl.u32 %v366, 7
    %v368 = vsub.s32 %v365, %v367
    %v369 = vrot.slane %v340, %v368
    %v371 = vunpack.c.l.s4 1983009808
    %v372 = vunpack.c.0.s8 %v371
    %v373 = vlaneseq
    %v374 = vshrl.u32 %v373, 7
    %v375 = vsub.s32 %v372, %v374
    %v376 = vrot.slane %v362, %v375
    %v377 = vcombine.high %v369, %v369
    %v378 = vcombine.high %v376, %v376
    %vm387 = vcmp.lt.s32.totalorder %v116, 0
    %v388 = vsub.s32 0, %v116
    %v389 = vsel %vm387, %v388, %v116
    %v390 = vshrl.u32 %v389, 5
    %v391 = vand.u32 %v389, 31
    %v392 = vsub.s32 0, %v391
    %v393 = vsel %vm387, %v392, %v391
    %vm394 = vcmp.ne.s32.totalorder %v393, 0
    %vm395 = vcmp.lt.s32.totalorder %v393, 0
    %vm396 = vmand %vm395, %vm394
    %v397 = vadd.s32 %v393, 32
    %v398 = vsel %vm396, %v397, %v393
    %vm399 = vcmp.lt.s32.totalorder %v398, 16
    %v400 = vsel %vm399, %v352, %v378
    %v401 = vsel %vm399, %v360, %v376
    %v402 = vsel %vm399, %v359, %v377
    %v403 = vsel %vm399, %v361, %v369
    %v404 = vsel %vm399, %v369, %v361
    %v405 = vsel %vm399, %v377, %v359
    %v406 = vsel %vm399, %v376, %v360
    %v407 = vsel %vm399, %v378, %v352
    %408 = vst [vmem:[#allocation2] sm:$0x3] %v400
    %409 = vst [vmem:[#allocation2 + $0x2] sm:$0x3] %v401
    %410 = vst [vmem:[#allocation2 + $0x4] sm:$0x3] %v402
    %411 = vst [vmem:[#allocation2 + $0x6] sm:$0x3] %v403
    %412 = vst [vmem:[#allocation2 + $0x8] sm:$0x3] %v404
    %413 = vst [vmem:[#allocation2 + $0xa] sm:$0x3] %v405
    %414 = vst [vmem:[#allocation2 + $0xc] sm:$0x3] %v406
    %415 = vst [vmem:[#allocation2 + $0xe] sm:$0x3] %v407
    %v416 = vld [vmem:[%s2] sm:$0xf]
    %v417 = vld [vmem:[%s2 + $0x4] sm:$0xf]
    %v418 = vld [vmem:[%s2 + $0x8] sm:$0xf]
    %v419 = vld [vmem:[%s2 + $0xc] sm:$0xf]
    %v420 = vld [vmem:[#allocation2] sm:$0x3]
    %v425 = vunpack.c.l.b16 %v416
    %v426 = vunpack.c.l.b16 %v417
    %v427 = vunpack.c.l.b16 %v418
    %v428 = vunpack.c.l.b16 %v419
    %v429 = vpack.c.b16 %v426, %v425
    %v430 = vpack.c.b16 %v428, %v427
    %vm433 = vcmask 261120
    %v435 = vsel %vm433, 0, 0
    %437 = vmatprep.subr.bf16.mxu0 0
    %438 = vmatpush1.bf16.msra.mxu0 %v429
    %439 = vmatprep.subr.bf16.mxu0 0
    %440 = vmatpush1.bf16.msra.mxu0 %v430
    %441 = vmatprep.subr.bf16.mxu0 0
    %442 = vmatpush1.bf16.msra.mxu0 0
    %443 = vmatprep.subr.bf16.mxu0 0
    %444 = vmatpush1.bf16.msra.mxu0 0
    %445 = vmatprep.subr.bf16.mxu0 0
    %446 = vmatpush1.bf16.msra.mxu0 0
    %447 = vmatprep.subr.bf16.mxu0 0
    %448 = vmatpush1.bf16.msra.mxu0 0
    %449 = vmatprep.subr.bf16.mxu0 0
    %450 = vmatpush1.bf16.msra.mxu0 0
    %451 = vmatprep.subr.bf16.mxu0 0
    %452 = vmatpush1.bf16.msra.mxu0 0
    %453 = vmatprep.subr.bf16.mxu0 0
    %454 = vmatpush1.bf16.msra.mxu0 0
    %455 = vmatprep.subr.bf16.mxu0 0
    %456 = vmatpush1.bf16.msra.mxu0 0
    %457 = vmatprep.subr.bf16.mxu0 0
    %458 = vmatpush1.bf16.msra.mxu0 0
    %459 = vmatprep.subr.bf16.mxu0 0
    %460 = vmatpush1.bf16.msra.mxu0 0
    %461 = vmatprep.subr.bf16.mxu0 0
    %462 = vmatpush1.bf16.msra.mxu0 0
    %463 = vmatprep.subr.bf16.mxu0 0
    %464 = vmatpush1.bf16.msra.mxu0 0
    %465 = vmatprep.subr.bf16.mxu0 0
    %466 = vmatpush1.bf16.msra.mxu0 0
    %467 = vmatprep.subr.bf16.mxu0 0
    %468 = vmatpush1.bf16.msra.mxu0 0
    %469 = vmatprep.mubr.bf16.mxu0 0
    %470 = vmatmul.mubr.bf16.gmra.mrb[0].mxu0 %v435
    %v471 = vpop.f32.mrb[0].mxu0
    %v472 = vadd.f32 0.0, %v471
    %v473 = vpop.f32.mrb[0].mxu0
    %v474 = vpop.f32.mrb[0].mxu0
    %v475 = vpop.f32.mrb[0].mxu0
    %476 = vdwg.mxu0
    %v477 = vadd.f32 %v420, %v472
    %v478 = vxor.u32 %v477, 2147483648
    %v479 = vmul.f32 %v478, 1.442695
    %v480 = vpow.pop %v479
    %v481 = vadd.f32 %v480, 1.0
    %v482 = vrcp.pop %v481
    %v483 = vmul.f32 1.0, %v482
    %v484 = vtanh.pop %v477
    %v485 = vmul.f32 %v483, 0.0
    %487 = vrot.lane.b32.xlu0 %v484, 64
    %v488 = vpop.permute.xlu0 %487
    %v490 = vmul.f32 %v483, %v488
    %492 = vrot.lane.b32.xlu0 %v490, 32
    %v493 = vpop.permute.xlu0 %492
    %v495 = vadd.f32 %v485, %v493
    %v496 = vtanh.pop %v495
    %498 = vrot.lane.b32.xlu0 %v496, 64
    %v499 = vpop.permute.xlu0 %498
    %v501 = vmul.f32 %v483, %v499
    %503 = vrot.lane.b32.xlu0 %v501, 32
    %v504 = vpop.permute.xlu0 %503
    %vm506 = vcmask 254976
    %507 = vst.msk [vmem:[#allocation3] sm:$0x3] %vm506, %v504
    %s508 = scalar_lea.vmem [#allocation2], 2
    %v509 = vld [vmem:[%s508] sm:$0x3]
    %v510 = vpack.c.bf16 %v501, %v501
    %512 = vrot.lane.b32.xlu0 %v510, 32
    %v513 = vpop.permute.xlu0 %512
    %v515 = vsel %vm433, %v513, 0
    %517 = vmatprep.subr.bf16.mxu0 0
    %518 = vmatpush1.bf16.msra.mxu0 %v429
    %519 = vmatprep.subr.bf16.mxu0 0
    %520 = vmatpush1.bf16.msra.mxu0 %v430
    %521 = vmatprep.subr.bf16.mxu0 0
    %522 = vmatpush1.bf16.msra.mxu0 0
    %523 = vmatprep.subr.bf16.mxu0 0
    %524 = vmatpush1.bf16.msra.mxu0 0
    %525 = vmatprep.subr.bf16.mxu0 0
    %526 = vmatpush1.bf16.msra.mxu0 0
    %527 = vmatprep.subr.bf16.mxu0 0
    %528 = vmatpush1.bf16.msra.mxu0 0
    %529 = vmatprep.subr.bf16.mxu0 0
    %530 = vmatpush1.bf16.msra.mxu0 0
    %531 = vmatprep.subr.bf16.mxu0 0
    %532 = vmatpush1.bf16.msra.mxu0 0
    %533 = vmatprep.subr.bf16.mxu0 0
    %534 = vmatpush1.bf16.msra.mxu0 0
    %535 = vmatprep.subr.bf16.mxu0 0
    %536 = vmatpush1.bf16.msra.mxu0 0
    %537 = vmatprep.subr.bf16.mxu0 0
    %538 = vmatpush1.bf16.msra.mxu0 0
    %539 = vmatprep.subr.bf16.mxu0 0
    %540 = vmatpush1.bf16.msra.mxu0 0
    %541 = vmatprep.subr.bf16.mxu0 0
    %542 = vmatpush1.bf16.msra.mxu0 0
    %543 = vmatprep.subr.bf16.mxu0 0
    %544 = vmatpush1.bf16.msra.mxu0 0
    %545 = vmatprep.subr.bf16.mxu0 0
    %546 = vmatpush1.bf16.msra.mxu0 0
    %547 = vmatprep.subr.bf16.mxu0 0
    %548 = vmatpush1.bf16.msra.mxu0 0
    %549 = vmatprep.mubr.bf16.mxu0 0
    %550 = vmatmul.mubr.bf16.gmra.mrb[0].mxu0 %v515
    %v551 = vpop.f32.mrb[0].mxu0
    %v552 = vadd.f32 0.0, %v551
    %v553 = vpop.f32.mrb[0].mxu0
    %v554 = vpop.f32.mrb[0].mxu0
    %v555 = vpop.f32.mrb[0].mxu0
    %556 = vdwg.mxu0
    %v557 = vadd.f32 %v509, %v552
    %v558 = vxor.u32 %v557, 2147483648
    %v559 = vmul.f32 %v558, 1.442695
    %v560 = vpow.pop %v559
    %v561 = vadd.f32 %v560, 1.0
    %v562 = vrcp.pop %v561
    %v563 = vmul.f32 1.0, %v562
    %v564 = vtanh.pop %v557
    %v565 = vmul.f32 %v563, %v495
    %567 = vrot.lane.b32.xlu0 %v564, 64
    %v568 = vpop.permute.xlu0 %567
    %v570 = vmul.f32 %v563, %v568
    %572 = vrot.lane.b32.xlu0 %v570, 32
    %v573 = vpop.permute.xlu0 %572
    %v575 = vadd.f32 %v565, %v573
    %v576 = vtanh.pop %v575
    %578 = vrot.lane.b32.xlu0 %v576, 64
    %v579 = vpop.permute.xlu0 %578
    %v581 = vmul.f32 %v563, %v579
    %583 = vrot.lane.b32.xlu0 %v581, 32
    %v584 = vpop.permute.xlu0 %583
    %s586 = scalar_lea.vmem [#allocation3], 2
    %587 = vst.msk [vmem:[%s586] sm:$0x3] %vm506, %v584
    %s588 = scalar_lea.vmem [#allocation2], 4
    %v589 = vld [vmem:[%s588] sm:$0x3]
    %v590 = vpack.c.bf16 %v581, %v581
    %592 = vrot.lane.b32.xlu0 %v590, 32
    %v593 = vpop.permute.xlu0 %592
    %v595 = vsel %vm433, %v593, 0
    %597 = vmatprep.subr.bf16.mxu0 0
    %598 = vmatpush1.bf16.msra.mxu0 %v429
    %599 = vmatprep.subr.bf16.mxu0 0
    %600 = vmatpush1.bf16.msra.mxu0 %v430
    %601 = vmatprep.subr.bf16.mxu0 0
    %602 = vmatpush1.bf16.msra.mxu0 0
    %603 = vmatprep.subr.bf16.mxu0 0
    %604 = vmatpush1.bf16.msra.mxu0 0
    %605 = vmatprep.subr.bf16.mxu0 0
    %606 = vmatpush1.bf16.msra.mxu0 0
    %607 = vmatprep.subr.bf16.mxu0 0
    %608 = vmatpush1.bf16.msra.mxu0 0
    %609 = vmatprep.subr.bf16.mxu0 0
    %610 = vmatpush1.bf16.msra.mxu0 0
    %611 = vmatprep.subr.bf16.mxu0 0
    %612 = vmatpush1.bf16.msra.mxu0 0
    %613 = vmatprep.subr.bf16.mxu0 0
    %614 = vmatpush1.bf16.msra.mxu0 0
    %615 = vmatprep.subr.bf16.mxu0 0
    %616 = vmatpush1.bf16.msra.mxu0 0
    %617 = vmatprep.subr.bf16.mxu0 0
    %618 = vmatpush1.bf16.msra.mxu0 0
    %619 = vmatprep.subr.bf16.mxu0 0
    %620 = vmatpush1.bf16.msra.mxu0 0
    %621 = vmatprep.subr.bf16.mxu0 0
    %622 = vmatpush1.bf16.msra.mxu0 0
    %623 = vmatprep.subr.bf16.mxu0 0
    %624 = vmatpush1.bf16.msra.mxu0 0
    %625 = vmatprep.subr.bf16.mxu0 0
    %626 = vmatpush1.bf16.msra.mxu0 0
    %627 = vmatprep.subr.bf16.mxu0 0
    %628 = vmatpush1.bf16.msra.mxu0 0
    %629 = vmatprep.mubr.bf16.mxu0 0
    %630 = vmatmul.mubr.bf16.gmra.mrb[0].mxu0 %v595
    %v631 = vpop.f32.mrb[0].mxu0
    %v632 = vadd.f32 0.0, %v631
    %v633 = vpop.f32.mrb[0].mxu0
    %v634 = vpop.f32.mrb[0].mxu0
    %v635 = vpop.f32.mrb[0].mxu0
    %636 = vdwg.mxu0
    %v637 = vadd.f32 %v589, %v632
    %v638 = vxor.u32 %v637, 2147483648
    %v639 = vmul.f32 %v638, 1.442695
    %v640 = vpow.pop %v639
    %v641 = vadd.f32 %v640, 1.0
    %v642 = vrcp.pop %v641
    %v643 = vmul.f32 1.0, %v642
    %v644 = vtanh.pop %v637
    %v645 = vmul.f32 %v643, %v575
    %647 = vrot.lane.b32.xlu0 %v644, 64
    %v648 = vpop.permute.xlu0 %647
    %v650 = vmul.f32 %v643, %v648
    %652 = vrot.lane.b32.xlu0 %v650, 32
    %v653 = vpop.permute.xlu0 %652
    %v655 = vadd.f32 %v645, %v653
    %v656 = vtanh.pop %v655
    %658 = vrot.lane.b32.xlu0 %v656, 64
    %v659 = vpop.permute.xlu0 %658
    %v661 = vmul.f32 %v643, %v659
    %663 = vrot.lane.b32.xlu0 %v661, 32
    %v664 = vpop.permute.xlu0 %663
    %s666 = scalar_lea.vmem [#allocation3], 4
    %667 = vst.msk [vmem:[%s666] sm:$0x3] %vm506, %v664
    %s668 = scalar_lea.vmem [#allocation2], 6
    %v669 = vld [vmem:[%s668] sm:$0x3]
    %v670 = vpack.c.bf16 %v661, %v661
    %672 = vrot.lane.b32.xlu0 %v670, 32
    %v673 = vpop.permute.xlu0 %672
    %v675 = vsel %vm433, %v673, 0
    %677 = vmatprep.subr.bf16.mxu0 0
    %678 = vmatpush1.bf16.msra.mxu0 %v429
    %679 = vmatprep.subr.bf16.mxu0 0
    %680 = vmatpush1.bf16.msra.mxu0 %v430
    %681 = vmatprep.subr.bf16.mxu0 0
    %682 = vmatpush1.bf16.msra.mxu0 0
    %683 = vmatprep.subr.bf16.mxu0 0
    %684 = vmatpush1.bf16.msra.mxu0 0
    %685 = vmatprep.subr.bf16.mxu0 0
    %686 = vmatpush1.bf16.msra.mxu0 0
    %687 = vmatprep.subr.bf16.mxu0 0
    %688 = vmatpush1.bf16.msra.mxu0 0
    %689 = vmatprep.subr.bf16.mxu0 0
    %690 = vmatpush1.bf16.msra.mxu0 0
    %691 = vmatprep.subr.bf16.mxu0 0
    %692 = vmatpush1.bf16.msra.mxu0 0
    %693 = vmatprep.subr.bf16.mxu0 0
    %694 = vmatpush1.bf16.msra.mxu0 0
    %695 = vmatprep.subr.bf16.mxu0 0
    %696 = vmatpush1.bf16.msra.mxu0 0
    %697 = vmatprep.subr.bf16.mxu0 0
    %698 = vmatpush1.bf16.msra.mxu0 0
    %699 = vmatprep.subr.bf16.mxu0 0
    %700 = vmatpush1.bf16.msra.mxu0 0
    %701 = vmatprep.subr.bf16.mxu0 0
    %702 = vmatpush1.bf16.msra.mxu0 0
    %703 = vmatprep.subr.bf16.mxu0 0
    %704 = vmatpush1.bf16.msra.mxu0 0
    %705 = vmatprep.subr.bf16.mxu0 0
    %706 = vmatpush1.bf16.msra.mxu0 0
    %707 = vmatprep.subr.bf16.mxu0 0
    %708 = vmatpush1.bf16.msra.mxu0 0
    %709 = vmatprep.mubr.bf16.mxu0 0
    %710 = vmatmul.mubr.bf16.gmra.mrb[0].mxu0 %v675
    %v711 = vpop.f32.mrb[0].mxu0
    %v712 = vadd.f32 0.0, %v711
    %v713 = vpop.f32.mrb[0].mxu0
    %v714 = vpop.f32.mrb[0].mxu0
    %v715 = vpop.f32.mrb[0].mxu0
    %716 = vdwg.mxu0
    %v717 = vadd.f32 %v669, %v712
    %v718 = vxor.u32 %v717, 2147483648
    %v719 = vmul.f32 %v718, 1.442695
    %v720 = vpow.pop %v719
    %v721 = vadd.f32 %v720, 1.0
    %v722 = vrcp.pop %v721
    %v723 = vmul.f32 1.0, %v722
    %v724 = vtanh.pop %v717
    %v725 = vmul.f32 %v723, %v655
    %727 = vrot.lane.b32.xlu0 %v724, 64
    %v728 = vpop.permute.xlu0 %727
    %v730 = vmul.f32 %v723, %v728
    %732 = vrot.lane.b32.xlu0 %v730, 32
    %v733 = vpop.permute.xlu0 %732
    %v735 = vadd.f32 %v725, %v733
    %v736 = vtanh.pop %v735
    %738 = vrot.lane.b32.xlu0 %v736, 64
    %v739 = vpop.permute.xlu0 %738
    %v741 = vmul.f32 %v723, %v739
    %743 = vrot.lane.b32.xlu0 %v741, 32
    %v744 = vpop.permute.xlu0 %743
    %s746 = scalar_lea.vmem [#allocation3], 6
    %747 = vst.msk [vmem:[%s746] sm:$0x3] %vm506, %v744
    %s748 = scalar_lea.vmem [#allocation2], 8
    %v749 = vld [vmem:[%s748] sm:$0x3]
    %v750 = vpack.c.bf16 %v741, %v741
    %752 = vrot.lane.b32.xlu0 %v750, 32
    %v753 = vpop.permute.xlu0 %752
    %v755 = vsel %vm433, %v753, 0
    %757 = vmatprep.subr.bf16.mxu0 0
    %758 = vmatpush1.bf16.msra.mxu0 %v429
    %759 = vmatprep.subr.bf16.mxu0 0
    %760 = vmatpush1.bf16.msra.mxu0 %v430
    %761 = vmatprep.subr.bf16.mxu0 0
    %762 = vmatpush1.bf16.msra.mxu0 0
    %763 = vmatprep.subr.bf16.mxu0 0
    %764 = vmatpush1.bf16.msra.mxu0 0
    %765 = vmatprep.subr.bf16.mxu0 0
    %766 = vmatpush1.bf16.msra.mxu0 0
    %767 = vmatprep.subr.bf16.mxu0 0
    %768 = vmatpush1.bf16.msra.mxu0 0
    %769 = vmatprep.subr.bf16.mxu0 0
    %770 = vmatpush1.bf16.msra.mxu0 0
    %771 = vmatprep.subr.bf16.mxu0 0
    %772 = vmatpush1.bf16.msra.mxu0 0
    %773 = vmatprep.subr.bf16.mxu0 0
    %774 = vmatpush1.bf16.msra.mxu0 0
    %775 = vmatprep.subr.bf16.mxu0 0
    %776 = vmatpush1.bf16.msra.mxu0 0
    %777 = vmatprep.subr.bf16.mxu0 0
    %778 = vmatpush1.bf16.msra.mxu0 0
    %779 = vmatprep.subr.bf16.mxu0 0
    %780 = vmatpush1.bf16.msra.mxu0 0
    %781 = vmatprep.subr.bf16.mxu0 0
    %782 = vmatpush1.bf16.msra.mxu0 0
    %783 = vmatprep.subr.bf16.mxu0 0
    %784 = vmatpush1.bf16.msra.mxu0 0
    %785 = vmatprep.subr.bf16.mxu0 0
    %786 = vmatpush1.bf16.msra.mxu0 0
    %787 = vmatprep.subr.bf16.mxu0 0
    %788 = vmatpush1.bf16.msra.mxu0 0
    %789 = vmatprep.mubr.bf16.mxu0 0
    %790 = vmatmul.mubr.bf16.gmra.mrb[0].mxu0 %v755
    %v791 = vpop.f32.mrb[0].mxu0
    %v792 = vadd.f32 0.0, %v791
    %v793 = vpop.f32.mrb[0].mxu0
    %v794 = vpop.f32.mrb[0].mxu0
    %v795 = vpop.f32.mrb[0].mxu0
    %796 = vdwg.mxu0
    %v797 = vadd.f32 %v749, %v792
    %v798 = vxor.u32 %v797, 2147483648
    %v799 = vmul.f32 %v798, 1.442695
    %v800 = vpow.pop %v799
    %v801 = vadd.f32 %v800, 1.0
    %v802 = vrcp.pop %v801
    %v803 = vmul.f32 1.0, %v802
    %v804 = vtanh.pop %v797
    %v805 = vmul.f32 %v803, %v735
    %807 = vrot.lane.b32.xlu0 %v804, 64
    %v808 = vpop.permute.xlu0 %807
    %v810 = vmul.f32 %v803, %v808
    %812 = vrot.lane.b32.xlu0 %v810, 32
    %v813 = vpop.permute.xlu0 %812
    %v815 = vadd.f32 %v805, %v813
    %v816 = vtanh.pop %v815
    %818 = vrot.lane.b32.xlu0 %v816, 64
    %v819 = vpop.permute.xlu0 %818
    %v821 = vmul.f32 %v803, %v819
    %823 = vrot.lane.b32.xlu0 %v821, 32
    %v824 = vpop.permute.xlu0 %823
    %s826 = scalar_lea.vmem [#allocation3], 8
    %827 = vst.msk [vmem:[%s826] sm:$0x3] %vm506, %v824
    %s828 = scalar_lea.vmem [#allocation2], 10
    %v829 = vld [vmem:[%s828] sm:$0x3]
    %v830 = vpack.c.bf16 %v821, %v821
    %832 = vrot.lane.b32.xlu0 %v830, 32
    %v833 = vpop.permute.xlu0 %832
    %v835 = vsel %vm433, %v833, 0
    %837 = vmatprep.subr.bf16.mxu0 0
    %838 = vmatpush1.bf16.msra.mxu0 %v429
    %839 = vmatprep.subr.bf16.mxu0 0
    %840 = vmatpush1.bf16.msra.mxu0 %v430
    %841 = vmatprep.subr.bf16.mxu0 0
    %842 = vmatpush1.bf16.msra.mxu0 0
    %843 = vmatprep.subr.bf16.mxu0 0
    %844 = vmatpush1.bf16.msra.mxu0 0
    %845 = vmatprep.subr.bf16.mxu0 0
    %846 = vmatpush1.bf16.msra.mxu0 0
    %847 = vmatprep.subr.bf16.mxu0 0
    %848 = vmatpush1.bf16.msra.mxu0 0
    %849 = vmatprep.subr.bf16.mxu0 0
    %850 = vmatpush1.bf16.msra.mxu0 0
    %851 = vmatprep.subr.bf16.mxu0 0
    %852 = vmatpush1.bf16.msra.mxu0 0
    %853 = vmatprep.subr.bf16.mxu0 0
    %854 = vmatpush1.bf16.msra.mxu0 0
    %855 = vmatprep.subr.bf16.mxu0 0
    %856 = vmatpush1.bf16.msra.mxu0 0
    %857 = vmatprep.subr.bf16.mxu0 0
    %858 = vmatpush1.bf16.msra.mxu0 0
    %859 = vmatprep.subr.bf16.mxu0 0
    %860 = vmatpush1.bf16.msra.mxu0 0
    %861 = vmatprep.subr.bf16.mxu0 0
    %862 = vmatpush1.bf16.msra.mxu0 0
    %863 = vmatprep.subr.bf16.mxu0 0
    %864 = vmatpush1.bf16.msra.mxu0 0
    %865 = vmatprep.subr.bf16.mxu0 0
    %866 = vmatpush1.bf16.msra.mxu0 0
    %867 = vmatprep.subr.bf16.mxu0 0
    %868 = vmatpush1.bf16.msra.mxu0 0
    %869 = vmatprep.mubr.bf16.mxu0 0
    %870 = vmatmul.mubr.bf16.gmra.mrb[0].mxu0 %v835
    %v871 = vpop.f32.mrb[0].mxu0
    %v872 = vadd.f32 0.0, %v871
    %v873 = vpop.f32.mrb[0].mxu0
    %v874 = vpop.f32.mrb[0].mxu0
    %v875 = vpop.f32.mrb[0].mxu0
    %876 = vdwg.mxu0
    %v877 = vadd.f32 %v829, %v872
    %v878 = vxor.u32 %v877, 2147483648
    %v879 = vmul.f32 %v878, 1.442695
    %v880 = vpow.pop %v879
    %v881 = vadd.f32 %v880, 1.0
    %v882 = vrcp.pop %v881
    %v883 = vmul.f32 1.0, %v882
    %v884 = vtanh.pop %v877
    %v885 = vmul.f32 %v883, %v815
    %887 = vrot.lane.b32.xlu0 %v884, 64
    %v888 = vpop.permute.xlu0 %887
    %v890 = vmul.f32 %v883, %v888
    %892 = vrot.lane.b32.xlu0 %v890, 32
    %v893 = vpop.permute.xlu0 %892
    %v895 = vadd.f32 %v885, %v893
    %v896 = vtanh.pop %v895
    %898 = vrot.lane.b32.xlu0 %v896, 64
    %v899 = vpop.permute.xlu0 %898
    %v901 = vmul.f32 %v883, %v899
    %903 = vrot.lane.b32.xlu0 %v901, 32
    %v904 = vpop.permute.xlu0 %903
    %s906 = scalar_lea.vmem [#allocation3], 10
    %907 = vst.msk [vmem:[%s906] sm:$0x3] %vm506, %v904
    %s908 = scalar_lea.vmem [#allocation2], 12
    %v909 = vld [vmem:[%s908] sm:$0x3]
    %v910 = vpack.c.bf16 %v901, %v901
    %912 = vrot.lane.b32.xlu0 %v910, 32
    %v913 = vpop.permute.xlu0 %912
    %v915 = vsel %vm433, %v913, 0
    %917 = vmatprep.subr.bf16.mxu0 0
    %918 = vmatpush1.bf16.msra.mxu0 %v429
    %919 = vmatprep.subr.bf16.mxu0 0
    %920 = vmatpush1.bf16.msra.mxu0 %v430
    %921 = vmatprep.subr.bf16.mxu0 0
    %922 = vmatpush1.bf16.msra.mxu0 0
    %923 = vmatprep.subr.bf16.mxu0 0
    %924 = vmatpush1.bf16.msra.mxu0 0
    %925 = vmatprep.subr.bf16.mxu0 0
    %926 = vmatpush1.bf16.msra.mxu0 0
    %927 = vmatprep.subr.bf16.mxu0 0
    %928 = vmatpush1.bf16.msra.mxu0 0
    %929 = vmatprep.subr.bf16.mxu0 0
    %930 = vmatpush1.bf16.msra.mxu0 0
    %931 = vmatprep.subr.bf16.mxu0 0
    %932 = vmatpush1.bf16.msra.mxu0 0
    %933 = vmatprep.subr.bf16.mxu0 0
    %934 = vmatpush1.bf16.msra.mxu0 0
    %935 = vmatprep.subr.bf16.mxu0 0
    %936 = vmatpush1.bf16.msra.mxu0 0
    %937 = vmatprep.subr.bf16.mxu0 0
    %938 = vmatpush1.bf16.msra.mxu0 0
    %939 = vmatprep.subr.bf16.mxu0 0
    %940 = vmatpush1.bf16.msra.mxu0 0
    %941 = vmatprep.subr.bf16.mxu0 0
    %942 = vmatpush1.bf16.msra.mxu0 0
    %943 = vmatprep.subr.bf16.mxu0 0
    %944 = vmatpush1.bf16.msra.mxu0 0
    %945 = vmatprep.subr.bf16.mxu0 0
    %946 = vmatpush1.bf16.msra.mxu0 0
    %947 = vmatprep.subr.bf16.mxu0 0
    %948 = vmatpush1.bf16.msra.mxu0 0
    %949 = vmatprep.mubr.bf16.mxu0 0
    %950 = vmatmul.mubr.bf16.gmra.mrb[0].mxu0 %v915
    %v951 = vpop.f32.mrb[0].mxu0
    %v952 = vadd.f32 0.0, %v951
    %v953 = vpop.f32.mrb[0].mxu0
    %v954 = vpop.f32.mrb[0].mxu0
    %v955 = vpop.f32.mrb[0].mxu0
    %956 = vdwg.mxu0
    %v957 = vadd.f32 %v909, %v952
    %v958 = vxor.u32 %v957, 2147483648
    %v959 = vmul.f32 %v958, 1.442695
    %v960 = vpow.pop %v959
    %v961 = vadd.f32 %v960, 1.0
    %v962 = vrcp.pop %v961
    %v963 = vmul.f32 1.0, %v962
    %v964 = vtanh.pop %v957
    %v965 = vmul.f32 %v963, %v895
    %967 = vrot.lane.b32.xlu0 %v964, 64
    %v968 = vpop.permute.xlu0 %967
    %v970 = vmul.f32 %v963, %v968
    %972 = vrot.lane.b32.xlu0 %v970, 32
    %v973 = vpop.permute.xlu0 %972
    %v975 = vadd.f32 %v965, %v973
    %v976 = vtanh.pop %v975
    %978 = vrot.lane.b32.xlu0 %v976, 64
    %v979 = vpop.permute.xlu0 %978
    %v981 = vmul.f32 %v963, %v979
    %983 = vrot.lane.b32.xlu0 %v981, 32
    %v984 = vpop.permute.xlu0 %983
    %s986 = scalar_lea.vmem [#allocation3], 12
    %987 = vst.msk [vmem:[%s986] sm:$0x3] %vm506, %v984
    %s988 = scalar_lea.vmem [#allocation2], 14
    %v989 = vld [vmem:[%s988] sm:$0x3]
    %v990 = vpack.c.bf16 %v981, %v981
    %992 = vrot.lane.b32.xlu0 %v990, 32
    %v993 = vpop.permute.xlu0 %992
    %v995 = vsel %vm433, %v993, 0
    %997 = vmatprep.subr.bf16.mxu0 0
    %998 = vmatpush1.bf16.msra.mxu0 %v429
    %999 = vmatprep.subr.bf16.mxu0 0
    %1000 = vmatpush1.bf16.msra.mxu0 %v430
    %1001 = vmatprep.subr.bf16.mxu0 0
    %1002 = vmatpush1.bf16.msra.mxu0 0
    %1003 = vmatprep.subr.bf16.mxu0 0
    %1004 = vmatpush1.bf16.msra.mxu0 0
    %1005 = vmatprep.subr.bf16.mxu0 0
    %1006 = vmatpush1.bf16.msra.mxu0 0
    %1007 = vmatprep.subr.bf16.mxu0 0
    %1008 = vmatpush1.bf16.msra.mxu0 0
    %1009 = vmatprep.subr.bf16.mxu0 0
    %1010 = vmatpush1.bf16.msra.mxu0 0
    %1011 = vmatprep.subr.bf16.mxu0 0
    %1012 = vmatpush1.bf16.msra.mxu0 0
    %1013 = vmatprep.subr.bf16.mxu0 0
    %1014 = vmatpush1.bf16.msra.mxu0 0
    %1015 = vmatprep.subr.bf16.mxu0 0
    %1016 = vmatpush1.bf16.msra.mxu0 0
    %1017 = vmatprep.subr.bf16.mxu0 0
    %1018 = vmatpush1.bf16.msra.mxu0 0
    %1019 = vmatprep.subr.bf16.mxu0 0
    %1020 = vmatpush1.bf16.msra.mxu0 0
    %1021 = vmatprep.subr.bf16.mxu0 0
    %1022 = vmatpush1.bf16.msra.mxu0 0
    %1023 = vmatprep.subr.bf16.mxu0 0
    %1024 = vmatpush1.bf16.msra.mxu0 0
    %1025 = vmatprep.subr.bf16.mxu0 0
    %1026 = vmatpush1.bf16.msra.mxu0 0
    %1027 = vmatprep.subr.bf16.mxu0 0
    %1028 = vmatpush1.bf16.msra.mxu0 0
    %1029 = vmatprep.mubr.bf16.mxu0 0
    %1030 = vmatmul.mubr.bf16.gmra.mrb[0].mxu0 %v995
    %v1031 = vpop.f32.mrb[0].mxu0
    %v1032 = vadd.f32 0.0, %v1031
    %v1033 = vpop.f32.mrb[0].mxu0
    %v1034 = vpop.f32.mrb[0].mxu0
    %v1035 = vpop.f32.mrb[0].mxu0
    %1036 = vdwg.mxu0
    %v1037 = vadd.f32 %v989, %v1032
    %v1038 = vxor.u32 %v1037, 2147483648
    %v1039 = vmul.f32 %v1038, 1.442695
    %v1040 = vpow.pop %v1039
    %v1041 = vadd.f32 %v1040, 1.0
    %v1042 = vrcp.pop %v1041
    %v1043 = vmul.f32 1.0, %v1042
    %v1044 = vtanh.pop %v1037
    %v1045 = vmul.f32 %v1043, %v975
    %1047 = vrot.lane.b32.xlu0 %v1044, 64
    %v1048 = vpop.permute.xlu0 %1047
    %v1050 = vmul.f32 %v1043, %v1048
    %1052 = vrot.lane.b32.xlu0 %v1050, 32
    %v1053 = vpop.permute.xlu0 %1052
    %v1055 = vadd.f32 %v1045, %v1053
    %v1056 = vtanh.pop %v1055
    %1058 = vrot.lane.b32.xlu0 %v1056, 64
    %v1059 = vpop.permute.xlu0 %1058
    %v1061 = vmul.f32 %v1043, %v1059
    %1063 = vrot.lane.b32.xlu0 %v1061, 32
    %v1064 = vpop.permute.xlu0 %1063
    %s1066 = scalar_lea.vmem [#allocation3], 14
    %1067 = vst.msk [vmem:[%s1066] sm:$0x3] %vm506, %v1064
    %v1068 = vld [vmem:[#allocation3] sm:$0x3]
    %v1069 = vld [vmem:[#allocation3 + $0x2] sm:$0x3]
    %v1070 = vld [vmem:[#allocation3 + $0x4] sm:$0x3]
    %v1071 = vld [vmem:[#allocation3 + $0x6] sm:$0x3]
    %v1072 = vld [vmem:[#allocation3 + $0x8] sm:$0x3]
    %v1073 = vld [vmem:[#allocation3 + $0xa] sm:$0x3]
    %v1074 = vld [vmem:[#allocation3 + $0xc] sm:$0x3]
    %v1075 = vld [vmem:[#allocation3 + $0xe] sm:$0x3]
    %vm1076 = vcmp.lt.s32.totalorder %v116, 16
    %v1077 = vsel %vm1076, %v1068, %v1075
    %v1078 = vsel %vm1076, %v1069, %v1074
    %v1079 = vsel %vm1076, %v1070, %v1073
    %v1080 = vsel %vm1076, %v1071, %v1072
    %v1081 = vsel %vm1076, %v1072, %v1071
    %v1082 = vsel %vm1076, %v1073, %v1070
    %v1083 = vsel %vm1076, %v1074, %v1069
    %v1084 = vsel %vm1076, %v1075, %v1068
    %v1085 = vpack.c.bf16 %v1077, %v1077
    %v1086 = vpack.c.bf16 %v1078, %v1078
    %v1087 = vpack.c.bf16 %v1079, %v1079
    %v1088 = vpack.c.bf16 %v1080, %v1080
    %v1089 = vpack.c.bf16 %v1081, %v1081
    %v1090 = vpack.c.bf16 %v1082, %v1082
    %v1091 = vpack.c.bf16 %v1083, %v1083
    %v1092 = vpack.c.bf16 %v1084, %v1084
    %v1093 = vld [vmem:[%s4] sm:$0xf]
    %v1094 = vld [vmem:[%s4 + $0x4] sm:$0xf]
    %v1095 = vld [vmem:[%s4 + $0x8] sm:$0xf]
    %v1096 = vld [vmem:[%s4 + $0xc] sm:$0xf]
    %v1097 = vld [vmem:[%s5] sm:$0x1]
    %v1099 = vlaneseq
    %v1100 = vshrl.u32 %v1099, 7
    %v1101 = vsub.s32 0, %v1100
    %v1102 = vrot.slane %v1097, %v1101
    %v1112 = vcombine.low %v1085, %v1086
    %v1113 = vcombine.low %v1087, %v1088
    %v1114 = vcombine.low %v1089, %v1090
    %v1115 = vcombine.low %v1091, %v1092
    %v1117 = vunpack.c.l.s4 1966171168
    %v1118 = vunpack.c.0.s8 %v1117
    %v1119 = vlaneseq
    %v1120 = vshrl.u32 %v1119, 7
    %v1121 = vsub.s32 %v1118, %v1120
    %v1122 = vrot.slane %v1112, %v1121
    %v1124 = vunpack.c.l.s4 1966171168
    %v1125 = vunpack.c.0.s8 %v1124
    %v1126 = vlaneseq
    %v1127 = vshrl.u32 %v1126, 7
    %v1128 = vsub.s32 %v1125, %v1127
    %v1129 = vrot.slane %v1113, %v1128
    %v1131 = vunpack.c.l.s4 1966171168
    %v1132 = vunpack.c.0.s8 %v1131
    %v1133 = vlaneseq
    %v1134 = vshrl.u32 %v1133, 7
    %v1135 = vsub.s32 %v1132, %v1134
    %v1136 = vrot.slane %v1114, %v1135
    %v1138 = vunpack.c.l.s4 1966171168
    %v1139 = vunpack.c.0.s8 %v1138
    %v1140 = vlaneseq
    %v1141 = vshrl.u32 %v1140, 7
    %v1142 = vsub.s32 %v1139, %v1141
    %v1143 = vrot.slane %v1115, %v1142
    %v1144 = vcombine.low %v1122, %v1129
    %v1145 = vcombine.low %v1136, %v1143
    %v1147 = vunpack.c.l.s4 1966171168
    %v1148 = vunpack.c.0.s8 %v1147
    %v1149 = vlaneseq
    %v1150 = vshrl.u32 %v1149, 7
    %v1151 = vsub.s32 %v1148, %v1150
    %v1152 = vrot.slane %v1144, %v1151
    %v1154 = vunpack.c.l.s4 1966171168
    %v1155 = vunpack.c.0.s8 %v1154
    %v1156 = vlaneseq
    %v1157 = vshrl.u32 %v1156, 7
    %v1158 = vsub.s32 %v1155, %v1157
    %v1159 = vrot.slane %v1145, %v1158
    %v1160 = vcombine.low %v1152, %v1159
    %v1165 = vunpack.c.l.b16 %v1093
    %v1166 = vunpack.c.l.b16 %v1094
    %v1167 = vunpack.c.l.b16 %v1095
    %v1168 = vunpack.c.l.b16 %v1096
    %v1169 = vpack.c.b16 %v1166, %v1165
    %v1170 = vpack.c.b16 %v1168, %v1167
    %v1174 = vsel %vm433, %v1160, 0
    %1176 = vmatprep.subr.bf16.mxu0 0
    %1177 = vmatpush1.bf16.msra.mxu0 %v1169
    %1178 = vmatprep.subr.bf16.mxu0 0
    %1179 = vmatpush1.bf16.msra.mxu0 %v1170
    %1180 = vmatprep.subr.bf16.mxu0 0
    %1181 = vmatpush1.bf16.msra.mxu0 0
    %1182 = vmatprep.subr.bf16.mxu0 0
    %1183 = vmatpush1.bf16.msra.mxu0 0
    %1184 = vmatprep.subr.bf16.mxu0 0
    %1185 = vmatpush1.bf16.msra.mxu0 0
    %1186 = vmatprep.subr.bf16.mxu0 0
    %1187 = vmatpush1.bf16.msra.mxu0 0
    %1188 = vmatprep.subr.bf16.mxu0 0
    %1189 = vmatpush1.bf16.msra.mxu0 0
    %1190 = vmatprep.subr.bf16.mxu0 0
    %1191 = vmatpush1.bf16.msra.mxu0 0
    %1192 = vmatprep.subr.bf16.mxu0 0
    %1193 = vmatpush1.bf16.msra.mxu0 0
    %1194 = vmatprep.subr.bf16.mxu0 0
    %1195 = vmatpush1.bf16.msra.mxu0 0
    %1196 = vmatprep.subr.bf16.mxu0 0
    %1197 = vmatpush1.bf16.msra.mxu0 0
    %1198 = vmatprep.subr.bf16.mxu0 0
    %1199 = vmatpush1.bf16.msra.mxu0 0
    %1200 = vmatprep.subr.bf16.mxu0 0
    %1201 = vmatpush1.bf16.msra.mxu0 0
    %1202 = vmatprep.subr.bf16.mxu0 0
    %1203 = vmatpush1.bf16.msra.mxu0 0
    %1204 = vmatprep.subr.bf16.mxu0 0
    %1205 = vmatpush1.bf16.msra.mxu0 0
    %1206 = vmatprep.subr.bf16.mxu0 0
    %1207 = vmatpush1.bf16.msra.mxu0 0
    %1208 = vmatprep.mubr.bf16.mxu0 0
    %1209 = vmatmul.mubr.bf16.gmra.mrb[0].mxu0 %v1174
    %v1210 = vpop.f32.mrb[0].mxu0
    %v1211 = vadd.f32 %v1102, %v1210
    %v1212 = vpop.f32.mrb[0].mxu0
    %v1213 = vpop.f32.mrb[0].mxu0
    %v1214 = vadd.f32 %v1102, %v1213
    %v1215 = vpop.f32.mrb[0].mxu0
    %1216 = vdwg.mxu0
    %v1217 = vtanh.pop %v1211
    %v1218 = vtanh.pop %v1214
    %v1219 = vld [vmem:[%s6] sm:$0x1]
    %v1221 = vlaneseq
    %v1222 = vshrl.u32 %v1221, 7
    %v1223 = vsub.s32 0, %v1222
    %v1224 = vrot.slane %v1219, %v1223
    %v1226 = vmul.f32 %v1217, %v1224
    %v1227 = vmul.f32 %v1218, %v1224
    %vm1228 = vcmask 130048
    %v1229 = vsel %vm1228, %v1226, 0.0
    %1230 = vadd.xlane.f32.xlu0 %v1229
    %v1231 = vpop.xlane.xlu0 %1230
    %v1232 = vsel %vm1228, %v1227, 0.0
    %1233 = vadd.xlane.f32.xlu0 %v1232
    %v1234 = vpop.xlane.xlu0 %1233
    %v1235 = vld [vmem:[#allocation6] sm:$0x1]
    %v1237 = vlaneseq
    %v1238 = vshrl.u32 %v1237, 7
    %v1239 = vsub.s32 0, %v1238
    %v1240 = vrot.slane %v1235, %v1239
    %v1242 = vadd.f32 %v1231, %v1240
    %v1243 = vadd.f32 %v1234, %v1240
    %v1246 = vcombine.high %v1242, %v1242
    %v1248 = vunpack.c.l.s4 1983009808
    %v1249 = vunpack.c.0.s8 %v1248
    %v1250 = vlaneseq
    %v1251 = vshrl.u32 %v1250, 7
    %v1252 = vsub.s32 %v1249, %v1251
    %v1253 = vrot.slane %v1242, %v1252
    %v1255 = vunpack.c.l.s4 1983009808
    %v1256 = vunpack.c.0.s8 %v1255
    %v1257 = vlaneseq
    %v1258 = vshrl.u32 %v1257, 7
    %v1259 = vsub.s32 %v1256, %v1258
    %v1260 = vrot.slane %v1246, %v1259
    %v1261 = vcombine.high %v1253, %v1253
    %v1262 = vcombine.high %v1260, %v1260
    %v1263 = vcombine.high %v1243, %v1243
    %v1265 = vunpack.c.l.s4 1983009808
    %v1266 = vunpack.c.0.s8 %v1265
    %v1267 = vlaneseq
    %v1268 = vshrl.u32 %v1267, 7
    %v1269 = vsub.s32 %v1266, %v1268
    %v1270 = vrot.slane %v1243, %v1269
    %v1272 = vunpack.c.l.s4 1983009808
    %v1273 = vunpack.c.0.s8 %v1272
    %v1274 = vlaneseq
    %v1275 = vshrl.u32 %v1274, 7
    %v1276 = vsub.s32 %v1273, %v1275
    %v1277 = vrot.slane %v1263, %v1276
    %v1278 = vcombine.high %v1270, %v1270
    %v1279 = vcombine.high %v1277, %v1277
    %vm1288 = vcmask 1024
    %v1289 = vsel %vm1288, %v1253, -inf
    %v1290 = vsel %vm1288, %v1261, -inf
    %v1291 = vsel %vm1288, %v1260, -inf
    %v1292 = vsel %vm1288, %v1262, -inf
    %v1293 = vsel %vm1288, %v1270, -inf
    %v1294 = vmax.f32 %v1289, %v1293
    %v1295 = vsel %vm1288, %v1278, -inf
    %v1296 = vmax.f32 %v1290, %v1295
    %v1297 = vsel %vm1288, %v1277, -inf
    %v1298 = vmax.f32 %v1291, %v1297
    %v1299 = vsel %vm1288, %v1279, -inf
    %v1300 = vmax.f32 %v1292, %v1299
    %v1301 = vmax.f32 %v1294, %v1296
    %v1302 = vmax.f32 %v1298, %v1300
    %v1303 = vmax.f32 %v1301, %v1302
    %v1304 = vsub.f32 %v1253, %v1303
    %v1305 = vsub.f32 %v1261, %v1303
    %v1306 = vsub.f32 %v1260, %v1303
    %v1307 = vsub.f32 %v1262, %v1303
    %v1308 = vsub.f32 %v1270, %v1303
    %v1309 = vsub.f32 %v1278, %v1303
    %v1310 = vsub.f32 %v1277, %v1303
    %v1311 = vsub.f32 %v1279, %v1303
    %v1312 = vmul.f32 %v1304, 1.442695
    %v1313 = vpow.pop %v1312
    %v1314 = vmul.f32 %v1305, 1.442695
    %v1315 = vpow.pop %v1314
    %v1316 = vmul.f32 %v1306, 1.442695
    %v1317 = vpow.pop %v1316
    %v1318 = vmul.f32 %v1307, 1.442695
    %v1319 = vpow.pop %v1318
    %v1320 = vmul.f32 %v1308, 1.442695
    %v1321 = vpow.pop %v1320
    %v1322 = vmul.f32 %v1309, 1.442695
    %v1323 = vpow.pop %v1322
    %v1324 = vmul.f32 %v1310, 1.442695
    %v1325 = vpow.pop %v1324
    %v1326 = vmul.f32 %v1311, 1.442695
    %v1327 = vpow.pop %v1326
    %v1328 = vsel %vm1288, %v1313, 0.0
    %v1329 = vsel %vm1288, %v1315, 0.0
    %v1330 = vadd.f32 %v1328, %v1329
    %v1331 = vsel %vm1288, %v1317, 0.0
    %v1332 = vadd.f32 %v1330, %v1331
    %v1333 = vsel %vm1288, %v1319, 0.0
    %v1334 = vadd.f32 %v1332, %v1333
    %v1335 = vsel %vm1288, %v1321, 0.0
    %v1336 = vadd.f32 %v1334, %v1335
    %v1337 = vsel %vm1288, %v1323, 0.0
    %v1338 = vadd.f32 %v1336, %v1337
    %v1339 = vsel %vm1288, %v1325, 0.0
    %v1340 = vadd.f32 %v1338, %v1339
    %v1341 = vsel %vm1288, %v1327, 0.0
    %v1342 = vadd.f32 %v1340, %v1341
    %v1343 = vrcp.pop %v1342
    %v1344 = vmul.f32 %v1313, %v1343
    %v1345 = vmul.f32 %v1315, %v1343
    %v1346 = vmul.f32 %v1317, %v1343
    %v1347 = vmul.f32 %v1319, %v1343
    %v1348 = vmul.f32 %v1321, %v1343
    %v1349 = vmul.f32 %v1323, %v1343
    %v1350 = vmul.f32 %v1325, %v1343
    %v1351 = vmul.f32 %v1327, %v1343
    %1353 = vset.pattern.permute.xlu0 0
    %1354 = vperm.xlu0 %1353, %v1344
    %v1355 = vpop.permute.xlu0 %1354
    %v1358 = vunpack.c.l.s4 269488144
    %v1359 = vunpack.c.0.s8 %v1358
    %v1360 = vlaneseq
    %v1361 = vshrl.u32 %v1360, 7
    %v1362 = vsub.s32 %v1359, %v1361
    %v1363 = vrot.slane %v1355, %v1362
    %1365 = vset.pattern.permute.xlu0 0
    %1366 = vperm.xlu0 %1365, %v1345
    %v1367 = vpop.permute.xlu0 %1366
    %v1370 = vunpack.c.l.s4 269488144
    %v1371 = vunpack.c.0.s8 %v1370
    %v1372 = vlaneseq
    %v1373 = vshrl.u32 %v1372, 7
    %v1374 = vsub.s32 %v1371, %v1373
    %v1375 = vrot.slane %v1367, %v1374
    %1377 = vset.pattern.permute.xlu0 0
    %1378 = vperm.xlu0 %1377, %v1346
    %v1379 = vpop.permute.xlu0 %1378
    %v1382 = vunpack.c.l.s4 269488144
    %v1383 = vunpack.c.0.s8 %v1382
    %v1384 = vlaneseq
    %v1385 = vshrl.u32 %v1384, 7
    %v1386 = vsub.s32 %v1383, %v1385
    %v1387 = vrot.slane %v1379, %v1386
    %1389 = vset.pattern.permute.xlu0 0
    %1390 = vperm.xlu0 %1389, %v1347
    %v1391 = vpop.permute.xlu0 %1390
    %v1394 = vunpack.c.l.s4 269488144
    %v1395 = vunpack.c.0.s8 %v1394
    %v1396 = vlaneseq
    %v1397 = vshrl.u32 %v1396, 7
    %v1398 = vsub.s32 %v1395, %v1397
    %v1399 = vrot.slane %v1391, %v1398
    %1401 = vset.pattern.permute.xlu0 0
    %1402 = vperm.xlu0 %1401, %v1348
    %v1403 = vpop.permute.xlu0 %1402
    %v1406 = vunpack.c.l.s4 269488144
    %v1407 = vunpack.c.0.s8 %v1406
    %v1408 = vlaneseq
    %v1409 = vshrl.u32 %v1408, 7
    %v1410 = vsub.s32 %v1407, %v1409
    %v1411 = vrot.slane %v1403, %v1410
    %1413 = vset.pattern.permute.xlu0 0
    %1414 = vperm.xlu0 %1413, %v1349
    %v1415 = vpop.permute.xlu0 %1414
    %v1418 = vunpack.c.l.s4 269488144
    %v1419 = vunpack.c.0.s8 %v1418
    %v1420 = vlaneseq
    %v1421 = vshrl.u32 %v1420, 7
    %v1422 = vsub.s32 %v1419, %v1421
    %v1423 = vrot.slane %v1415, %v1422
    %1425 = vset.pattern.permute.xlu0 0
    %1426 = vperm.xlu0 %1425, %v1350
    %v1427 = vpop.permute.xlu0 %1426
    %v1430 = vunpack.c.l.s4 269488144
    %v1431 = vunpack.c.0.s8 %v1430
    %v1432 = vlaneseq
    %v1433 = vshrl.u32 %v1432, 7
    %v1434 = vsub.s32 %v1431, %v1433
    %v1435 = vrot.slane %v1427, %v1434
    %1437 = vset.pattern.permute.xlu0 0
    %1438 = vperm.xlu0 %1437, %v1351
    %v1439 = vpop.permute.xlu0 %1438
    %v1442 = vunpack.c.l.s4 269488144
    %v1443 = vunpack.c.0.s8 %v1442
    %v1444 = vlaneseq
    %v1445 = vshrl.u32 %v1444, 7
    %v1446 = vsub.s32 %v1443, %v1445
    %v1447 = vrot.slane %v1439, %v1446
    %v1448 = vmul.f32 %v1077, %v1363
    %v1449 = vmul.f32 %v1078, %v1375
    %v1450 = vmul.f32 %v1079, %v1387
    %v1451 = vmul.f32 %v1080, %v1399
    %v1452 = vmul.f32 %v1081, %v1411
    %v1453 = vmul.f32 %v1082, %v1423
    %v1454 = vmul.f32 %v1083, %v1435
    %v1455 = vmul.f32 %v1084, %v1447
    %v1456 = vsel %vm506, %v1448, 0.0
    %v1457 = vsel %vm506, %v1449, 0.0
    %v1458 = vadd.f32 %v1456, %v1457
    %v1459 = vsel %vm506, %v1450, 0.0
    %v1460 = vadd.f32 %v1458, %v1459
    %v1461 = vsel %vm506, %v1451, 0.0
    %v1462 = vadd.f32 %v1460, %v1461
    %v1463 = vsel %vm506, %v1452, 0.0
    %v1464 = vadd.f32 %v1462, %v1463
    %v1465 = vsel %vm506, %v1453, 0.0
    %v1466 = vadd.f32 %v1464, %v1465
    %v1467 = vsel %vm506, %v1454, 0.0
    %v1468 = vadd.f32 %v1466, %v1467
    %v1469 = vsel %vm506, %v1455, 0.0
    %v1470 = vadd.f32 %v1468, %v1469
    %v1471 = vld [vmem:[%s9] sm:$0x1]
    %vm1472 = vcmask 253952
    %1473 = vst.msk [vmem:[#allocation4] sm:$0x1] %vm1472, 0
    %s1474 = scalar_lea.vmem [#allocation4], 9
    %1475 = vst.msk [vmem:[%s1474] sm:$0x1] %vm1472, 0
    %s1476 = scalar_lea.vmem [#allocation4], 1
    %1477 = vst.msk [vmem:[%s1476] sm:$0x1] %vm1472, %v1085
    %1478 = vst.msk [vmem:[%s1476 + $0x1] sm:$0x1] %vm1472, %v1086
    %1479 = vst.msk [vmem:[%s1476 + $0x2] sm:$0x1] %vm1472, %v1087
    %1480 = vst.msk [vmem:[%s1476 + $0x3] sm:$0x1] %vm1472, %v1088
    %1481 = vst.msk [vmem:[%s1476 + $0x4] sm:$0x1] %vm1472, %v1089
    %1482 = vst.msk [vmem:[%s1476 + $0x5] sm:$0x1] %vm1472, %v1090
    %1483 = vst.msk [vmem:[%s1476 + $0x6] sm:$0x1] %vm1472, %v1091
    %1484 = vst.msk [vmem:[%s1476 + $0x7] sm:$0x1] %vm1472, %v1092
    %v1485 = vld [vmem:[#allocation4] sm:$0x1]
    %v1486 = vld [vmem:[#allocation4 + $0x1] sm:$0x1]
    %v1487 = vld [vmem:[#allocation4 + $0x2] sm:$0x1]
    %v1488 = vld [vmem:[#allocation4 + $0x3] sm:$0x1]
    %v1489 = vld [vmem:[#allocation4 + $0x4] sm:$0x1]
    %v1490 = vld [vmem:[#allocation4 + $0x5] sm:$0x1]
    %v1491 = vld [vmem:[#allocation4 + $0x6] sm:$0x1]
    %v1492 = vld [vmem:[#allocation4 + $0x7] sm:$0x1]
    %v1493 = vld [vmem:[#allocation10] sm:$0xf]
    %v1494 = vld [vmem:[#allocation10 + $0x4] sm:$0xf]
    %v1495 = vld [vmem:[#allocation10 + $0x8] sm:$0xf]
    %v1496 = vld [vmem:[#allocation10 + $0xc] sm:$0xf]
    %v1505 = vcombine.low %v1485, %v1486
    %v1506 = vcombine.low %v1487, %v1488
    %v1507 = vcombine.low %v1489, %v1490
    %v1508 = vcombine.low %v1491, %v1492
    %v1510 = vunpack.c.l.s4 1966171168
    %v1511 = vunpack.c.0.s8 %v1510
    %v1512 = vlaneseq
    %v1513 = vshrl.u32 %v1512, 7
    %v1514 = vsub.s32 %v1511, %v1513
    %v1515 = vrot.slane %v1505, %v1514
    %v1517 = vunpack.c.l.s4 1966171168
    %v1518 = vunpack.c.0.s8 %v1517
    %v1519 = vlaneseq
    %v1520 = vshrl.u32 %v1519, 7
    %v1521 = vsub.s32 %v1518, %v1520
    %v1522 = vrot.slane %v1506, %v1521
    %v1524 = vunpack.c.l.s4 1966171168
    %v1525 = vunpack.c.0.s8 %v1524
    %v1526 = vlaneseq
    %v1527 = vshrl.u32 %v1526, 7
    %v1528 = vsub.s32 %v1525, %v1527
    %v1529 = vrot.slane %v1507, %v1528
    %v1531 = vunpack.c.l.s4 1966171168
    %v1532 = vunpack.c.0.s8 %v1531
    %v1533 = vlaneseq
    %v1534 = vshrl.u32 %v1533, 7
    %v1535 = vsub.s32 %v1532, %v1534
    %v1536 = vrot.slane %v1508, %v1535
    %v1537 = vcombine.low %v1515, %v1522
    %v1538 = vcombine.low %v1529, %v1536
    %v1540 = vunpack.c.l.s4 1966171168
    %v1541 = vunpack.c.0.s8 %v1540
    %v1542 = vlaneseq
    %v1543 = vshrl.u32 %v1542, 7
    %v1544 = vsub.s32 %v1541, %v1543
    %v1545 = vrot.slane %v1537, %v1544
    %v1547 = vunpack.c.l.s4 1966171168
    %v1548 = vunpack.c.0.s8 %v1547
    %v1549 = vlaneseq
    %v1550 = vshrl.u32 %v1549, 7
    %v1551 = vsub.s32 %v1548, %v1550
    %v1552 = vrot.slane %v1538, %v1551
    %v1553 = vcombine.low %v1545, %v1552
    %v1558 = vunpack.c.l.b16 %v1493
    %v1559 = vunpack.c.l.b16 %v1494
    %v1560 = vunpack.c.l.b16 %v1495
    %v1561 = vunpack.c.l.b16 %v1496
    %v1562 = vpack.c.b16 %v1559, %v1558
    %v1563 = vpack.c.b16 %v1561, %v1560
    %v1567 = vsel %vm433, %v1553, 0
    %1569 = vmatprep.subr.bf16.mxu0 0
    %1570 = vmatpush1.bf16.msra.mxu0 %v1562
    %1571 = vmatprep.subr.bf16.mxu0 0
    %1572 = vmatpush1.bf16.msra.mxu0 %v1563
    %1573 = vmatprep.subr.bf16.mxu0 0
    %1574 = vmatpush1.bf16.msra.mxu0 0
    %1575 = vmatprep.subr.bf16.mxu0 0
    %1576 = vmatpush1.bf16.msra.mxu0 0
    %1577 = vmatprep.subr.bf16.mxu0 0
    %1578 = vmatpush1.bf16.msra.mxu0 0
    %1579 = vmatprep.subr.bf16.mxu0 0
    %1580 = vmatpush1.bf16.msra.mxu0 0
    %1581 = vmatprep.subr.bf16.mxu0 0
    %1582 = vmatpush1.bf16.msra.mxu0 0
    %1583 = vmatprep.subr.bf16.mxu0 0
    %1584 = vmatpush1.bf16.msra.mxu0 0
    %1585 = vmatprep.subr.bf16.mxu0 0
    %1586 = vmatpush1.bf16.msra.mxu0 0
    %1587 = vmatprep.subr.bf16.mxu0 0
    %1588 = vmatpush1.bf16.msra.mxu0 0
    %1589 = vmatprep.subr.bf16.mxu0 0
    %1590 = vmatpush1.bf16.msra.mxu0 0
    %1591 = vmatprep.subr.bf16.mxu0 0
    %1592 = vmatpush1.bf16.msra.mxu0 0
    %1593 = vmatprep.subr.bf16.mxu0 0
    %1594 = vmatpush1.bf16.msra.mxu0 0
    %1595 = vmatprep.subr.bf16.mxu0 0
    %1596 = vmatpush1.bf16.msra.mxu0 0
    %1597 = vmatprep.subr.bf16.mxu0 0
    %1598 = vmatpush1.bf16.msra.mxu0 0
    %1599 = vmatprep.subr.bf16.mxu0 0
    %1600 = vmatpush1.bf16.msra.mxu0 0
    %1601 = vmatprep.mubr.bf16.mxu0 0
    %1602 = vmatmul.mubr.bf16.gmra.mrb[0].mxu0 %v1567
    %v1603 = vpop.f32.mrb[0].mxu0
    %v1604 = vadd.f32 0.0, %v1603
    %v1605 = vpop.f32.mrb[0].mxu0
    %v1606 = vpop.f32.mrb[0].mxu0
    %v1607 = vadd.f32 0.0, %v1606
    %v1608 = vpop.f32.mrb[0].mxu0
    %1609 = vdwg.mxu0
    %v1611 = vlaneseq
    %v1612 = vshrl.u32 %v1611, 7
    %v1613 = vsub.s32 0, %v1612
    %v1614 = vrot.slane %v1471, %v1613
    %v1616 = vadd.f32 %v1614, %v1604
    %v1617 = vadd.f32 %v1614, %v1607
    %v1618 = vld [vmem:[%s1476] sm:$0x1]
    %v1619 = vld [vmem:[%s1476 + $0x1] sm:$0x1]
    %v1620 = vld [vmem:[%s1476 + $0x2] sm:$0x1]
    %v1621 = vld [vmem:[%s1476 + $0x3] sm:$0x1]
    %v1622 = vld [vmem:[%s1476 + $0x4] sm:$0x1]
    %v1623 = vld [vmem:[%s1476 + $0x5] sm:$0x1]
    %v1624 = vld [vmem:[%s1476 + $0x6] sm:$0x1]
    %v1625 = vld [vmem:[%s1476 + $0x7] sm:$0x1]
    %s1626 = scalar_lea.vmem [#allocation10], 16
    %v1627 = vld [vmem:[%s1626] sm:$0xf]
    %v1628 = vld [vmem:[%s1626 + $0x4] sm:$0xf]
    %v1629 = vld [vmem:[%s1626 + $0x8] sm:$0xf]
    %v1630 = vld [vmem:[%s1626 + $0xc] sm:$0xf]
    %v1639 = vcombine.low %v1618, %v1619
    %v1640 = vcombine.low %v1620, %v1621
    %v1641 = vcombine.low %v1622, %v1623
    %v1642 = vcombine.low %v1624, %v1625
    %v1644 = vunpack.c.l.s4 1966171168
    %v1645 = vunpack.c.0.s8 %v1644
    %v1646 = vlaneseq
    %v1647 = vshrl.u32 %v1646, 7
    %v1648 = vsub.s32 %v1645, %v1647
    %v1649 = vrot.slane %v1639, %v1648
    %v1651 = vunpack.c.l.s4 1966171168
    %v1652 = vunpack.c.0.s8 %v1651
    %v1653 = vlaneseq
    %v1654 = vshrl.u32 %v1653, 7
    %v1655 = vsub.s32 %v1652, %v1654
    %v1656 = vrot.slane %v1640, %v1655
    %v1658 = vunpack.c.l.s4 1966171168
    %v1659 = vunpack.c.0.s8 %v1658
    %v1660 = vlaneseq
    %v1661 = vshrl.u32 %v1660, 7
    %v1662 = vsub.s32 %v1659, %v1661
    %v1663 = vrot.slane %v1641, %v1662
    %v1665 = vunpack.c.l.s4 1966171168
    %v1666 = vunpack.c.0.s8 %v1665
    %v1667 = vlaneseq
    %v1668 = vshrl.u32 %v1667, 7
    %v1669 = vsub.s32 %v1666, %v1668
    %v1670 = vrot.slane %v1642, %v1669
    %v1671 = vcombine.low %v1649, %v1656
    %v1672 = vcombine.low %v1663, %v1670
    %v1674 = vunpack.c.l.s4 1966171168
    %v1675 = vunpack.c.0.s8 %v1674
    %v1676 = vlaneseq
    %v1677 = vshrl.u32 %v1676, 7
    %v1678 = vsub.s32 %v1675, %v1677
    %v1679 = vrot.slane %v1671, %v1678
    %v1681 = vunpack.c.l.s4 1966171168
    %v1682 = vunpack.c.0.s8 %v1681
    %v1683 = vlaneseq
    %v1684 = vshrl.u32 %v1683, 7
    %v1685 = vsub.s32 %v1682, %v1684
    %v1686 = vrot.slane %v1672, %v1685
    %v1687 = vcombine.low %v1679, %v1686
    %v1692 = vunpack.c.l.b16 %v1627
    %v1693 = vunpack.c.l.b16 %v1628
    %v1694 = vunpack.c.l.b16 %v1629
    %v1695 = vunpack.c.l.b16 %v1630
    %v1696 = vpack.c.b16 %v1693, %v1692
    %v1697 = vpack.c.b16 %v1695, %v1694
    %v1701 = vsel %vm433, %v1687, 0
    %1703 = vmatprep.subr.bf16.mxu0 0
    %1704 = vmatpush1.bf16.msra.mxu0 %v1696
    %1705 = vmatprep.subr.bf16.mxu0 0
    %1706 = vmatpush1.bf16.msra.mxu0 %v1697
    %1707 = vmatprep.subr.bf16.mxu0 0
    %1708 = vmatpush1.bf16.msra.mxu0 0
    %1709 = vmatprep.subr.bf16.mxu0 0
    %1710 = vmatpush1.bf16.msra.mxu0 0
    %1711 = vmatprep.subr.bf16.mxu0 0
    %1712 = vmatpush1.bf16.msra.mxu0 0
    %1713 = vmatprep.subr.bf16.mxu0 0
    %1714 = vmatpush1.bf16.msra.mxu0 0
    %1715 = vmatprep.subr.bf16.mxu0 0
    %1716 = vmatpush1.bf16.msra.mxu0 0
    %1717 = vmatprep.subr.bf16.mxu0 0
    %1718 = vmatpush1.bf16.msra.mxu0 0
    %1719 = vmatprep.subr.bf16.mxu0 0
    %1720 = vmatpush1.bf16.msra.mxu0 0
    %1721 = vmatprep.subr.bf16.mxu0 0
    %1722 = vmatpush1.bf16.msra.mxu0 0
    %1723 = vmatprep.subr.bf16.mxu0 0
    %1724 = vmatpush1.bf16.msra.mxu0 0
    %1725 = vmatprep.subr.bf16.mxu0 0
    %1726 = vmatpush1.bf16.msra.mxu0 0
    %1727 = vmatprep.subr.bf16.mxu0 0
    %1728 = vmatpush1.bf16.msra.mxu0 0
    %1729 = vmatprep.subr.bf16.mxu0 0
    %1730 = vmatpush1.bf16.msra.mxu0 0
    %1731 = vmatprep.subr.bf16.mxu0 0
    %1732 = vmatpush1.bf16.msra.mxu0 0
    %1733 = vmatprep.subr.bf16.mxu0 0
    %1734 = vmatpush1.bf16.msra.mxu0 0
    %1735 = vmatprep.mubr.bf16.mxu0 0
    %1736 = vmatmul.mubr.bf16.gmra.mrb[0].mxu0 %v1701
    %v1737 = vpop.f32.mrb[0].mxu0
    %v1738 = vadd.f32 0.0, %v1737
    %v1739 = vpop.f32.mrb[0].mxu0
    %v1740 = vpop.f32.mrb[0].mxu0
    %v1741 = vadd.f32 0.0, %v1740
    %v1742 = vpop.f32.mrb[0].mxu0
    %1743 = vdwg.mxu0
    %v1744 = vadd.f32 %v1616, %v1738
    %v1745 = vadd.f32 %v1617, %v1741
    %s1746 = scalar_lea.vmem [#allocation4], 2
    %v1747 = vld [vmem:[%s1746] sm:$0x1]
    %v1748 = vld [vmem:[%s1746 + $0x1] sm:$0x1]
    %v1749 = vld [vmem:[%s1746 + $0x2] sm:$0x1]
    %v1750 = vld [vmem:[%s1746 + $0x3] sm:$0x1]
    %v1751 = vld [vmem:[%s1746 + $0x4] sm:$0x1]
    %v1752 = vld [vmem:[%s1746 + $0x5] sm:$0x1]
    %v1753 = vld [vmem:[%s1746 + $0x6] sm:$0x1]
    %v1754 = vld [vmem:[%s1746 + $0x7] sm:$0x1]
    %s1755 = scalar_lea.vmem [#allocation10], 32
    %v1756 = vld [vmem:[%s1755] sm:$0xf]
    %v1757 = vld [vmem:[%s1755 + $0x4] sm:$0xf]
    %v1758 = vld [vmem:[%s1755 + $0x8] sm:$0xf]
    %v1759 = vld [vmem:[%s1755 + $0xc] sm:$0xf]
    %v1768 = vcombine.low %v1747, %v1748
    %v1769 = vcombine.low %v1749, %v1750
    %v1770 = vcombine.low %v1751, %v1752
    %v1771 = vcombine.low %v1753, %v1754
    %v1773 = vunpack.c.l.s4 1966171168
    %v1774 = vunpack.c.0.s8 %v1773
    %v1775 = vlaneseq
    %v1776 = vshrl.u32 %v1775, 7
    %v1777 = vsub.s32 %v1774, %v1776
    %v1778 = vrot.slane %v1768, %v1777
    %v1780 = vunpack.c.l.s4 1966171168
    %v1781 = vunpack.c.0.s8 %v1780
    %v1782 = vlaneseq
    %v1783 = vshrl.u32 %v1782, 7
    %v1784 = vsub.s32 %v1781, %v1783
    %v1785 = vrot.slane %v1769, %v1784
    %v1787 = vunpack.c.l.s4 1966171168
    %v1788 = vunpack.c.0.s8 %v1787
    %v1789 = vlaneseq
    %v1790 = vshrl.u32 %v1789, 7
    %v1791 = vsub.s32 %v1788, %v1790
    %v1792 = vrot.slane %v1770, %v1791
    %v1794 = vunpack.c.l.s4 1966171168
    %v1795 = vunpack.c.0.s8 %v1794
    %v1796 = vlaneseq
    %v1797 = vshrl.u32 %v1796, 7
    %v1798 = vsub.s32 %v1795, %v1797
    %v1799 = vrot.slane %v1771, %v1798
    %v1800 = vcombine.low %v1778, %v1785
    %v1801 = vcombine.low %v1792, %v1799
    %v1803 = vunpack.c.l.s4 1966171168
    %v1804 = vunpack.c.0.s8 %v1803
    %v1805 = vlaneseq
    %v1806 = vshrl.u32 %v1805, 7
    %v1807 = vsub.s32 %v1804, %v1806
    %v1808 = vrot.slane %v1800, %v1807
    %v1810 = vunpack.c.l.s4 1966171168
    %v1811 = vunpack.c.0.s8 %v1810
    %v1812 = vlaneseq
    %v1813 = vshrl.u32 %v1812, 7
    %v1814 = vsub.s32 %v1811, %v1813
    %v1815 = vrot.slane %v1801, %v1814
    %v1816 = vcombine.low %v1808, %v1815
    %v1821 = vunpack.c.l.b16 %v1756
    %v1822 = vunpack.c.l.b16 %v1757
    %v1823 = vunpack.c.l.b16 %v1758
    %v1824 = vunpack.c.l.b16 %v1759
    %v1825 = vpack.c.b16 %v1822, %v1821
    %v1826 = vpack.c.b16 %v1824, %v1823
    %v1830 = vsel %vm433, %v1816, 0
    %1832 = vmatprep.subr.bf16.mxu0 0
    %1833 = vmatpush1.bf16.msra.mxu0 %v1825
    %1834 = vmatprep.subr.bf16.mxu0 0
    %1835 = vmatpush1.bf16.msra.mxu0 %v1826
    %1836 = vmatprep.subr.bf16.mxu0 0
    %1837 = vmatpush1.bf16.msra.mxu0 0
    %1838 = vmatprep.subr.bf16.mxu0 0
    %1839 = vmatpush1.bf16.msra.mxu0 0
    %1840 = vmatprep.subr.bf16.mxu0 0
    %1841 = vmatpush1.bf16.msra.mxu0 0
    %1842 = vmatprep.subr.bf16.mxu0 0
    %1843 = vmatpush1.bf16.msra.mxu0 0
    %1844 = vmatprep.subr.bf16.mxu0 0
    %1845 = vmatpush1.bf16.msra.mxu0 0
    %1846 = vmatprep.subr.bf16.mxu0 0
    %1847 = vmatpush1.bf16.msra.mxu0 0
    %1848 = vmatprep.subr.bf16.mxu0 0
    %1849 = vmatpush1.bf16.msra.mxu0 0
    %1850 = vmatprep.subr.bf16.mxu0 0
    %1851 = vmatpush1.bf16.msra.mxu0 0
    %1852 = vmatprep.subr.bf16.mxu0 0
    %1853 = vmatpush1.bf16.msra.mxu0 0
    %1854 = vmatprep.subr.bf16.mxu0 0
    %1855 = vmatpush1.bf16.msra.mxu0 0
    %1856 = vmatprep.subr.bf16.mxu0 0
    %1857 = vmatpush1.bf16.msra.mxu0 0
    %1858 = vmatprep.subr.bf16.mxu0 0
    %1859 = vmatpush1.bf16.msra.mxu0 0
    %1860 = vmatprep.subr.bf16.mxu0 0
    %1861 = vmatpush1.bf16.msra.mxu0 0
    %1862 = vmatprep.subr.bf16.mxu0 0
    %1863 = vmatpush1.bf16.msra.mxu0 0
    %1864 = vmatprep.mubr.bf16.mxu0 0
    %1865 = vmatmul.mubr.bf16.gmra.mrb[0].mxu0 %v1830
    %v1866 = vpop.f32.mrb[0].mxu0
    %v1867 = vadd.f32 0.0, %v1866
    %v1868 = vpop.f32.mrb[0].mxu0
    %v1869 = vpop.f32.mrb[0].mxu0
    %v1870 = vadd.f32 0.0, %v1869
    %v1871 = vpop.f32.mrb[0].mxu0
    %1872 = vdwg.mxu0
    %v1873 = vadd.f32 %v1744, %v1867
    %v1874 = vadd.f32 %v1745, %v1870
    %v1875 = vmax.f32 %v1873, 0.0
    %v1876 = vmax.f32 %v1874, 0.0
    %v1879 = vcombine.high %v1875, %v1875
    %v1881 = vunpack.c.l.s4 1983009808
    %v1882 = vunpack.c.0.s8 %v1881
    %v1883 = vlaneseq
    %v1884 = vshrl.u32 %v1883, 7
    %v1885 = vsub.s32 %v1882, %v1884
    %v1886 = vrot.slane %v1875, %v1885
    %v1888 = vunpack.c.l.s4 1983009808
    %v1889 = vunpack.c.0.s8 %v1888
    %v1890 = vlaneseq
    %v1891 = vshrl.u32 %v1890, 7
    %v1892 = vsub.s32 %v1889, %v1891
    %v1893 = vrot.slane %v1879, %v1892
    %v1894 = vcombine.high %v1886, %v1886
    %v1895 = vcombine.high %v1893, %v1893
    %v1896 = vcombine.high %v1876, %v1876
    %v1898 = vunpack.c.l.s4 1983009808
    %v1899 = vunpack.c.0.s8 %v1898
    %v1900 = vlaneseq
    %v1901 = vshrl.u32 %v1900, 7
    %v1902 = vsub.s32 %v1899, %v1901
    %v1903 = vrot.slane %v1876, %v1902
    %v1905 = vunpack.c.l.s4 1983009808
    %v1906 = vunpack.c.0.s8 %v1905
    %v1907 = vlaneseq
    %v1908 = vshrl.u32 %v1907, 7
    %v1909 = vsub.s32 %v1906, %v1908
    %v1910 = vrot.slane %v1896, %v1909
    %v1911 = vcombine.high %v1903, %v1903
    %v1912 = vcombine.high %v1910, %v1910
    %v1921 = vmax.f32 %v1886, %v1894
    %v1922 = vmax.f32 %v1893, %v1895
    %v1923 = vmax.f32 %v1903, %v1911
    %v1924 = vmax.f32 %v1910, %v1912
    %v1925 = vpack.c.bf16 %v1921, %v1921
    %v1926 = vpack.c.bf16 %v1922, %v1922
    %v1927 = vpack.c.bf16 %v1923, %v1923
    %v1928 = vpack.c.bf16 %v1924, %v1924
    %v1929 = vld [vmem:[%s11] sm:$0x1]
    %vm1930 = vcmask 516096
    %1931 = vst.msk [vmem:[#allocation5] sm:$0x1] %vm1930, 0
    %s1932 = scalar_lea.vmem [#allocation5], 5
    %1933 = vst.msk [vmem:[%s1932] sm:$0x1] %vm1930, 0
    %s1934 = scalar_lea.vmem [#allocation5], 1
    %1935 = vst.msk [vmem:[%s1934] sm:$0x1] %vm1930, %v1925
    %1936 = vst.msk [vmem:[%s1934 + $0x1] sm:$0x1] %vm1930, %v1926
    %1937 = vst.msk [vmem:[%s1934 + $0x2] sm:$0x1] %vm1930, %v1927
    %1938 = vst.msk [vmem:[%s1934 + $0x3] sm:$0x1] %vm1930, %v1928
    %v1939 = vld [vmem:[#allocation5] sm:$0x1]
    %v1940 = vld [vmem:[#allocation5 + $0x1] sm:$0x1]
    %v1941 = vld [vmem:[#allocation5 + $0x2] sm:$0x1]
    %v1942 = vld [vmem:[#allocation5 + $0x3] sm:$0x1]
    %v1943 = vld [vmem:[#allocation12] sm:$0xf]
    %v1944 = vld [vmem:[#allocation12 + $0x4] sm:$0xf]
    %v1945 = vld [vmem:[#allocation12 + $0x8] sm:$0xf]
    %v1946 = vld [vmem:[#allocation12 + $0xc] sm:$0xf]
    %v1947 = vld [vmem:[#allocation12 + $0x10] sm:$0xf]
    %v1948 = vld [vmem:[#allocation12 + $0x14] sm:$0xf]
    %v1949 = vld [vmem:[#allocation12 + $0x18] sm:$0xf]
    %v1950 = vld [vmem:[#allocation12 + $0x1c] sm:$0xf]
    %v1955 = vcombine.low %v1939, %v1940
    %v1956 = vcombine.low %v1941, %v1942
    %v1958 = vunpack.c.l.s4 1966171168
    %v1959 = vunpack.c.0.s8 %v1958
    %v1960 = vlaneseq
    %v1961 = vshrl.u32 %v1960, 7
    %v1962 = vsub.s32 %v1959, %v1961
    %v1963 = vrot.slane %v1955, %v1962
    %v1965 = vunpack.c.l.s4 1966171168
    %v1966 = vunpack.c.0.s8 %v1965
    %v1967 = vlaneseq
    %v1968 = vshrl.u32 %v1967, 7
    %v1969 = vsub.s32 %v1966, %v1968
    %v1970 = vrot.slane %v1956, %v1969
    %v1971 = vcombine.low %v1963, %v1970
    %v1973 = vunpack.c.l.s4 1966171168
    %v1974 = vunpack.c.0.s8 %v1973
    %v1975 = vlaneseq
    %v1976 = vshrl.u32 %v1975, 7
    %v1977 = vsub.s32 %v1974, %v1976
    %v1978 = vrot.slane %v1971, %v1977
    %v1987 = vunpack.c.l.b16 %v1943
    %v1988 = vunpack.c.l.b16 %v1944
    %v1989 = vunpack.c.l.b16 %v1945
    %v1990 = vunpack.c.l.b16 %v1946
    %v1991 = vunpack.c.l.b16 %v1947
    %v1992 = vunpack.c.l.b16 %v1948
    %v1993 = vunpack.c.l.b16 %v1949
    %v1994 = vunpack.c.l.b16 %v1950
    %v1995 = vpack.c.b16 %v1988, %v1987
    %v1996 = vpack.c.b16 %v1990, %v1989
    %v1997 = vpack.c.b16 %v1992, %v1991
    %v1998 = vpack.c.b16 %v1994, %v1993
    %vm2003 = vcmask 523264
    %v2005 = vsel %vm2003, %v1978, 0
    %2007 = vmatprep.subr.bf16.mxu0 0
    %2008 = vmatpush1.bf16.msra.mxu0 %v1995
    %2009 = vmatprep.subr.bf16.mxu0 0
    %2010 = vmatpush1.bf16.msra.mxu0 %v1996
    %2011 = vmatprep.subr.bf16.mxu0 0
    %2012 = vmatpush1.bf16.msra.mxu0 %v1997
    %2013 = vmatprep.subr.bf16.mxu0 0
    %2014 = vmatpush1.bf16.msra.mxu0 %v1998
    %2015 = vmatprep.subr.bf16.mxu0 0
    %2016 = vmatpush1.bf16.msra.mxu0 0
    %2017 = vmatprep.subr.bf16.mxu0 0
    %2018 = vmatpush1.bf16.msra.mxu0 0
    %2019 = vmatprep.subr.bf16.mxu0 0
    %2020 = vmatpush1.bf16.msra.mxu0 0
    %2021 = vmatprep.subr.bf16.mxu0 0
    %2022 = vmatpush1.bf16.msra.mxu0 0
    %2023 = vmatprep.subr.bf16.mxu0 0
    %2024 = vmatpush1.bf16.msra.mxu0 0
    %2025 = vmatprep.subr.bf16.mxu0 0
    %2026 = vmatpush1.bf16.msra.mxu0 0
    %2027 = vmatprep.subr.bf16.mxu0 0
    %2028 = vmatpush1.bf16.msra.mxu0 0
    %2029 = vmatprep.subr.bf16.mxu0 0
    %2030 = vmatpush1.bf16.msra.mxu0 0
    %2031 = vmatprep.subr.bf16.mxu0 0
    %2032 = vmatpush1.bf16.msra.mxu0 0
    %2033 = vmatprep.subr.bf16.mxu0 0
    %2034 = vmatpush1.bf16.msra.mxu0 0
    %2035 = vmatprep.subr.bf16.mxu0 0
    %2036 = vmatpush1.bf16.msra.mxu0 0
    %2037 = vmatprep.subr.bf16.mxu0 0
    %2038 = vmatpush1.bf16.msra.mxu0 0
    %2039 = vmatprep.mubr.bf16.mxu0 0
    %2040 = vmatmul.mubr.bf16.gmra.mrb[0].mxu0 %v2005
    %v2041 = vpop.f32.mrb[0].mxu0
    %v2042 = vadd.f32 0.0, %v2041
    %v2043 = vpop.f32.mrb[0].mxu0
    %v2044 = vpop.f32.mrb[0].mxu0
    %v2045 = vpop.f32.mrb[0].mxu0
    %2046 = vdwg.mxu0
    %v2048 = vlaneseq
    %v2049 = vshrl.u32 %v2048, 7
    %v2050 = vsub.s32 0, %v2049
    %v2051 = vrot.slane %v1929, %v2050
    %v2053 = vadd.f32 %v2051, %v2042
    %v2054 = vld [vmem:[%s1934] sm:$0x1]
    %v2055 = vld [vmem:[%s1934 + $0x1] sm:$0x1]
    %v2056 = vld [vmem:[%s1934 + $0x2] sm:$0x1]
    %v2057 = vld [vmem:[%s1934 + $0x3] sm:$0x1]
    %s2058 = scalar_lea.vmem [#allocation12], 32
    %v2059 = vld [vmem:[%s2058] sm:$0xf]
    %v2060 = vld [vmem:[%s2058 + $0x4] sm:$0xf]
    %v2061 = vld [vmem:[%s2058 + $0x8] sm:$0xf]
    %v2062 = vld [vmem:[%s2058 + $0xc] sm:$0xf]
    %v2063 = vld [vmem:[%s2058 + $0x10] sm:$0xf]
    %v2064 = vld [vmem:[%s2058 + $0x14] sm:$0xf]
    %v2065 = vld [vmem:[%s2058 + $0x18] sm:$0xf]
    %v2066 = vld [vmem:[%s2058 + $0x1c] sm:$0xf]
    %v2071 = vcombine.low %v2054, %v2055
    %v2072 = vcombine.low %v2056, %v2057
    %v2074 = vunpack.c.l.s4 1966171168
    %v2075 = vunpack.c.0.s8 %v2074
    %v2076 = vlaneseq
    %v2077 = vshrl.u32 %v2076, 7
    %v2078 = vsub.s32 %v2075, %v2077
    %v2079 = vrot.slane %v2071, %v2078
    %v2081 = vunpack.c.l.s4 1966171168
    %v2082 = vunpack.c.0.s8 %v2081
    %v2083 = vlaneseq
    %v2084 = vshrl.u32 %v2083, 7
    %v2085 = vsub.s32 %v2082, %v2084
    %v2086 = vrot.slane %v2072, %v2085
    %v2087 = vcombine.low %v2079, %v2086
    %v2089 = vunpack.c.l.s4 1966171168
    %v2090 = vunpack.c.0.s8 %v2089
    %v2091 = vlaneseq
    %v2092 = vshrl.u32 %v2091, 7
    %v2093 = vsub.s32 %v2090, %v2092
    %v2094 = vrot.slane %v2087, %v2093
    %v2103 = vunpack.c.l.b16 %v2059
    %v2104 = vunpack.c.l.b16 %v2060
    %v2105 = vunpack.c.l.b16 %v2061
    %v2106 = vunpack.c.l.b16 %v2062
    %v2107 = vunpack.c.l.b16 %v2063
    %v2108 = vunpack.c.l.b16 %v2064
    %v2109 = vunpack.c.l.b16 %v2065
    %v2110 = vunpack.c.l.b16 %v2066
    %v2111 = vpack.c.b16 %v2104, %v2103
    %v2112 = vpack.c.b16 %v2106, %v2105
    %v2113 = vpack.c.b16 %v2108, %v2107
    %v2114 = vpack.c.b16 %v2110, %v2109
    %v2120 = vsel %vm2003, %v2094, 0
    %2122 = vmatprep.subr.bf16.mxu0 0
    %2123 = vmatpush1.bf16.msra.mxu0 %v2111
    %2124 = vmatprep.subr.bf16.mxu0 0
    %2125 = vmatpush1.bf16.msra.mxu0 %v2112
    %2126 = vmatprep.subr.bf16.mxu0 0
    %2127 = vmatpush1.bf16.msra.mxu0 %v2113
    %2128 = vmatprep.subr.bf16.mxu0 0
    %2129 = vmatpush1.bf16.msra.mxu0 %v2114
    %2130 = vmatprep.subr.bf16.mxu0 0
    %2131 = vmatpush1.bf16.msra.mxu0 0
    %2132 = vmatprep.subr.bf16.mxu0 0
    %2133 = vmatpush1.bf16.msra.mxu0 0
    %2134 = vmatprep.subr.bf16.mxu0 0
    %2135 = vmatpush1.bf16.msra.mxu0 0
    %2136 = vmatprep.subr.bf16.mxu0 0
    %2137 = vmatpush1.bf16.msra.mxu0 0
    %2138 = vmatprep.subr.bf16.mxu0 0
    %2139 = vmatpush1.bf16.msra.mxu0 0
    %2140 = vmatprep.subr.bf16.mxu0 0
    %2141 = vmatpush1.bf16.msra.mxu0 0
    %2142 = vmatprep.subr.bf16.mxu0 0
    %2143 = vmatpush1.bf16.msra.mxu0 0
    %2144 = vmatprep.subr.bf16.mxu0 0
    %2145 = vmatpush1.bf16.msra.mxu0 0
    %2146 = vmatprep.subr.bf16.mxu0 0
    %2147 = vmatpush1.bf16.msra.mxu0 0
    %2148 = vmatprep.subr.bf16.mxu0 0
    %2149 = vmatpush1.bf16.msra.mxu0 0
    %2150 = vmatprep.subr.bf16.mxu0 0
    %2151 = vmatpush1.bf16.msra.mxu0 0
    %2152 = vmatprep.subr.bf16.mxu0 0
    %2153 = vmatpush1.bf16.msra.mxu0 0
    %2154 = vmatprep.mubr.bf16.mxu0 0
    %2155 = vmatmul.mubr.bf16.gmra.mrb[0].mxu0 %v2120
    %v2156 = vpop.f32.mrb[0].mxu0
    %v2157 = vadd.f32 0.0, %v2156
    %v2158 = vpop.f32.mrb[0].mxu0
    %v2159 = vpop.f32.mrb[0].mxu0
    %v2160 = vpop.f32.mrb[0].mxu0
    %2161 = vdwg.mxu0
    %v2162 = vadd.f32 %v2053, %v2157
    %s2163 = scalar_lea.vmem [#allocation5], 2
    %v2164 = vld [vmem:[%s2163] sm:$0x1]
    %v2165 = vld [vmem:[%s2163 + $0x1] sm:$0x1]
    %v2166 = vld [vmem:[%s2163 + $0x2] sm:$0x1]
    %v2167 = vld [vmem:[%s2163 + $0x3] sm:$0x1]
    %s2168 = scalar_lea.vmem [#allocation12], 64
    %v2169 = vld [vmem:[%s2168] sm:$0xf]
    %v2170 = vld [vmem:[%s2168 + $0x4] sm:$0xf]
    %v2171 = vld [vmem:[%s2168 + $0x8] sm:$0xf]
    %v2172 = vld [vmem:[%s2168 + $0xc] sm:$0xf]
    %v2173 = vld [vmem:[%s2168 + $0x10] sm:$0xf]
    %v2174 = vld [vmem:[%s2168 + $0x14] sm:$0xf]
    %v2175 = vld [vmem:[%s2168 + $0x18] sm:$0xf]
    %v2176 = vld [vmem:[%s2168 + $0x1c] sm:$0xf]
    %v2181 = vcombine.low %v2164, %v2165
    %v2182 = vcombine.low %v2166, %v2167
    %v2184 = vunpack.c.l.s4 1966171168
    %v2185 = vunpack.c.0.s8 %v2184
    %v2186 = vlaneseq
    %v2187 = vshrl.u32 %v2186, 7
    %v2188 = vsub.s32 %v2185, %v2187
    %v2189 = vrot.slane %v2181, %v2188
    %v2191 = vunpack.c.l.s4 1966171168
    %v2192 = vunpack.c.0.s8 %v2191
    %v2193 = vlaneseq
    %v2194 = vshrl.u32 %v2193, 7
    %v2195 = vsub.s32 %v2192, %v2194
    %v2196 = vrot.slane %v2182, %v2195
    %v2197 = vcombine.low %v2189, %v2196
    %v2199 = vunpack.c.l.s4 1966171168
    %v2200 = vunpack.c.0.s8 %v2199
    %v2201 = vlaneseq
    %v2202 = vshrl.u32 %v2201, 7
    %v2203 = vsub.s32 %v2200, %v2202
    %v2204 = vrot.slane %v2197, %v2203
    %v2213 = vunpack.c.l.b16 %v2169
    %v2214 = vunpack.c.l.b16 %v2170
    %v2215 = vunpack.c.l.b16 %v2171
    %v2216 = vunpack.c.l.b16 %v2172
    %v2217 = vunpack.c.l.b16 %v2173
    %v2218 = vunpack.c.l.b16 %v2174
    %v2219 = vunpack.c.l.b16 %v2175
    %v2220 = vunpack.c.l.b16 %v2176
    %v2221 = vpack.c.b16 %v2214, %v2213
    %v2222 = vpack.c.b16 %v2216, %v2215
    %v2223 = vpack.c.b16 %v2218, %v2217
    %v2224 = vpack.c.b16 %v2220, %v2219
    %v2230 = vsel %vm2003, %v2204, 0
    %2232 = vmatprep.subr.bf16.mxu0 0
    %2233 = vmatpush1.bf16.msra.mxu0 %v2221
    %2234 = vmatprep.subr.bf16.mxu0 0
    %2235 = vmatpush1.bf16.msra.mxu0 %v2222
    %2236 = vmatprep.subr.bf16.mxu0 0
    %2237 = vmatpush1.bf16.msra.mxu0 %v2223
    %2238 = vmatprep.subr.bf16.mxu0 0
    %2239 = vmatpush1.bf16.msra.mxu0 %v2224
    %2240 = vmatprep.subr.bf16.mxu0 0
    %2241 = vmatpush1.bf16.msra.mxu0 0
    %2242 = vmatprep.subr.bf16.mxu0 0
    %2243 = vmatpush1.bf16.msra.mxu0 0
    %2244 = vmatprep.subr.bf16.mxu0 0
    %2245 = vmatpush1.bf16.msra.mxu0 0
    %2246 = vmatprep.subr.bf16.mxu0 0
    %2247 = vmatpush1.bf16.msra.mxu0 0
    %2248 = vmatprep.subr.bf16.mxu0 0
    %2249 = vmatpush1.bf16.msra.mxu0 0
    %2250 = vmatprep.subr.bf16.mxu0 0
    %2251 = vmatpush1.bf16.msra.mxu0 0
    %2252 = vmatprep.subr.bf16.mxu0 0
    %2253 = vmatpush1.bf16.msra.mxu0 0
    %2254 = vmatprep.subr.bf16.mxu0 0
    %2255 = vmatpush1.bf16.msra.mxu0 0
    %2256 = vmatprep.subr.bf16.mxu0 0
    %2257 = vmatpush1.bf16.msra.mxu0 0
    %2258 = vmatprep.subr.bf16.mxu0 0
    %2259 = vmatpush1.bf16.msra.mxu0 0
    %2260 = vmatprep.subr.bf16.mxu0 0
    %2261 = vmatpush1.bf16.msra.mxu0 0
    %2262 = vmatprep.subr.bf16.mxu0 0
    %2263 = vmatpush1.bf16.msra.mxu0 0
    %2264 = vmatprep.mubr.bf16.mxu0 0
    %2265 = vmatmul.mubr.bf16.gmra.mrb[0].mxu0 %v2230
    %v2266 = vpop.f32.mrb[0].mxu0
    %v2267 = vadd.f32 0.0, %v2266
    %v2268 = vpop.f32.mrb[0].mxu0
    %v2269 = vpop.f32.mrb[0].mxu0
    %v2270 = vpop.f32.mrb[0].mxu0
    %2271 = vdwg.mxu0
    %v2272 = vadd.f32 %v2162, %v2267
    %v2273 = vmax.f32 %v2272, 0.0
    %v2275 = vcombine.high %v2273, %v2273
    %v2277 = vunpack.c.l.s4 1983009808
    %v2278 = vunpack.c.0.s8 %v2277
    %v2279 = vlaneseq
    %v2280 = vshrl.u32 %v2279, 7
    %v2281 = vsub.s32 %v2278, %v2280
    %v2282 = vrot.slane %v2273, %v2281
    %v2284 = vunpack.c.l.s4 1983009808
    %v2285 = vunpack.c.0.s8 %v2284
    %v2286 = vlaneseq
    %v2287 = vshrl.u32 %v2286, 7
    %v2288 = vsub.s32 %v2285, %v2287
    %v2289 = vrot.slane %v2275, %v2288
    %v2290 = vcombine.high %v2282, %v2282
    %v2291 = vcombine.high %v2289, %v2289
    %v2296 = vmax.f32 %v2282, %v2290
    %v2297 = vmax.f32 %v2289, %v2291
    %v2298 = vpack.c.bf16 %v2296, %v2296
    %v2299 = vpack.c.bf16 %v2297, %v2297
    %v2300 = vld [vmem:[%s14] sm:$0x1]
    %v2301 = vld [vmem:[%s12] sm:$0xf]
    %v2302 = vld [vmem:[%s12 + $0x4] sm:$0xf]
    %v2303 = vld [vmem:[%s12 + $0x8] sm:$0xf]
    %v2304 = vld [vmem:[%s12 + $0xc] sm:$0xf]
    %v2305 = vld [vmem:[%s12 + $0x10] sm:$0xf]
    %v2306 = vld [vmem:[%s12 + $0x14] sm:$0xf]
    %v2307 = vld [vmem:[%s12 + $0x18] sm:$0xf]
    %v2308 = vld [vmem:[%s12 + $0x1c] sm:$0xf]
    %v2309 = vld [vmem:[%s12 + $0x20] sm:$0xf]
    %v2310 = vld [vmem:[%s12 + $0x24] sm:$0xf]
    %v2311 = vld [vmem:[%s12 + $0x28] sm:$0xf]
    %v2312 = vld [vmem:[%s12 + $0x2c] sm:$0xf]
    %v2313 = vld [vmem:[%s12 + $0x30] sm:$0xf]
    %v2314 = vld [vmem:[%s12 + $0x34] sm:$0xf]
    %v2315 = vld [vmem:[%s12 + $0x38] sm:$0xf]
    %v2316 = vld [vmem:[%s12 + $0x3c] sm:$0xf]
    %v2333 = vunpack.c.l.b16 %v2301
    %v2334 = vunpack.c.l.b16 %v2302
    %v2335 = vunpack.c.l.b16 %v2303
    %v2336 = vunpack.c.l.b16 %v2304
    %v2337 = vunpack.c.l.b16 %v2305
    %v2338 = vunpack.c.l.b16 %v2306
    %v2339 = vunpack.c.l.b16 %v2307
    %v2340 = vunpack.c.l.b16 %v2308
    %v2341 = vunpack.c.l.b16 %v2309
    %v2342 = vunpack.c.l.b16 %v2310
    %v2343 = vunpack.c.l.b16 %v2311
    %v2344 = vunpack.c.l.b16 %v2312
    %v2345 = vunpack.c.l.b16 %v2313
    %v2346 = vunpack.c.l.b16 %v2314
    %v2347 = vunpack.c.l.b16 %v2315
    %v2348 = vunpack.c.l.b16 %v2316
    %v2349 = vpack.c.b16 %v2334, %v2333
    %v2350 = vpack.c.b16 %v2336, %v2335
    %v2351 = vpack.c.b16 %v2338, %v2337
    %v2352 = vpack.c.b16 %v2340, %v2339
    %v2353 = vpack.c.b16 %v2342, %v2341
    %v2354 = vpack.c.b16 %v2344, %v2343
    %v2355 = vpack.c.b16 %v2346, %v2345
    %v2356 = vpack.c.b16 %v2348, %v2347
    %2365 = vmatprep.subr.bf16.mxu0 0
    %2366 = vmatpush1.bf16.msra.mxu0 %v2349
    %2367 = vmatprep.subr.bf16.mxu0 0
    %2368 = vmatpush1.bf16.msra.mxu0 %v2350
    %2369 = vmatprep.subr.bf16.mxu0 0
    %2370 = vmatpush1.bf16.msra.mxu0 %v2351
    %2371 = vmatprep.subr.bf16.mxu0 0
    %2372 = vmatpush1.bf16.msra.mxu0 %v2352
    %2373 = vmatprep.subr.bf16.mxu0 0
    %2374 = vmatpush1.bf16.msra.mxu0 %v2353
    %2375 = vmatprep.subr.bf16.mxu0 0
    %2376 = vmatpush1.bf16.msra.mxu0 %v2354
    %2377 = vmatprep.subr.bf16.mxu0 0
    %2378 = vmatpush1.bf16.msra.mxu0 %v2355
    %2379 = vmatprep.subr.bf16.mxu0 0
    %2380 = vmatpush1.bf16.msra.mxu0 %v2356
    %2381 = vmatprep.subr.bf16.mxu0 0
    %2382 = vmatpush1.bf16.msra.mxu0 0
    %2383 = vmatprep.subr.bf16.mxu0 0
    %2384 = vmatpush1.bf16.msra.mxu0 0
    %2385 = vmatprep.subr.bf16.mxu0 0
    %2386 = vmatpush1.bf16.msra.mxu0 0
    %2387 = vmatprep.subr.bf16.mxu0 0
    %2388 = vmatpush1.bf16.msra.mxu0 0
    %2389 = vmatprep.subr.bf16.mxu0 0
    %2390 = vmatpush1.bf16.msra.mxu0 0
    %2391 = vmatprep.subr.bf16.mxu0 0
    %2392 = vmatpush1.bf16.msra.mxu0 0
    %2393 = vmatprep.subr.bf16.mxu0 0
    %2394 = vmatpush1.bf16.msra.mxu0 0
    %2395 = vmatprep.subr.bf16.mxu0 0
    %2396 = vmatpush1.bf16.msra.mxu0 0
    %2397 = vmatprep.mubr.bf16.mxu0 0
    %2398 = vmatmul.mubr.bf16.gmra.mrb[0].mxu0 %v2298
    %v2399 = vpop.f32.mrb[0].mxu0
    %v2400 = vadd.f32 0.0, %v2399
    %v2401 = vpop.f32.mrb[0].mxu0
    %v2402 = vpop.f32.mrb[0].mxu0
    %v2403 = vpop.f32.mrb[0].mxu0
    %2404 = vdwg.mxu0
    %v2406 = vlaneseq
    %v2407 = vshrl.u32 %v2406, 7
    %v2408 = vsub.s32 0, %v2407
    %v2409 = vrot.slane %v2300, %v2408
    %v2411 = vadd.f32 %v2409, %v2400
    %s2412 = scalar_lea.vmem %s12, 64
    %v2413 = vld [vmem:[%s2412] sm:$0xf]
    %v2414 = vld [vmem:[%s2412 + $0x4] sm:$0xf]
    %v2415 = vld [vmem:[%s2412 + $0x8] sm:$0xf]
    %v2416 = vld [vmem:[%s2412 + $0xc] sm:$0xf]
    %v2417 = vld [vmem:[%s2412 + $0x10] sm:$0xf]
    %v2418 = vld [vmem:[%s2412 + $0x14] sm:$0xf]
    %v2419 = vld [vmem:[%s2412 + $0x18] sm:$0xf]
    %v2420 = vld [vmem:[%s2412 + $0x1c] sm:$0xf]
    %v2421 = vld [vmem:[%s2412 + $0x20] sm:$0xf]
    %v2422 = vld [vmem:[%s2412 + $0x24] sm:$0xf]
    %v2423 = vld [vmem:[%s2412 + $0x28] sm:$0xf]
    %v2424 = vld [vmem:[%s2412 + $0x2c] sm:$0xf]
    %v2425 = vld [vmem:[%s2412 + $0x30] sm:$0xf]
    %v2426 = vld [vmem:[%s2412 + $0x34] sm:$0xf]
    %v2427 = vld [vmem:[%s2412 + $0x38] sm:$0xf]
    %v2428 = vld [vmem:[%s2412 + $0x3c] sm:$0xf]
    %v2445 = vunpack.c.l.b16 %v2413
    %v2446 = vunpack.c.l.b16 %v2414
    %v2447 = vunpack.c.l.b16 %v2415
    %v2448 = vunpack.c.l.b16 %v2416
    %v2449 = vunpack.c.l.b16 %v2417
    %v2450 = vunpack.c.l.b16 %v2418
    %v2451 = vunpack.c.l.b16 %v2419
    %v2452 = vunpack.c.l.b16 %v2420
    %v2453 = vunpack.c.l.b16 %v2421
    %v2454 = vunpack.c.l.b16 %v2422
    %v2455 = vunpack.c.l.b16 %v2423
    %v2456 = vunpack.c.l.b16 %v2424
    %v2457 = vunpack.c.l.b16 %v2425
    %v2458 = vunpack.c.l.b16 %v2426
    %v2459 = vunpack.c.l.b16 %v2427
    %v2460 = vunpack.c.l.b16 %v2428
    %v2461 = vpack.c.b16 %v2446, %v2445
    %v2462 = vpack.c.b16 %v2448, %v2447
    %v2463 = vpack.c.b16 %v2450, %v2449
    %v2464 = vpack.c.b16 %v2452, %v2451
    %v2465 = vpack.c.b16 %v2454, %v2453
    %v2466 = vpack.c.b16 %v2456, %v2455
    %v2467 = vpack.c.b16 %v2458, %v2457
    %v2468 = vpack.c.b16 %v2460, %v2459
    %2477 = vmatprep.subr.bf16.mxu0 0
    %2478 = vmatpush1.bf16.msra.mxu0 %v2461
    %2479 = vmatprep.subr.bf16.mxu0 0
    %2480 = vmatpush1.bf16.msra.mxu0 %v2462
    %2481 = vmatprep.subr.bf16.mxu0 0
    %2482 = vmatpush1.bf16.msra.mxu0 %v2463
    %2483 = vmatprep.subr.bf16.mxu0 0
    %2484 = vmatpush1.bf16.msra.mxu0 %v2464
    %2485 = vmatprep.subr.bf16.mxu0 0
    %2486 = vmatpush1.bf16.msra.mxu0 %v2465
    %2487 = vmatprep.subr.bf16.mxu0 0
    %2488 = vmatpush1.bf16.msra.mxu0 %v2466
    %2489 = vmatprep.subr.bf16.mxu0 0
    %2490 = vmatpush1.bf16.msra.mxu0 %v2467
    %2491 = vmatprep.subr.bf16.mxu0 0
    %2492 = vmatpush1.bf16.msra.mxu0 %v2468
    %2493 = vmatprep.subr.bf16.mxu0 0
    %2494 = vmatpush1.bf16.msra.mxu0 0
    %2495 = vmatprep.subr.bf16.mxu0 0
    %2496 = vmatpush1.bf16.msra.mxu0 0
    %2497 = vmatprep.subr.bf16.mxu0 0
    %2498 = vmatpush1.bf16.msra.mxu0 0
    %2499 = vmatprep.subr.bf16.mxu0 0
    %2500 = vmatpush1.bf16.msra.mxu0 0
    %2501 = vmatprep.subr.bf16.mxu0 0
    %2502 = vmatpush1.bf16.msra.mxu0 0
    %2503 = vmatprep.subr.bf16.mxu0 0
    %2504 = vmatpush1.bf16.msra.mxu0 0
    %2505 = vmatprep.subr.bf16.mxu0 0
    %2506 = vmatpush1.bf16.msra.mxu0 0
    %2507 = vmatprep.subr.bf16.mxu0 0
    %2508 = vmatpush1.bf16.msra.mxu0 0
    %2509 = vmatprep.mubr.bf16.mxu0 0
    %2510 = vmatmul.mubr.bf16.gmra.mrb[0].mxu0 %v2299
    %v2511 = vpop.f32.mrb[0].mxu0
    %v2512 = vadd.f32 0.0, %v2511
    %v2513 = vpop.f32.mrb[0].mxu0
    %v2514 = vpop.f32.mrb[0].mxu0
    %v2515 = vpop.f32.mrb[0].mxu0
    %2516 = vdwg.mxu0
    %v2517 = vadd.f32 %v2411, %v2512
    %v2518 = vpack.c.bf16 %v1470, %v1470
    %v2519 = vld [vmem:[#allocation13] sm:$0xf]
    %v2520 = vld [vmem:[#allocation13 + $0x4] sm:$0xf]
    %v2521 = vld [vmem:[#allocation13 + $0x8] sm:$0xf]
    %v2522 = vld [vmem:[#allocation13 + $0xc] sm:$0xf]
    %v2527 = vunpack.c.l.b16 %v2519
    %v2528 = vunpack.c.l.b16 %v2520
    %v2529 = vunpack.c.l.b16 %v2521
    %v2530 = vunpack.c.l.b16 %v2522
    %v2531 = vpack.c.b16 %v2528, %v2527
    %v2532 = vpack.c.b16 %v2530, %v2529
    %v2536 = vsel %vm433, %v2518, 0
    %2538 = vmatprep.subr.bf16.mxu0 0
    %2539 = vmatpush1.bf16.msra.mxu0 %v2531
    %2540 = vmatprep.subr.bf16.mxu0 0
    %2541 = vmatpush1.bf16.msra.mxu0 %v2532
    %2542 = vmatprep.subr.bf16.mxu0 0
    %2543 = vmatpush1.bf16.msra.mxu0 0
    %2544 = vmatprep.subr.bf16.mxu0 0
    %2545 = vmatpush1.bf16.msra.mxu0 0
    %2546 = vmatprep.subr.bf16.mxu0 0
    %2547 = vmatpush1.bf16.msra.mxu0 0
    %2548 = vmatprep.subr.bf16.mxu0 0
    %2549 = vmatpush1.bf16.msra.mxu0 0
    %2550 = vmatprep.subr.bf16.mxu0 0
    %2551 = vmatpush1.bf16.msra.mxu0 0
    %2552 = vmatprep.subr.bf16.mxu0 0
    %2553 = vmatpush1.bf16.msra.mxu0 0
    %2554 = vmatprep.subr.bf16.mxu0 0
    %2555 = vmatpush1.bf16.msra.mxu0 0
    %2556 = vmatprep.subr.bf16.mxu0 0
    %2557 = vmatpush1.bf16.msra.mxu0 0
    %2558 = vmatprep.subr.bf16.mxu0 0
    %2559 = vmatpush1.bf16.msra.mxu0 0
    %2560 = vmatprep.subr.bf16.mxu0 0
    %2561 = vmatpush1.bf16.msra.mxu0 0
    %2562 = vmatprep.subr.bf16.mxu0 0
    %2563 = vmatpush1.bf16.msra.mxu0 0
    %2564 = vmatprep.subr.bf16.mxu0 0
    %2565 = vmatpush1.bf16.msra.mxu0 0
    %2566 = vmatprep.subr.bf16.mxu0 0
    %2567 = vmatpush1.bf16.msra.mxu0 0
    %2568 = vmatprep.subr.bf16.mxu0 0
    %2569 = vmatpush1.bf16.msra.mxu0 0
    %2570 = vmatprep.mubr.bf16.mxu0 0
    %2571 = vmatmul.mubr.bf16.gmra.mrb[0].mxu0 %v2536
    %v2572 = vpop.f32.mrb[0].mxu0
    %v2573 = vadd.f32 0.0, %v2572
    %v2574 = vpop.f32.mrb[0].mxu0
    %v2575 = vpop.f32.mrb[0].mxu0
    %v2576 = vpop.f32.mrb[0].mxu0
    %2577 = vdwg.mxu0
    %v2578 = vadd.f32 %v2517, %v2573
    %v2579 = vmax.f32 %v2578, 0.0
    %v2580 = vpack.c.bf16 %v2579, %v2579
    %v2581 = vld [vmem:[%s15] sm:$0xf]
    %v2582 = vld [vmem:[%s15 + $0x4] sm:$0xf]
    %v2583 = vld [vmem:[%s15 + $0x8] sm:$0xf]
    %v2584 = vld [vmem:[%s15 + $0xc] sm:$0xf]
    %v2585 = vld [vmem:[%s15 + $0x10] sm:$0xf]
    %v2586 = vld [vmem:[%s15 + $0x14] sm:$0xf]
    %v2587 = vld [vmem:[%s15 + $0x18] sm:$0xf]
    %v2588 = vld [vmem:[%s15 + $0x1c] sm:$0xf]
    %v2589 = vld [vmem:[%s15 + $0x20] sm:$0xf]
    %v2590 = vld [vmem:[%s15 + $0x24] sm:$0xf]
    %v2591 = vld [vmem:[%s15 + $0x28] sm:$0xf]
    %v2592 = vld [vmem:[%s15 + $0x2c] sm:$0xf]
    %v2593 = vld [vmem:[%s15 + $0x30] sm:$0xf]
    %v2594 = vld [vmem:[%s15 + $0x34] sm:$0xf]
    %v2595 = vld [vmem:[%s15 + $0x38] sm:$0xf]
    %v2596 = vld [vmem:[%s15 + $0x3c] sm:$0xf]
    %v2597 = vld [vmem:[%s16] sm:$0x1]
    %v2599 = vlaneseq
    %v2600 = vshrl.u32 %v2599, 7
    %v2601 = vsub.s32 0, %v2600
    %v2602 = vrot.slane %v2597, %v2601
    %v2620 = vunpack.c.l.b16 %v2581
    %v2621 = vunpack.c.l.b16 %v2582
    %v2622 = vunpack.c.l.b16 %v2583
    %v2623 = vunpack.c.l.b16 %v2584
    %v2624 = vunpack.c.l.b16 %v2585
    %v2625 = vunpack.c.l.b16 %v2586
    %v2626 = vunpack.c.l.b16 %v2587
    %v2627 = vunpack.c.l.b16 %v2588
    %v2628 = vunpack.c.l.b16 %v2589
    %v2629 = vunpack.c.l.b16 %v2590
    %v2630 = vunpack.c.l.b16 %v2591
    %v2631 = vunpack.c.l.b16 %v2592
    %v2632 = vunpack.c.l.b16 %v2593
    %v2633 = vunpack.c.l.b16 %v2594
    %v2634 = vunpack.c.l.b16 %v2595
    %v2635 = vunpack.c.l.b16 %v2596
    %v2636 = vpack.c.b16 %v2621, %v2620
    %v2637 = vpack.c.b16 %v2623, %v2622
    %v2638 = vpack.c.b16 %v2625, %v2624
    %v2639 = vpack.c.b16 %v2627, %v2626
    %v2640 = vpack.c.b16 %v2629, %v2628
    %v2641 = vpack.c.b16 %v2631, %v2630
    %v2642 = vpack.c.b16 %v2633, %v2632
    %v2643 = vpack.c.b16 %v2635, %v2634
    %2652 = vmatprep.subr.bf16.mxu0 0
    %2653 = vmatpush1.bf16.msra.mxu0 %v2636
    %2654 = vmatprep.subr.bf16.mxu0 0
    %2655 = vmatpush1.bf16.msra.mxu0 %v2637
    %2656 = vmatprep.subr.bf16.mxu0 0
    %2657 = vmatpush1.bf16.msra.mxu0 %v2638
    %2658 = vmatprep.subr.bf16.mxu0 0
    %2659 = vmatpush1.bf16.msra.mxu0 %v2639
    %2660 = vmatprep.subr.bf16.mxu0 0
    %2661 = vmatpush1.bf16.msra.mxu0 %v2640
    %2662 = vmatprep.subr.bf16.mxu0 0
    %2663 = vmatpush1.bf16.msra.mxu0 %v2641
    %2664 = vmatprep.subr.bf16.mxu0 0
    %2665 = vmatpush1.bf16.msra.mxu0 %v2642
    %2666 = vmatprep.subr.bf16.mxu0 0
    %2667 = vmatpush1.bf16.msra.mxu0 %v2643
    %2668 = vmatprep.subr.bf16.mxu0 0
    %2669 = vmatpush1.bf16.msra.mxu0 0
    %2670 = vmatprep.subr.bf16.mxu0 0
    %2671 = vmatpush1.bf16.msra.mxu0 0
    %2672 = vmatprep.subr.bf16.mxu0 0
    %2673 = vmatpush1.bf16.msra.mxu0 0
    %2674 = vmatprep.subr.bf16.mxu0 0
    %2675 = vmatpush1.bf16.msra.mxu0 0
    %2676 = vmatprep.subr.bf16.mxu0 0
    %2677 = vmatpush1.bf16.msra.mxu0 0
    %2678 = vmatprep.subr.bf16.mxu0 0
    %2679 = vmatpush1.bf16.msra.mxu0 0
    %2680 = vmatprep.subr.bf16.mxu0 0
    %2681 = vmatpush1.bf16.msra.mxu0 0
    %2682 = vmatprep.subr.bf16.mxu0 0
    %2683 = vmatpush1.bf16.msra.mxu0 0
    %2684 = vmatprep.mubr.bf16.mxu0 0
    %2685 = vmatmul.mubr.bf16.gmra.mrb[0].mxu0 %v2580
    %v2686 = vpop.f32.mrb[0].mxu0
    %v2687 = vadd.f32 %v2602, %v2686
    %v2688 = vpop.f32.mrb[0].mxu0
    %v2689 = vpop.f32.mrb[0].mxu0
    %v2690 = vpop.f32.mrb[0].mxu0
    %2691 = vdwg.mxu0
    %vm2692 = vcmask 33792
    %v2693 = vsel %vm2692, %v2687, -inf
    %2694 = vmax.xlane.f32.xlu0 %v2693
    %v2695 = vpop.xlane.xlu0 %2694
    %v2696 = vsub.f32 %v2687, %v2695
    %v2697 = vmul.f32 %v2696, 1.442695
    %v2698 = vpow.pop %v2697
    %v2699 = vsel %vm2692, %v2698, 0.0
    %2700 = vadd.xlane.f32.xlu0 %v2699
    %v2701 = vpop.xlane.xlu0 %2700
    %v2702 = vrcp.pop %v2701
    %v2703 = vmul.f32 %v2698, %v2702
    %2704 = vst.msk [vmem:[#allocation15] sm:$0x3] %vm2692, %v2703
    // Predicated region
    $region86: #{quantum_classifier_forward.1} parent=1 // pred_check
      _
    $region87: #{quantum_classifier_forward.1} parent=1 // pred_check_branch
      %2706 = sbr.rel (0) target = $region89
    $region88: #{quantum_classifier_forward.1} parent=1 // pred_region
      %s2708 = ssub.s32 32, 32
      %2709 = vsyncadd [#allocation9], %s2708
      %s2711 = sshll.u32 [#allocation15], 4
      %s2712 = int_to_ptr.vmem [resolvable:$true] %s2711
      %2714 = dma.vmem_to_hbm [thread:$0]  %s2712, 32, %s17, [#allocation9]
    $region89: #{quantum_classifier_forward.1} parent=1 // pred_fallthru
      _
    // Predicated region
    $region90: #{quantum_classifier_forward.1} parent=1 // pred_check
      _
    $region91: #{quantum_classifier_forward.1} parent=1 // pred_check_branch
      %2716 = sbr.rel (0) target = $region93
    $region92: #{quantum_classifier_forward.1} parent=1 // pred_region
      %2717 = dma.done [#allocation9], 32
    $region93: #{quantum_classifier_forward.1} parent=1 // pred_fallthru
      _
    %2718 = vsyncpa [#allocation8], 1
    %2719 = vsyncpa [#allocation11], 1
    %2720 = vsyncpa [#allocation14], 1
    %2721 = vsyncpa [#allocation9], 1

</llo_original>
